<compile_context>
chip_gen: v7x
topology: tpu7x:2x2x1
jax: 0.10.0
libtpu: 0.0.40
codegen_flags: <defaults>
</compile_context>

<pallas_src>
import math

import jax
import jax.numpy as jnp
from jax.experimental import pallas as pl
from jax.experimental.pallas import tpu as pltpu

# ----------------------------- model config -----------------------------
VOCAB = 128
MAX_POS = 32
HIDDEN = 32
HEADS = 4
HEAD_DIM = HIDDEN // HEADS
FFN = 64
LAYERS = 2
EPS = 1e-12


# ------------------------------- kernel ---------------------------------
def _layernorm(x, g, b):
    mean = jnp.mean(x, axis=-1, keepdims=True)
    var = jnp.mean(jnp.square(x - mean), axis=-1, keepdims=True)
    return (x - mean) * jax.lax.rsqrt(var + EPS) * g + b


def _encoder_kernel(word_ref, pos_type_ref, mask_ref,
                    emb_g_ref, emb_b_ref,
                    wqkv_ref, bqkv_ref, wo_ref, bo_ref,
                    ln1_g_ref, ln1_b_ref,
                    w1_ref, b1_ref, w2_ref, b2_ref,
                    ln2_g_ref, ln2_b_ref,
                    pool_w_ref, pool_b_ref,
                    hs_ref, pooled_ref):
    # One grid step == one batch element. Everything stays resident in VMEM.
    word = word_ref[0]                                     # [S, H]
    h = _layernorm(word + pos_type_ref[...], emb_g_ref[...], emb_b_ref[...])
    hs_ref[0, 0] = h                                       # embeddings output

    mask = mask_ref[0]                                     # [1, S] additive (-1e4 on pads)
    scale = 1.0 / math.sqrt(HEAD_DIM)

    for li in range(LAYERS):                               # static unroll (LAYERS=2)
        # ---- fused QKV projection: one [S,H] x [H,3H] MXU pass ----
        qkv = (jnp.dot(h, wqkv_ref[li], preferred_element_type=jnp.float32)
               + bqkv_ref[li])                             # [S, 3H]
        q = qkv[:, :HIDDEN]
        k = qkv[:, HIDDEN:2 * HIDDEN]
        v = qkv[:, 2 * HIDDEN:]

        # ---- multi-head attention, all heads inside this body ----
        ctx = []
        for hd in range(HEADS):
            sl = slice(hd * HEAD_DIM, (hd + 1) * HEAD_DIM)
            qh, kh, vh = q[:, sl], k[:, sl], v[:, sl]      # [S, D] each
            s = jnp.dot(qh, kh.T, preferred_element_type=jnp.float32) * scale + mask
            s = s - jnp.max(s, axis=-1, keepdims=True)
            p = jnp.exp(s)
            p = p * pl.reciprocal(jnp.sum(p, axis=-1, keepdims=True), approx=True)
            ctx.append(jnp.dot(p, vh, preferred_element_type=jnp.float32))
        ctx = jnp.concatenate(ctx, axis=-1)                # [S, H]

        # ---- attention output projection + residual LayerNorm ----
        attn_out = (jnp.dot(ctx, wo_ref[li], preferred_element_type=jnp.float32)
                    + bo_ref[li])
        h = _layernorm(attn_out + h, ln1_g_ref[li], ln1_b_ref[li])

        # ---- FFN + residual LayerNorm ----
        ffn = jnp.dot(h, w1_ref[li], preferred_element_type=jnp.float32) + b1_ref[li]
        # TODO(synk): HF BERT uses exact erf-GELU; tanh approximation used here.
        ffn = jax.nn.gelu(ffn, approximate=True)
        ffn = jnp.dot(ffn, w2_ref[li], preferred_element_type=jnp.float32) + b2_ref[li]
        h = _layernorm(ffn + h, ln2_g_ref[li], ln2_b_ref[li])

        hs_ref[li + 1, 0] = h                              # per-layer hidden state

    # ---- pooler: tanh(W @ CLS + b) folded into the same kernel ----
    cls = h[0:1, :]                                        # [1, H]
    pooled = jnp.tanh(
        jnp.dot(cls, pool_w_ref[...], preferred_element_type=jnp.float32)
        + pool_b_ref[...])
    pooled_ref[0] = pooled


# --------------------------- parameter setup -----------------------------
def init_params(key):
    def normal(k, shape, scale=0.02):
        return scale * jax.random.normal(k, shape, dtype=jnp.float32)

    keys = jax.random.split(key, 4 + LAYERS)
    wqkv, bqkv, wo, bo = [], [], [], []
    ln1_g, ln1_b, w1, b1, w2, b2, ln2_g, ln2_b = ([] for _ in range(8))
    for li in range(LAYERS):
        lk = jax.random.split(keys[4 + li], 6)
        wq = normal(lk[0], (HIDDEN, HIDDEN))
        wk = normal(lk[1], (HIDDEN, HIDDEN))
        wv = normal(lk[2], (HIDDEN, HIDDEN))
        wqkv.append(jnp.concatenate([wq, wk, wv], axis=1))       # [H, 3H] fused
        bqkv.append(jnp.zeros((1, 3 * HIDDEN), jnp.float32))
        wo.append(normal(lk[3], (HIDDEN, HIDDEN)))
        bo.append(jnp.zeros((1, HIDDEN), jnp.float32))
        ln1_g.append(jnp.ones((1, HIDDEN), jnp.float32))
        ln1_b.append(jnp.zeros((1, HIDDEN), jnp.float32))
        w1.append(normal(lk[4], (HIDDEN, FFN)))
        b1.append(jnp.zeros((1, FFN), jnp.float32))
        w2.append(normal(lk[5], (FFN, HIDDEN)))
        b2.append(jnp.zeros((1, HIDDEN), jnp.float32))
        ln2_g.append(jnp.ones((1, HIDDEN), jnp.float32))
        ln2_b.append(jnp.zeros((1, HIDDEN), jnp.float32))

    return {
        "word_emb": normal(keys[0], (VOCAB, HIDDEN)),
        "pos_emb": normal(keys[1], (MAX_POS, HIDDEN)),
        "type_emb": normal(keys[2], (2, HIDDEN)),
        "emb_ln_g": jnp.ones((1, HIDDEN), jnp.float32),
        "emb_ln_b": jnp.zeros((1, HIDDEN), jnp.float32),
        "pooler_w": normal(keys[3], (HIDDEN, HIDDEN)),
        "pooler_b": jnp.zeros((1, HIDDEN), jnp.float32),
        "wqkv": jnp.stack(wqkv), "bqkv": jnp.stack(bqkv),
        "wo": jnp.stack(wo), "bo": jnp.stack(bo),
        "ln1_g": jnp.stack(ln1_g), "ln1_b": jnp.stack(ln1_b),
        "w1": jnp.stack(w1), "b1": jnp.stack(b1),
        "w2": jnp.stack(w2), "b2": jnp.stack(b2),
        "ln2_g": jnp.stack(ln2_g), "ln2_b": jnp.stack(ln2_b),
    }


# ------------------------------ forward ----------------------------------
@jax.jit
def plm_forward(params, input_ids, attention_mask):
    """Equivalent of PLM.forward: encoder(**inputs, output_hidden_states=True)."""
    B, S = input_ids.shape

    # Embedding gather is glue (XLA gather); everything after it is one kernel.
    word = jnp.take(params["word_emb"], input_ids, axis=0)          # [B, S, H]
    pos_type = params["pos_emb"][:S] + params["type_emb"][0][None, :]   # [S, H]
    # Additive attention mask, HF convention: (1 - mask) * -10000.
    mask_add = (1.0 - attention_mask.astype(jnp.float32))[:, None, :] * -10000.0  # [B,1,S]

    full2 = lambda b: (0, 0)
    full3 = lambda b: (0, 0, 0)

    hs, pooled = pl.pallas_call(
        _encoder_kernel,
        out_shape=(
            jax.ShapeDtypeStruct((LAYERS + 1, B, S, HIDDEN), jnp.float32),
            jax.ShapeDtypeStruct((B, 1, HIDDEN), jnp.float32),
        ),
        grid=(B,),
        in_specs=[
            pl.BlockSpec((1, S, HIDDEN), lambda b: (b, 0, 0)),      # word embeddings
            pl.BlockSpec((S, HIDDEN), full2),                       # pos + token-type
            pl.BlockSpec((1, 1, S), lambda b: (b, 0, 0)),           # additive mask
            pl.BlockSpec((1, HIDDEN), full2),                       # emb LN gamma
            pl.BlockSpec((1, HIDDEN), full2),                       # emb LN beta
            pl.BlockSpec((LAYERS, HIDDEN, 3 * HIDDEN), full3),      # fused QKV weight
            pl.BlockSpec((LAYERS, 1, 3 * HIDDEN), full3),           # fused QKV bias
            pl.BlockSpec((LAYERS, HIDDEN, HIDDEN), full3),          # wo
            pl.BlockSpec((LAYERS, 1, HIDDEN), full3),               # bo
            pl.BlockSpec((LAYERS, 1, HIDDEN), full3),               # ln1 gamma
            pl.BlockSpec((LAYERS, 1, HIDDEN), full3),               # ln1 beta
            pl.BlockSpec((LAYERS, HIDDEN, FFN), full3),             # w1
            pl.BlockSpec((LAYERS, 1, FFN), full3),                  # b1
            pl.BlockSpec((LAYERS, FFN, HIDDEN), full3),             # w2
            pl.BlockSpec((LAYERS, 1, HIDDEN), full3),               # b2
            pl.BlockSpec((LAYERS, 1, HIDDEN), full3),               # ln2 gamma
            pl.BlockSpec((LAYERS, 1, HIDDEN), full3),               # ln2 beta
            pl.BlockSpec((HIDDEN, HIDDEN), full2),                  # pooler weight
            pl.BlockSpec((1, HIDDEN), full2),                       # pooler bias
        ],
        out_specs=(
            pl.BlockSpec((LAYERS + 1, 1, S, HIDDEN), lambda b: (0, b, 0, 0)),
            pl.BlockSpec((1, 1, HIDDEN), lambda b: (b, 0, 0)),
        ),
        compiler_params=pltpu.CompilerParams(
            dimension_semantics=("parallel",)),                     # 2 TCs on v7x
    )(word, pos_type, mask_add,
      params["emb_ln_g"], params["emb_ln_b"],
      params["wqkv"], params["bqkv"], params["wo"], params["bo"],
      params["ln1_g"], params["ln1_b"],
      params["w1"], params["b1"], params["w2"], params["b2"],
      params["ln2_g"], params["ln2_b"],
      params["pooler_w"], params["pooler_b"])

    hidden_states = tuple(hs[i] for i in range(LAYERS + 1))
    return {
        "last_hidden_state": hidden_states[-1],
        "pooler_output": pooled[:, 0, :],
        "hidden_states": hidden_states,
    }


# -------------------------------- main -----------------------------------
if __name__ == "__main__":
    # TODO(synk): tokenizer / pretrained-checkpoint loading have no Pallas
    # equivalent; synthetic token ids stand in for tokenizer output.
    key = jax.random.PRNGKey(0)
    pkey, ikey = jax.random.split(key)

    params = init_params(pkey)

    B, S = 2, 8
    input_ids = jax.random.randint(ikey, (B, S), 0, VOCAB, dtype=jnp.int32)
    attention_mask = jnp.array(
        [[1, 1, 1, 1, 1, 1, 1, 1],
         [1, 1, 1, 1, 1, 0, 0, 0]], dtype=jnp.int32)

    outputs = plm_forward(params, input_ids, attention_mask)
    jax.block_until_ready(outputs)

    assert outputs["last_hidden_state"].shape == (B, S, HIDDEN)
    assert outputs["pooler_output"].shape == (B, HIDDEN)
    assert len(outputs["hidden_states"]) == LAYERS + 1
    assert jnp.all(jnp.isfinite(outputs["last_hidden_state"]))
    assert jnp.all(jnp.isfinite(outputs["pooler_output"]))
    print("KERNEL_OK")
</pallas_src>

<mosaic_0001>
module attributes {stable_mosaic.version = 11 : i64} {
  func.func @_encoder_kernel(%arg0: i32, %arg1: memref<1x8x32xf32, #tpu.memory_space<vmem>>, %arg2: memref<8x32xf32, #tpu.memory_space<vmem>>, %arg3: memref<1x1x8xf32, #tpu.memory_space<vmem>>, %arg4: memref<1x32xf32, #tpu.memory_space<vmem>>, %arg5: memref<1x32xf32, #tpu.memory_space<vmem>>, %arg6: memref<2x32x96xf32, #tpu.memory_space<vmem>>, %arg7: memref<2x1x96xf32, #tpu.memory_space<vmem>>, %arg8: memref<2x32x32xf32, #tpu.memory_space<vmem>>, %arg9: memref<2x1x32xf32, #tpu.memory_space<vmem>>, %arg10: memref<2x1x32xf32, #tpu.memory_space<vmem>>, %arg11: memref<2x1x32xf32, #tpu.memory_space<vmem>>, %arg12: memref<2x32x64xf32, #tpu.memory_space<vmem>>, %arg13: memref<2x1x64xf32, #tpu.memory_space<vmem>>, %arg14: memref<2x64x32xf32, #tpu.memory_space<vmem>>, %arg15: memref<2x1x32xf32, #tpu.memory_space<vmem>>, %arg16: memref<2x1x32xf32, #tpu.memory_space<vmem>>, %arg17: memref<2x1x32xf32, #tpu.memory_space<vmem>>, %arg18: memref<32x32xf32, #tpu.memory_space<vmem>>, %arg19: memref<1x32xf32, #tpu.memory_space<vmem>>, %arg20: memref<3x1x8x32xf32, #tpu.memory_space<vmem>>, %arg21: memref<1x1x32xf32, #tpu.memory_space<vmem>>) attributes {dimension_semantics = [#tpu.dimension_semantics<parallel>], iteration_bounds = array<i64: 2>, scalar_prefetch = 0 : i64, scratch_operands = 0 : i64, tpu.core_type = #tpu.core_type<tc>, window_params = [{transform_indices = @transform_0, window_bounds = array<i64: 1, 8, 32>}, {pipeline_mode = #tpu.pipeline_mode<synchronous>, transform_indices = @transform_1, window_bounds = array<i64: 8, 32>}, {transform_indices = @transform_2, window_bounds = array<i64: 1, 1, 8>}, {pipeline_mode = #tpu.pipeline_mode<synchronous>, transform_indices = @transform_3, window_bounds = array<i64: 1, 32>}, {pipeline_mode = #tpu.pipeline_mode<synchronous>, transform_indices = @transform_4, window_bounds = array<i64: 1, 32>}, {pipeline_mode = #tpu.pipeline_mode<synchronous>, transform_indices = @transform_5, window_bounds = array<i64: 2, 32, 96>}, {pipeline_mode = #tpu.pipeline_mode<synchronous>, transform_indices = @transform_6, window_bounds = array<i64: 2, 1, 96>}, {pipeline_mode = #tpu.pipeline_mode<synchronous>, transform_indices = @transform_7, window_bounds = array<i64: 2, 32, 32>}, {pipeline_mode = #tpu.pipeline_mode<synchronous>, transform_indices = @transform_8, window_bounds = array<i64: 2, 1, 32>}, {pipeline_mode = #tpu.pipeline_mode<synchronous>, transform_indices = @transform_9, window_bounds = array<i64: 2, 1, 32>}, {pipeline_mode = #tpu.pipeline_mode<synchronous>, transform_indices = @transform_10, window_bounds = array<i64: 2, 1, 32>}, {pipeline_mode = #tpu.pipeline_mode<synchronous>, transform_indices = @transform_11, window_bounds = array<i64: 2, 32, 64>}, {pipeline_mode = #tpu.pipeline_mode<synchronous>, transform_indices = @transform_12, window_bounds = array<i64: 2, 1, 64>}, {pipeline_mode = #tpu.pipeline_mode<synchronous>, transform_indices = @transform_13, window_bounds = array<i64: 2, 64, 32>}, {pipeline_mode = #tpu.pipeline_mode<synchronous>, transform_indices = @transform_14, window_bounds = array<i64: 2, 1, 32>}, {pipeline_mode = #tpu.pipeline_mode<synchronous>, transform_indices = @transform_15, window_bounds = array<i64: 2, 1, 32>}, {pipeline_mode = #tpu.pipeline_mode<synchronous>, transform_indices = @transform_16, window_bounds = array<i64: 2, 1, 32>}, {pipeline_mode = #tpu.pipeline_mode<synchronous>, transform_indices = @transform_17, window_bounds = array<i64: 32, 32>}, {pipeline_mode = #tpu.pipeline_mode<synchronous>, transform_indices = @transform_18, window_bounds = array<i64: 1, 32>}, {transform_indices = @transform_19, window_bounds = array<i64: 3, 1, 8, 32>}, {transform_indices = @transform_20, window_bounds = array<i64: 1, 1, 32>}]} {
    %c0 = arith.constant 0 : index
    %c0_0 = arith.constant 0 : index
    %c0_1 = arith.constant 0 : index
    %0 = vector.load %arg1[%c0, %c0_0, %c0_1] : memref<1x8x32xf32, #tpu.memory_space<vmem>>, vector<1x8x32xf32>
    %1 = vector.shape_cast %0 : vector<1x8x32xf32> to vector<8x32xf32>
    %c0_2 = arith.constant 0 : index
    %c0_3 = arith.constant 0 : index
    %2 = vector.load %arg2[%c0_2, %c0_3] : memref<8x32xf32, #tpu.memory_space<vmem>>, vector<8x32xf32>
    %3 = arith.addf %1, %2 : vector<8x32xf32>
    %c0_4 = arith.constant 0 : index
    %c0_5 = arith.constant 0 : index
    %4 = vector.load %arg4[%c0_4, %c0_5] : memref<1x32xf32, #tpu.memory_space<vmem>>, vector<1x32xf32>
    %c0_6 = arith.constant 0 : index
    %c0_7 = arith.constant 0 : index
    %5 = vector.load %arg5[%c0_6, %c0_7] : memref<1x32xf32, #tpu.memory_space<vmem>>, vector<1x32xf32>
    %cst = arith.constant dense<0.000000e+00> : vector<8xf32>
    %6 = vector.multi_reduction <add>, %3, %cst [1] : vector<8x32xf32> to vector<8xf32>
    %7 = vector.shape_cast %6 : vector<8xf32> to vector<8x1xf32>
    %cst_8 = arith.constant 3.200000e+01 : f32
    %8 = vector.broadcast %cst_8 : f32 to vector<8x1xf32>
    %9 = arith.divf %7, %8 : vector<8x1xf32>
    %10 = vector.broadcast %9 : vector<8x1xf32> to vector<8x32xf32>
    %11 = arith.subf %3, %10 : vector<8x32xf32>
    %12 = arith.mulf %11, %11 : vector<8x32xf32>
    %cst_9 = arith.constant dense<0.000000e+00> : vector<8xf32>
    %13 = vector.multi_reduction <add>, %12, %cst_9 [1] : vector<8x32xf32> to vector<8xf32>
    %14 = vector.shape_cast %13 : vector<8xf32> to vector<8x1xf32>
    %cst_10 = arith.constant 3.200000e+01 : f32
    %15 = vector.broadcast %cst_10 : f32 to vector<8x1xf32>
    %16 = arith.divf %14, %15 : vector<8x1xf32>
    %17 = vector.broadcast %9 : vector<8x1xf32> to vector<8x32xf32>
    %18 = arith.subf %3, %17 : vector<8x32xf32>
    %cst_11 = arith.constant 9.99999996E-13 : f32
    %19 = vector.broadcast %cst_11 : f32 to vector<8x1xf32>
    %20 = arith.addf %16, %19 : vector<8x1xf32>
    %21 = math.rsqrt %20 : vector<8x1xf32>
    %22 = vector.broadcast %21 : vector<8x1xf32> to vector<8x32xf32>
    %23 = arith.mulf %18, %22 : vector<8x32xf32>
    %24 = vector.broadcast %4 : vector<1x32xf32> to vector<8x32xf32>
    %25 = arith.mulf %23, %24 : vector<8x32xf32>
    %26 = vector.broadcast %5 : vector<1x32xf32> to vector<8x32xf32>
    %27 = arith.addf %25, %26 : vector<8x32xf32>
    %c0_12 = arith.constant 0 : index
    %c0_13 = arith.constant 0 : index
    %c0_14 = arith.constant 0 : index
    %c0_15 = arith.constant 0 : index
    %28 = vector.load %arg20[%c0_12, %c0_13, %c0_14, %c0_15] : memref<3x1x8x32xf32, #tpu.memory_space<vmem>>, vector<1x1x8x32xf32>
    %29 = vector.shape_cast %28 : vector<1x1x8x32xf32> to vector<8x32xf32>
    %30 = vector.shape_cast %27 : vector<8x32xf32> to vector<1x1x8x32xf32>
    tpu.vector_store %arg20[%c0_12, %c0_13, %c0_14, %c0_15], %30 {strides = array<i32>} : memref<3x1x8x32xf32, #tpu.memory_space<vmem>>, vector<1x1x8x32xf32>,
    %c0_16 = arith.constant 0 : index
    %c0_17 = arith.constant 0 : index
    %c0_18 = arith.constant 0 : index
    %31 = vector.load %arg3[%c0_16, %c0_17, %c0_18] : memref<1x1x8xf32, #tpu.memory_space<vmem>>, vector<1x1x8xf32>
    %32 = vector.shape_cast %31 : vector<1x1x8xf32> to vector<1x8xf32>
    %c0_19 = arith.constant 0 : index
    %c0_20 = arith.constant 0 : index
    %c0_21 = arith.constant 0 : index
    %33 = vector.load %arg6[%c0_19, %c0_20, %c0_21] : memref<2x32x96xf32, #tpu.memory_space<vmem>>, vector<1x32x96xf32>
    %34 = vector.shape_cast %33 : vector<1x32x96xf32> to vector<32x96xf32>
    %cst_22 = arith.constant dense<0.000000e+00> : vector<8x96xf32>
    %35 = tpu.matmul %27, %34, %cst_22 {dimension_numbers = #tpu.dot_dimension_numbers<[1], [0], [0], [1], [0, 0, 1, 1], [], []>} : vector<8x32xf32>, vector<32x96xf32>, vector<8x96xf32> -> vector<8x96xf32>
    %c0_23 = arith.constant 0 : index
    %c0_24 = arith.constant 0 : index
    %c0_25 = arith.constant 0 : index
    %36 = vector.load %arg7[%c0_23, %c0_24, %c0_25] : memref<2x1x96xf32, #tpu.memory_space<vmem>>, vector<1x1x96xf32>
    %37 = vector.shape_cast %36 : vector<1x1x96xf32> to vector<1x96xf32>
    %38 = vector.broadcast %37 : vector<1x96xf32> to vector<8x96xf32>
    %39 = arith.addf %35, %38 : vector<8x96xf32>
    %40 = vector.extract_strided_slice %39 {offsets = [0, 0], sizes = [8, 32], strides = [1, 1]} : vector<8x96xf32> to vector<8x32xf32>
    %41 = vector.extract_strided_slice %39 {offsets = [0, 32], sizes = [8, 32], strides = [1, 1]} : vector<8x96xf32> to vector<8x32xf32>
    %42 = vector.extract_strided_slice %39 {offsets = [0, 64], sizes = [8, 32], strides = [1, 1]} : vector<8x96xf32> to vector<8x32xf32>
    %43 = vector.extract_strided_slice %40 {offsets = [0, 0], sizes = [8, 8], strides = [1, 1]} : vector<8x32xf32> to vector<8x8xf32>
    %44 = vector.extract_strided_slice %41 {offsets = [0, 0], sizes = [8, 8], strides = [1, 1]} : vector<8x32xf32> to vector<8x8xf32>
    %45 = vector.extract_strided_slice %42 {offsets = [0, 0], sizes = [8, 8], strides = [1, 1]} : vector<8x32xf32> to vector<8x8xf32>
    %46 = tpu.transpose %44, [1, 0] : vector<8x8xf32> -> vector<8x8xf32>
    %cst_26 = arith.constant dense<0.000000e+00> : vector<8x8xf32>
    %47 = tpu.matmul %43, %46, %cst_26 {dimension_numbers = #tpu.dot_dimension_numbers<[1], [0], [0], [1], [0, 0, 1, 1], [], []>} : vector<8x8xf32>, vector<8x8xf32>, vector<8x8xf32> -> vector<8x8xf32>
    %cst_27 = arith.constant 0.353553385 : f32
    %48 = vector.broadcast %cst_27 : f32 to vector<8x8xf32>
    %49 = arith.mulf %47, %48 : vector<8x8xf32>
    %50 = vector.broadcast %32 : vector<1x8xf32> to vector<8x8xf32>
    %51 = arith.addf %49, %50 : vector<8x8xf32>
    %cst_28 = arith.constant dense<0xFF800000> : vector<8xf32>
    %52 = vector.multi_reduction <maximumf>, %51, %cst_28 [1] : vector<8x8xf32> to vector<8xf32>
    %53 = vector.shape_cast %52 : vector<8xf32> to vector<8x1xf32>
    %54 = vector.broadcast %53 : vector<8x1xf32> to vector<8x8xf32>
    %55 = arith.subf %51, %54 : vector<8x8xf32>
    %56 = math.exp %55 : vector<8x8xf32>
    %cst_29 = arith.constant dense<0.000000e+00> : vector<8xf32>
    %57 = vector.multi_reduction <add>, %56, %cst_29 [1] : vector<8x8xf32> to vector<8xf32>
    %58 = vector.shape_cast %57 : vector<8xf32> to vector<8x1xf32>
    %59 = tpu.reciprocal %58 {approx = true} : vector<8x1xf32> -> vector<8x1xf32>
    %60 = vector.broadcast %59 : vector<8x1xf32> to vector<8x8xf32>
    %61 = arith.mulf %56, %60 : vector<8x8xf32>
    %cst_30 = arith.constant dense<0.000000e+00> : vector<8x8xf32>
    %62 = tpu.matmul %61, %45, %cst_30 {dimension_numbers = #tpu.dot_dimension_numbers<[1], [0], [0], [1], [0, 0, 1, 1], [], []>} : vector<8x8xf32>, vector<8x8xf32>, vector<8x8xf32> -> vector<8x8xf32>
    %63 = vector.extract_strided_slice %40 {offsets = [0, 8], sizes = [8, 8], strides = [1, 1]} : vector<8x32xf32> to vector<8x8xf32>
    %64 = vector.extract_strided_slice %41 {offsets = [0, 8], sizes = [8, 8], strides = [1, 1]} : vector<8x32xf32> to vector<8x8xf32>
    %65 = vector.extract_strided_slice %42 {offsets = [0, 8], sizes = [8, 8], strides = [1, 1]} : vector<8x32xf32> to vector<8x8xf32>
    %66 = tpu.transpose %64, [1, 0] : vector<8x8xf32> -> vector<8x8xf32>
    %cst_31 = arith.constant dense<0.000000e+00> : vector<8x8xf32>
    %67 = tpu.matmul %63, %66, %cst_31 {dimension_numbers = #tpu.dot_dimension_numbers<[1], [0], [0], [1], [0, 0, 1, 1], [], []>} : vector<8x8xf32>, vector<8x8xf32>, vector<8x8xf32> -> vector<8x8xf32>
    %cst_32 = arith.constant 0.353553385 : f32
    %68 = vector.broadcast %cst_32 : f32 to vector<8x8xf32>
    %69 = arith.mulf %67, %68 : vector<8x8xf32>
    %70 = vector.broadcast %32 : vector<1x8xf32> to vector<8x8xf32>
    %71 = arith.addf %69, %70 : vector<8x8xf32>
    %cst_33 = arith.constant dense<0xFF800000> : vector<8xf32>
    %72 = vector.multi_reduction <maximumf>, %71, %cst_33 [1] : vector<8x8xf32> to vector<8xf32>
    %73 = vector.shape_cast %72 : vector<8xf32> to vector<8x1xf32>
    %74 = vector.broadcast %73 : vector<8x1xf32> to vector<8x8xf32>
    %75 = arith.subf %71, %74 : vector<8x8xf32>
    %76 = math.exp %75 : vector<8x8xf32>
    %cst_34 = arith.constant dense<0.000000e+00> : vector<8xf32>
    %77 = vector.multi_reduction <add>, %76, %cst_34 [1] : vector<8x8xf32> to vector<8xf32>
    %78 = vector.shape_cast %77 : vector<8xf32> to vector<8x1xf32>
    %79 = tpu.reciprocal %78 {approx = true} : vector<8x1xf32> -> vector<8x1xf32>
    %80 = vector.broadcast %79 : vector<8x1xf32> to vector<8x8xf32>
    %81 = arith.mulf %76, %80 : vector<8x8xf32>
    %cst_35 = arith.constant dense<0.000000e+00> : vector<8x8xf32>
    %82 = tpu.matmul %81, %65, %cst_35 {dimension_numbers = #tpu.dot_dimension_numbers<[1], [0], [0], [1], [0, 0, 1, 1], [], []>} : vector<8x8xf32>, vector<8x8xf32>, vector<8x8xf32> -> vector<8x8xf32>
    %83 = vector.extract_strided_slice %40 {offsets = [0, 16], sizes = [8, 8], strides = [1, 1]} : vector<8x32xf32> to vector<8x8xf32>
    %84 = vector.extract_strided_slice %41 {offsets = [0, 16], sizes = [8, 8], strides = [1, 1]} : vector<8x32xf32> to vector<8x8xf32>
    %85 = vector.extract_strided_slice %42 {offsets = [0, 16], sizes = [8, 8], strides = [1, 1]} : vector<8x32xf32> to vector<8x8xf32>
    %86 = tpu.transpose %84, [1, 0] : vector<8x8xf32> -> vector<8x8xf32>
    %cst_36 = arith.constant dense<0.000000e+00> : vector<8x8xf32>
    %87 = tpu.matmul %83, %86, %cst_36 {dimension_numbers = #tpu.dot_dimension_numbers<[1], [0], [0], [1], [0, 0, 1, 1], [], []>} : vector<8x8xf32>, vector<8x8xf32>, vector<8x8xf32> -> vector<8x8xf32>
    %cst_37 = arith.constant 0.353553385 : f32
    %88 = vector.broadcast %cst_37 : f32 to vector<8x8xf32>
    %89 = arith.mulf %87, %88 : vector<8x8xf32>
    %90 = vector.broadcast %32 : vector<1x8xf32> to vector<8x8xf32>
    %91 = arith.addf %89, %90 : vector<8x8xf32>
    %cst_38 = arith.constant dense<0xFF800000> : vector<8xf32>
    %92 = vector.multi_reduction <maximumf>, %91, %cst_38 [1] : vector<8x8xf32> to vector<8xf32>
    %93 = vector.shape_cast %92 : vector<8xf32> to vector<8x1xf32>
    %94 = vector.broadcast %93 : vector<8x1xf32> to vector<8x8xf32>
    %95 = arith.subf %91, %94 : vector<8x8xf32>
    %96 = math.exp %95 : vector<8x8xf32>
    %cst_39 = arith.constant dense<0.000000e+00> : vector<8xf32>
    %97 = vector.multi_reduction <add>, %96, %cst_39 [1] : vector<8x8xf32> to vector<8xf32>
    %98 = vector.shape_cast %97 : vector<8xf32> to vector<8x1xf32>
    %99 = tpu.reciprocal %98 {approx = true} : vector<8x1xf32> -> vector<8x1xf32>
    %100 = vector.broadcast %99 : vector<8x1xf32> to vector<8x8xf32>
    %101 = arith.mulf %96, %100 : vector<8x8xf32>
    %cst_40 = arith.constant dense<0.000000e+00> : vector<8x8xf32>
    %102 = tpu.matmul %101, %85, %cst_40 {dimension_numbers = #tpu.dot_dimension_numbers<[1], [0], [0], [1], [0, 0, 1, 1], [], []>} : vector<8x8xf32>, vector<8x8xf32>, vector<8x8xf32> -> vector<8x8xf32>
    %103 = vector.extract_strided_slice %40 {offsets = [0, 24], sizes = [8, 8], strides = [1, 1]} : vector<8x32xf32> to vector<8x8xf32>
    %104 = vector.extract_strided_slice %41 {offsets = [0, 24], sizes = [8, 8], strides = [1, 1]} : vector<8x32xf32> to vector<8x8xf32>
    %105 = vector.extract_strided_slice %42 {offsets = [0, 24], sizes = [8, 8], strides = [1, 1]} : vector<8x32xf32> to vector<8x8xf32>
    %106 = tpu.transpose %104, [1, 0] : vector<8x8xf32> -> vector<8x8xf32>
    %cst_41 = arith.constant dense<0.000000e+00> : vector<8x8xf32>
    %107 = tpu.matmul %103, %106, %cst_41 {dimension_numbers = #tpu.dot_dimension_numbers<[1], [0], [0], [1], [0, 0, 1, 1], [], []>} : vector<8x8xf32>, vector<8x8xf32>, vector<8x8xf32> -> vector<8x8xf32>
    %cst_42 = arith.constant 0.353553385 : f32
    %108 = vector.broadcast %cst_42 : f32 to vector<8x8xf32>
    %109 = arith.mulf %107, %108 : vector<8x8xf32>
    %110 = vector.broadcast %32 : vector<1x8xf32> to vector<8x8xf32>
    %111 = arith.addf %109, %110 : vector<8x8xf32>
    %cst_43 = arith.constant dense<0xFF800000> : vector<8xf32>
    %112 = vector.multi_reduction <maximumf>, %111, %cst_43 [1] : vector<8x8xf32> to vector<8xf32>
    %113 = vector.shape_cast %112 : vector<8xf32> to vector<8x1xf32>
    %114 = vector.broadcast %113 : vector<8x1xf32> to vector<8x8xf32>
    %115 = arith.subf %111, %114 : vector<8x8xf32>
    %116 = math.exp %115 : vector<8x8xf32>
    %cst_44 = arith.constant dense<0.000000e+00> : vector<8xf32>
    %117 = vector.multi_reduction <add>, %116, %cst_44 [1] : vector<8x8xf32> to vector<8xf32>
    %118 = vector.shape_cast %117 : vector<8xf32> to vector<8x1xf32>
    %119 = tpu.reciprocal %118 {approx = true} : vector<8x1xf32> -> vector<8x1xf32>
    %120 = vector.broadcast %119 : vector<8x1xf32> to vector<8x8xf32>
    %121 = arith.mulf %116, %120 : vector<8x8xf32>
    %cst_45 = arith.constant dense<0.000000e+00> : vector<8x8xf32>
    %122 = tpu.matmul %121, %105, %cst_45 {dimension_numbers = #tpu.dot_dimension_numbers<[1], [0], [0], [1], [0, 0, 1, 1], [], []>} : vector<8x8xf32>, vector<8x8xf32>, vector<8x8xf32> -> vector<8x8xf32>
    %123 = tpu.concatenate %62, %82, %102, %122 in 1 : vector<8x8xf32>, vector<8x8xf32>, vector<8x8xf32>, vector<8x8xf32> -> vector<8x32xf32>
    %c0_46 = arith.constant 0 : index
    %c0_47 = arith.constant 0 : index
    %c0_48 = arith.constant 0 : index
    %124 = vector.load %arg8[%c0_46, %c0_47, %c0_48] : memref<2x32x32xf32, #tpu.memory_space<vmem>>, vector<1x32x32xf32>
    %125 = vector.shape_cast %124 : vector<1x32x32xf32> to vector<32x32xf32>
    %cst_49 = arith.constant dense<0.000000e+00> : vector<8x32xf32>
    %126 = tpu.matmul %123, %125, %cst_49 {dimension_numbers = #tpu.dot_dimension_numbers<[1], [0], [0], [1], [0, 0, 1, 1], [], []>} : vector<8x32xf32>, vector<32x32xf32>, vector<8x32xf32> -> vector<8x32xf32>
    %c0_50 = arith.constant 0 : index
    %c0_51 = arith.constant 0 : index
    %c0_52 = arith.constant 0 : index
    %127 = vector.load %arg9[%c0_50, %c0_51, %c0_52] : memref<2x1x32xf32, #tpu.memory_space<vmem>>, vector<1x1x32xf32>
    %128 = vector.shape_cast %127 : vector<1x1x32xf32> to vector<1x32xf32>
    %129 = vector.broadcast %128 : vector<1x32xf32> to vector<8x32xf32>
    %130 = arith.addf %126, %129 : vector<8x32xf32>
    %131 = arith.addf %130, %27 : vector<8x32xf32>
    %c0_53 = arith.constant 0 : index
    %c0_54 = arith.constant 0 : index
    %c0_55 = arith.constant 0 : index
    %132 = vector.load %arg10[%c0_53, %c0_54, %c0_55] : memref<2x1x32xf32, #tpu.memory_space<vmem>>, vector<1x1x32xf32>
    %133 = vector.shape_cast %132 : vector<1x1x32xf32> to vector<1x32xf32>
    %c0_56 = arith.constant 0 : index
    %c0_57 = arith.constant 0 : index
    %c0_58 = arith.constant 0 : index
    %134 = vector.load %arg11[%c0_56, %c0_57, %c0_58] : memref<2x1x32xf32, #tpu.memory_space<vmem>>, vector<1x1x32xf32>
    %135 = vector.shape_cast %134 : vector<1x1x32xf32> to vector<1x32xf32>
    %cst_59 = arith.constant dense<0.000000e+00> : vector<8xf32>
    %136 = vector.multi_reduction <add>, %131, %cst_59 [1] : vector<8x32xf32> to vector<8xf32>
    %137 = vector.shape_cast %136 : vector<8xf32> to vector<8x1xf32>
    %cst_60 = arith.constant 3.200000e+01 : f32
    %138 = vector.broadcast %cst_60 : f32 to vector<8x1xf32>
    %139 = arith.divf %137, %138 : vector<8x1xf32>
    %140 = vector.broadcast %139 : vector<8x1xf32> to vector<8x32xf32>
    %141 = arith.subf %131, %140 : vector<8x32xf32>
    %142 = arith.mulf %141, %141 : vector<8x32xf32>
    %cst_61 = arith.constant dense<0.000000e+00> : vector<8xf32>
    %143 = vector.multi_reduction <add>, %142, %cst_61 [1] : vector<8x32xf32> to vector<8xf32>
    %144 = vector.shape_cast %143 : vector<8xf32> to vector<8x1xf32>
    %cst_62 = arith.constant 3.200000e+01 : f32
    %145 = vector.broadcast %cst_62 : f32 to vector<8x1xf32>
    %146 = arith.divf %144, %145 : vector<8x1xf32>
    %147 = vector.broadcast %139 : vector<8x1xf32> to vector<8x32xf32>
    %148 = arith.subf %131, %147 : vector<8x32xf32>
    %cst_63 = arith.constant 9.99999996E-13 : f32
    %149 = vector.broadcast %cst_63 : f32 to vector<8x1xf32>
    %150 = arith.addf %146, %149 : vector<8x1xf32>
    %151 = math.rsqrt %150 : vector<8x1xf32>
    %152 = vector.broadcast %151 : vector<8x1xf32> to vector<8x32xf32>
    %153 = arith.mulf %148, %152 : vector<8x32xf32>
    %154 = vector.broadcast %133 : vector<1x32xf32> to vector<8x32xf32>
    %155 = arith.mulf %153, %154 : vector<8x32xf32>
    %156 = vector.broadcast %135 : vector<1x32xf32> to vector<8x32xf32>
    %157 = arith.addf %155, %156 : vector<8x32xf32>
    %c0_64 = arith.constant 0 : index
    %c0_65 = arith.constant 0 : index
    %c0_66 = arith.constant 0 : index
    %158 = vector.load %arg12[%c0_64, %c0_65, %c0_66] : memref<2x32x64xf32, #tpu.memory_space<vmem>>, vector<1x32x64xf32>
    %159 = vector.shape_cast %158 : vector<1x32x64xf32> to vector<32x64xf32>
    %cst_67 = arith.constant dense<0.000000e+00> : vector<8x64xf32>
    %160 = tpu.matmul %157, %159, %cst_67 {dimension_numbers = #tpu.dot_dimension_numbers<[1], [0], [0], [1], [0, 0, 1, 1], [], []>} : vector<8x32xf32>, vector<32x64xf32>, vector<8x64xf32> -> vector<8x64xf32>
    %c0_68 = arith.constant 0 : index
    %c0_69 = arith.constant 0 : index
    %c0_70 = arith.constant 0 : index
    %161 = vector.load %arg13[%c0_68, %c0_69, %c0_70] : memref<2x1x64xf32, #tpu.memory_space<vmem>>, vector<1x1x64xf32>
    %162 = vector.shape_cast %161 : vector<1x1x64xf32> to vector<1x64xf32>
    %163 = vector.broadcast %162 : vector<1x64xf32> to vector<8x64xf32>
    %164 = arith.addf %160, %163 : vector<8x64xf32>
    %165 = arith.mulf %164, %164 : vector<8x64xf32>
    %166 = arith.mulf %164, %165 : vector<8x64xf32>
    %cst_71 = arith.constant 4.471500e-02 : f32
    %167 = vector.broadcast %cst_71 : f32 to vector<8x64xf32>
    %168 = arith.mulf %167, %166 : vector<8x64xf32>
    %169 = arith.addf %164, %168 : vector<8x64xf32>
    %cst_72 = arith.constant 0.797884583 : f32
    %170 = vector.broadcast %cst_72 : f32 to vector<8x64xf32>
    %171 = arith.mulf %170, %169 : vector<8x64xf32>
    %172 = math.tanh %171 : vector<8x64xf32>
    %cst_73 = arith.constant 1.000000e+00 : f32
    %173 = vector.broadcast %cst_73 : f32 to vector<8x64xf32>
    %174 = arith.addf %173, %172 : vector<8x64xf32>
    %cst_74 = arith.constant 5.000000e-01 : f32
    %175 = vector.broadcast %cst_74 : f32 to vector<8x64xf32>
    %176 = arith.mulf %175, %174 : vector<8x64xf32>
    %177 = arith.mulf %164, %176 : vector<8x64xf32>
    %c0_75 = arith.constant 0 : index
    %c0_76 = arith.constant 0 : index
    %c0_77 = arith.constant 0 : index
    %178 = vector.load %arg14[%c0_75, %c0_76, %c0_77] : memref<2x64x32xf32, #tpu.memory_space<vmem>>, vector<1x64x32xf32>
    %179 = vector.shape_cast %178 : vector<1x64x32xf32> to vector<64x32xf32>
    %cst_78 = arith.constant dense<0.000000e+00> : vector<8x32xf32>
    %180 = tpu.matmul %177, %179, %cst_78 {dimension_numbers = #tpu.dot_dimension_numbers<[1], [0], [0], [1], [0, 0, 1, 1], [], []>} : vector<8x64xf32>, vector<64x32xf32>, vector<8x32xf32> -> vector<8x32xf32>
    %c0_79 = arith.constant 0 : index
    %c0_80 = arith.constant 0 : index
    %c0_81 = arith.constant 0 : index
    %181 = vector.load %arg15[%c0_79, %c0_80, %c0_81] : memref<2x1x32xf32, #tpu.memory_space<vmem>>, vector<1x1x32xf32>
    %182 = vector.shape_cast %181 : vector<1x1x32xf32> to vector<1x32xf32>
    %183 = vector.broadcast %182 : vector<1x32xf32> to vector<8x32xf32>
    %184 = arith.addf %180, %183 : vector<8x32xf32>
    %185 = arith.addf %184, %157 : vector<8x32xf32>
    %c0_82 = arith.constant 0 : index
    %c0_83 = arith.constant 0 : index
    %c0_84 = arith.constant 0 : index
    %186 = vector.load %arg16[%c0_82, %c0_83, %c0_84] : memref<2x1x32xf32, #tpu.memory_space<vmem>>, vector<1x1x32xf32>
    %187 = vector.shape_cast %186 : vector<1x1x32xf32> to vector<1x32xf32>
    %c0_85 = arith.constant 0 : index
    %c0_86 = arith.constant 0 : index
    %c0_87 = arith.constant 0 : index
    %188 = vector.load %arg17[%c0_85, %c0_86, %c0_87] : memref<2x1x32xf32, #tpu.memory_space<vmem>>, vector<1x1x32xf32>
    %189 = vector.shape_cast %188 : vector<1x1x32xf32> to vector<1x32xf32>
    %cst_88 = arith.constant dense<0.000000e+00> : vector<8xf32>
    %190 = vector.multi_reduction <add>, %185, %cst_88 [1] : vector<8x32xf32> to vector<8xf32>
    %191 = vector.shape_cast %190 : vector<8xf32> to vector<8x1xf32>
    %cst_89 = arith.constant 3.200000e+01 : f32
    %192 = vector.broadcast %cst_89 : f32 to vector<8x1xf32>
    %193 = arith.divf %191, %192 : vector<8x1xf32>
    %194 = vector.broadcast %193 : vector<8x1xf32> to vector<8x32xf32>
    %195 = arith.subf %185, %194 : vector<8x32xf32>
    %196 = arith.mulf %195, %195 : vector<8x32xf32>
    %cst_90 = arith.constant dense<0.000000e+00> : vector<8xf32>
    %197 = vector.multi_reduction <add>, %196, %cst_90 [1] : vector<8x32xf32> to vector<8xf32>
    %198 = vector.shape_cast %197 : vector<8xf32> to vector<8x1xf32>
    %cst_91 = arith.constant 3.200000e+01 : f32
    %199 = vector.broadcast %cst_91 : f32 to vector<8x1xf32>
    %200 = arith.divf %198, %199 : vector<8x1xf32>
    %201 = vector.broadcast %193 : vector<8x1xf32> to vector<8x32xf32>
    %202 = arith.subf %185, %201 : vector<8x32xf32>
    %cst_92 = arith.constant 9.99999996E-13 : f32
    %203 = vector.broadcast %cst_92 : f32 to vector<8x1xf32>
    %204 = arith.addf %200, %203 : vector<8x1xf32>
    %205 = math.rsqrt %204 : vector<8x1xf32>
    %206 = vector.broadcast %205 : vector<8x1xf32> to vector<8x32xf32>
    %207 = arith.mulf %202, %206 : vector<8x32xf32>
    %208 = vector.broadcast %187 : vector<1x32xf32> to vector<8x32xf32>
    %209 = arith.mulf %207, %208 : vector<8x32xf32>
    %210 = vector.broadcast %189 : vector<1x32xf32> to vector<8x32xf32>
    %211 = arith.addf %209, %210 : vector<8x32xf32>
    %c1 = arith.constant 1 : index
    %c0_93 = arith.constant 0 : index
    %c0_94 = arith.constant 0 : index
    %c0_95 = arith.constant 0 : index
    %212 = vector.load %arg20[%c1, %c0_93, %c0_94, %c0_95] : memref<3x1x8x32xf32, #tpu.memory_space<vmem>>, vector<1x1x8x32xf32>
    %213 = vector.shape_cast %212 : vector<1x1x8x32xf32> to vector<8x32xf32>
    %214 = vector.shape_cast %211 : vector<8x32xf32> to vector<1x1x8x32xf32>
    tpu.vector_store %arg20[%c1, %c0_93, %c0_94, %c0_95], %214 {strides = array<i32>} : memref<3x1x8x32xf32, #tpu.memory_space<vmem>>, vector<1x1x8x32xf32>,
    %c1_96 = arith.constant 1 : index
    %c0_97 = arith.constant 0 : index
    %c0_98 = arith.constant 0 : index
    %215 = vector.load %arg6[%c1_96, %c0_97, %c0_98] : memref<2x32x96xf32, #tpu.memory_space<vmem>>, vector<1x32x96xf32>
    %216 = vector.shape_cast %215 : vector<1x32x96xf32> to vector<32x96xf32>
    %cst_99 = arith.constant dense<0.000000e+00> : vector<8x96xf32>
    %217 = tpu.matmul %211, %216, %cst_99 {dimension_numbers = #tpu.dot_dimension_numbers<[1], [0], [0], [1], [0, 0, 1, 1], [], []>} : vector<8x32xf32>, vector<32x96xf32>, vector<8x96xf32> -> vector<8x96xf32>
    %c1_100 = arith.constant 1 : index
    %c0_101 = arith.constant 0 : index
    %c0_102 = arith.constant 0 : index
    %218 = vector.load %arg7[%c1_100, %c0_101, %c0_102] : memref<2x1x96xf32, #tpu.memory_space<vmem>>, vector<1x1x96xf32>
    %219 = vector.shape_cast %218 : vector<1x1x96xf32> to vector<1x96xf32>
    %220 = vector.broadcast %219 : vector<1x96xf32> to vector<8x96xf32>
    %221 = arith.addf %217, %220 : vector<8x96xf32>
    %222 = vector.extract_strided_slice %221 {offsets = [0, 0], sizes = [8, 32], strides = [1, 1]} : vector<8x96xf32> to vector<8x32xf32>
    %223 = vector.extract_strided_slice %221 {offsets = [0, 32], sizes = [8, 32], strides = [1, 1]} : vector<8x96xf32> to vector<8x32xf32>
    %224 = vector.extract_strided_slice %221 {offsets = [0, 64], sizes = [8, 32], strides = [1, 1]} : vector<8x96xf32> to vector<8x32xf32>
    %225 = vector.extract_strided_slice %222 {offsets = [0, 0], sizes = [8, 8], strides = [1, 1]} : vector<8x32xf32> to vector<8x8xf32>
    %226 = vector.extract_strided_slice %223 {offsets = [0, 0], sizes = [8, 8], strides = [1, 1]} : vector<8x32xf32> to vector<8x8xf32>
    %227 = vector.extract_strided_slice %224 {offsets = [0, 0], sizes = [8, 8], strides = [1, 1]} : vector<8x32xf32> to vector<8x8xf32>
    %228 = tpu.transpose %226, [1, 0] : vector<8x8xf32> -> vector<8x8xf32>
    %cst_103 = arith.constant dense<0.000000e+00> : vector<8x8xf32>
    %229 = tpu.matmul %225, %228, %cst_103 {dimension_numbers = #tpu.dot_dimension_numbers<[1], [0], [0], [1], [0, 0, 1, 1], [], []>} : vector<8x8xf32>, vector<8x8xf32>, vector<8x8xf32> -> vector<8x8xf32>
    %cst_104 = arith.constant 0.353553385 : f32
    %230 = vector.broadcast %cst_104 : f32 to vector<8x8xf32>
    %231 = arith.mulf %229, %230 : vector<8x8xf32>
    %232 = vector.broadcast %32 : vector<1x8xf32> to vector<8x8xf32>
    %233 = arith.addf %231, %232 : vector<8x8xf32>
    %cst_105 = arith.constant dense<0xFF800000> : vector<8xf32>
    %234 = vector.multi_reduction <maximumf>, %233, %cst_105 [1] : vector<8x8xf32> to vector<8xf32>
    %235 = vector.shape_cast %234 : vector<8xf32> to vector<8x1xf32>
    %236 = vector.broadcast %235 : vector<8x1xf32> to vector<8x8xf32>
    %237 = arith.subf %233, %236 : vector<8x8xf32>
    %238 = math.exp %237 : vector<8x8xf32>
    %cst_106 = arith.constant dense<0.000000e+00> : vector<8xf32>
    %239 = vector.multi_reduction <add>, %238, %cst_106 [1] : vector<8x8xf32> to vector<8xf32>
    %240 = vector.shape_cast %239 : vector<8xf32> to vector<8x1xf32>
    %241 = tpu.reciprocal %240 {approx = true} : vector<8x1xf32> -> vector<8x1xf32>
    %242 = vector.broadcast %241 : vector<8x1xf32> to vector<8x8xf32>
    %243 = arith.mulf %238, %242 : vector<8x8xf32>
    %cst_107 = arith.constant dense<0.000000e+00> : vector<8x8xf32>
    %244 = tpu.matmul %243, %227, %cst_107 {dimension_numbers = #tpu.dot_dimension_numbers<[1], [0], [0], [1], [0, 0, 1, 1], [], []>} : vector<8x8xf32>, vector<8x8xf32>, vector<8x8xf32> -> vector<8x8xf32>
    %245 = vector.extract_strided_slice %222 {offsets = [0, 8], sizes = [8, 8], strides = [1, 1]} : vector<8x32xf32> to vector<8x8xf32>
    %246 = vector.extract_strided_slice %223 {offsets = [0, 8], sizes = [8, 8], strides = [1, 1]} : vector<8x32xf32> to vector<8x8xf32>
    %247 = vector.extract_strided_slice %224 {offsets = [0, 8], sizes = [8, 8], strides = [1, 1]} : vector<8x32xf32> to vector<8x8xf32>
    %248 = tpu.transpose %246, [1, 0] : vector<8x8xf32> -> vector<8x8xf32>
    %cst_108 = arith.constant dense<0.000000e+00> : vector<8x8xf32>
    %249 = tpu.matmul %245, %248, %cst_108 {dimension_numbers = #tpu.dot_dimension_numbers<[1], [0], [0], [1], [0, 0, 1, 1], [], []>} : vector<8x8xf32>, vector<8x8xf32>, vector<8x8xf32> -> vector<8x8xf32>
    %cst_109 = arith.constant 0.353553385 : f32
    %250 = vector.broadcast %cst_109 : f32 to vector<8x8xf32>
    %251 = arith.mulf %249, %250 : vector<8x8xf32>
    %252 = vector.broadcast %32 : vector<1x8xf32> to vector<8x8xf32>
    %253 = arith.addf %251, %252 : vector<8x8xf32>
    %cst_110 = arith.constant dense<0xFF800000> : vector<8xf32>
    %254 = vector.multi_reduction <maximumf>, %253, %cst_110 [1] : vector<8x8xf32> to vector<8xf32>
    %255 = vector.shape_cast %254 : vector<8xf32> to vector<8x1xf32>
    %256 = vector.broadcast %255 : vector<8x1xf32> to vector<8x8xf32>
    %257 = arith.subf %253, %256 : vector<8x8xf32>
    %258 = math.exp %257 : vector<8x8xf32>
    %cst_111 = arith.constant dense<0.000000e+00> : vector<8xf32>
    %259 = vector.multi_reduction <add>, %258, %cst_111 [1] : vector<8x8xf32> to vector<8xf32>
    %260 = vector.shape_cast %259 : vector<8xf32> to vector<8x1xf32>
    %261 = tpu.reciprocal %260 {approx = true} : vector<8x1xf32> -> vector<8x1xf32>
    %262 = vector.broadcast %261 : vector<8x1xf32> to vector<8x8xf32>
    %263 = arith.mulf %258, %262 : vector<8x8xf32>
    %cst_112 = arith.constant dense<0.000000e+00> : vector<8x8xf32>
    %264 = tpu.matmul %263, %247, %cst_112 {dimension_numbers = #tpu.dot_dimension_numbers<[1], [0], [0], [1], [0, 0, 1, 1], [], []>} : vector<8x8xf32>, vector<8x8xf32>, vector<8x8xf32> -> vector<8x8xf32>
    %265 = vector.extract_strided_slice %222 {offsets = [0, 16], sizes = [8, 8], strides = [1, 1]} : vector<8x32xf32> to vector<8x8xf32>
    %266 = vector.extract_strided_slice %223 {offsets = [0, 16], sizes = [8, 8], strides = [1, 1]} : vector<8x32xf32> to vector<8x8xf32>
    %267 = vector.extract_strided_slice %224 {offsets = [0, 16], sizes = [8, 8], strides = [1, 1]} : vector<8x32xf32> to vector<8x8xf32>
    %268 = tpu.transpose %266, [1, 0] : vector<8x8xf32> -> vector<8x8xf32>
    %cst_113 = arith.constant dense<0.000000e+00> : vector<8x8xf32>
    %269 = tpu.matmul %265, %268, %cst_113 {dimension_numbers = #tpu.dot_dimension_numbers<[1], [0], [0], [1], [0, 0, 1, 1], [], []>} : vector<8x8xf32>, vector<8x8xf32>, vector<8x8xf32> -> vector<8x8xf32>
    %cst_114 = arith.constant 0.353553385 : f32
    %270 = vector.broadcast %cst_114 : f32 to vector<8x8xf32>
    %271 = arith.mulf %269, %270 : vector<8x8xf32>
    %272 = vector.broadcast %32 : vector<1x8xf32> to vector<8x8xf32>
    %273 = arith.addf %271, %272 : vector<8x8xf32>
    %cst_115 = arith.constant dense<0xFF800000> : vector<8xf32>
    %274 = vector.multi_reduction <maximumf>, %273, %cst_115 [1] : vector<8x8xf32> to vector<8xf32>
    %275 = vector.shape_cast %274 : vector<8xf32> to vector<8x1xf32>
    %276 = vector.broadcast %275 : vector<8x1xf32> to vector<8x8xf32>
    %277 = arith.subf %273, %276 : vector<8x8xf32>
    %278 = math.exp %277 : vector<8x8xf32>
    %cst_116 = arith.constant dense<0.000000e+00> : vector<8xf32>
    %279 = vector.multi_reduction <add>, %278, %cst_116 [1] : vector<8x8xf32> to vector<8xf32>
    %280 = vector.shape_cast %279 : vector<8xf32> to vector<8x1xf32>
    %281 = tpu.reciprocal %280 {approx = true} : vector<8x1xf32> -> vector<8x1xf32>
    %282 = vector.broadcast %281 : vector<8x1xf32> to vector<8x8xf32>
    %283 = arith.mulf %278, %282 : vector<8x8xf32>
    %cst_117 = arith.constant dense<0.000000e+00> : vector<8x8xf32>
    %284 = tpu.matmul %283, %267, %cst_117 {dimension_numbers = #tpu.dot_dimension_numbers<[1], [0], [0], [1], [0, 0, 1, 1], [], []>} : vector<8x8xf32>, vector<8x8xf32>, vector<8x8xf32> -> vector<8x8xf32>
    %285 = vector.extract_strided_slice %222 {offsets = [0, 24], sizes = [8, 8], strides = [1, 1]} : vector<8x32xf32> to vector<8x8xf32>
    %286 = vector.extract_strided_slice %223 {offsets = [0, 24], sizes = [8, 8], strides = [1, 1]} : vector<8x32xf32> to vector<8x8xf32>
    %287 = vector.extract_strided_slice %224 {offsets = [0, 24], sizes = [8, 8], strides = [1, 1]} : vector<8x32xf32> to vector<8x8xf32>
    %288 = tpu.transpose %286, [1, 0] : vector<8x8xf32> -> vector<8x8xf32>
    %cst_118 = arith.constant dense<0.000000e+00> : vector<8x8xf32>
    %289 = tpu.matmul %285, %288, %cst_118 {dimension_numbers = #tpu.dot_dimension_numbers<[1], [0], [0], [1], [0, 0, 1, 1], [], []>} : vector<8x8xf32>, vector<8x8xf32>, vector<8x8xf32> -> vector<8x8xf32>
    %cst_119 = arith.constant 0.353553385 : f32
    %290 = vector.broadcast %cst_119 : f32 to vector<8x8xf32>
    %291 = arith.mulf %289, %290 : vector<8x8xf32>
    %292 = vector.broadcast %32 : vector<1x8xf32> to vector<8x8xf32>
    %293 = arith.addf %291, %292 : vector<8x8xf32>
    %cst_120 = arith.constant dense<0xFF800000> : vector<8xf32>
    %294 = vector.multi_reduction <maximumf>, %293, %cst_120 [1] : vector<8x8xf32> to vector<8xf32>
    %295 = vector.shape_cast %294 : vector<8xf32> to vector<8x1xf32>
    %296 = vector.broadcast %295 : vector<8x1xf32> to vector<8x8xf32>
    %297 = arith.subf %293, %296 : vector<8x8xf32>
    %298 = math.exp %297 : vector<8x8xf32>
    %cst_121 = arith.constant dense<0.000000e+00> : vector<8xf32>
    %299 = vector.multi_reduction <add>, %298, %cst_121 [1] : vector<8x8xf32> to vector<8xf32>
    %300 = vector.shape_cast %299 : vector<8xf32> to vector<8x1xf32>
    %301 = tpu.reciprocal %300 {approx = true} : vector<8x1xf32> -> vector<8x1xf32>
    %302 = vector.broadcast %301 : vector<8x1xf32> to vector<8x8xf32>
    %303 = arith.mulf %298, %302 : vector<8x8xf32>
    %cst_122 = arith.constant dense<0.000000e+00> : vector<8x8xf32>
    %304 = tpu.matmul %303, %287, %cst_122 {dimension_numbers = #tpu.dot_dimension_numbers<[1], [0], [0], [1], [0, 0, 1, 1], [], []>} : vector<8x8xf32>, vector<8x8xf32>, vector<8x8xf32> -> vector<8x8xf32>
    %305 = tpu.concatenate %244, %264, %284, %304 in 1 : vector<8x8xf32>, vector<8x8xf32>, vector<8x8xf32>, vector<8x8xf32> -> vector<8x32xf32>
    %c1_123 = arith.constant 1 : index
    %c0_124 = arith.constant 0 : index
    %c0_125 = arith.constant 0 : index
    %306 = vector.load %arg8[%c1_123, %c0_124, %c0_125] : memref<2x32x32xf32, #tpu.memory_space<vmem>>, vector<1x32x32xf32>
    %307 = vector.shape_cast %306 : vector<1x32x32xf32> to vector<32x32xf32>
    %cst_126 = arith.constant dense<0.000000e+00> : vector<8x32xf32>
    %308 = tpu.matmul %305, %307, %cst_126 {dimension_numbers = #tpu.dot_dimension_numbers<[1], [0], [0], [1], [0, 0, 1, 1], [], []>} : vector<8x32xf32>, vector<32x32xf32>, vector<8x32xf32> -> vector<8x32xf32>
    %c1_127 = arith.constant 1 : index
    %c0_128 = arith.constant 0 : index
    %c0_129 = arith.constant 0 : index
    %309 = vector.load %arg9[%c1_127, %c0_128, %c0_129] : memref<2x1x32xf32, #tpu.memory_space<vmem>>, vector<1x1x32xf32>
    %310 = vector.shape_cast %309 : vector<1x1x32xf32> to vector<1x32xf32>
    %311 = vector.broadcast %310 : vector<1x32xf32> to vector<8x32xf32>
    %312 = arith.addf %308, %311 : vector<8x32xf32>
    %313 = arith.addf %312, %211 : vector<8x32xf32>
    %c1_130 = arith.constant 1 : index
    %c0_131 = arith.constant 0 : index
    %c0_132 = arith.constant 0 : index
    %314 = vector.load %arg10[%c1_130, %c0_131, %c0_132] : memref<2x1x32xf32, #tpu.memory_space<vmem>>, vector<1x1x32xf32>
    %315 = vector.shape_cast %314 : vector<1x1x32xf32> to vector<1x32xf32>
    %c1_133 = arith.constant 1 : index
    %c0_134 = arith.constant 0 : index
    %c0_135 = arith.constant 0 : index
    %316 = vector.load %arg11[%c1_133, %c0_134, %c0_135] : memref<2x1x32xf32, #tpu.memory_space<vmem>>, vector<1x1x32xf32>
    %317 = vector.shape_cast %316 : vector<1x1x32xf32> to vector<1x32xf32>
    %cst_136 = arith.constant dense<0.000000e+00> : vector<8xf32>
    %318 = vector.multi_reduction <add>, %313, %cst_136 [1] : vector<8x32xf32> to vector<8xf32>
    %319 = vector.shape_cast %318 : vector<8xf32> to vector<8x1xf32>
    %cst_137 = arith.constant 3.200000e+01 : f32
    %320 = vector.broadcast %cst_137 : f32 to vector<8x1xf32>
    %321 = arith.divf %319, %320 : vector<8x1xf32>
    %322 = vector.broadcast %321 : vector<8x1xf32> to vector<8x32xf32>
    %323 = arith.subf %313, %322 : vector<8x32xf32>
    %324 = arith.mulf %323, %323 : vector<8x32xf32>
    %cst_138 = arith.constant dense<0.000000e+00> : vector<8xf32>
    %325 = vector.multi_reduction <add>, %324, %cst_138 [1] : vector<8x32xf32> to vector<8xf32>
    %326 = vector.shape_cast %325 : vector<8xf32> to vector<8x1xf32>
    %cst_139 = arith.constant 3.200000e+01 : f32
    %327 = vector.broadcast %cst_139 : f32 to vector<8x1xf32>
    %328 = arith.divf %326, %327 : vector<8x1xf32>
    %329 = vector.broadcast %321 : vector<8x1xf32> to vector<8x32xf32>
    %330 = arith.subf %313, %329 : vector<8x32xf32>
    %cst_140 = arith.constant 9.99999996E-13 : f32
    %331 = vector.broadcast %cst_140 : f32 to vector<8x1xf32>
    %332 = arith.addf %328, %331 : vector<8x1xf32>
    %333 = math.rsqrt %332 : vector<8x1xf32>
    %334 = vector.broadcast %333 : vector<8x1xf32> to vector<8x32xf32>
    %335 = arith.mulf %330, %334 : vector<8x32xf32>
    %336 = vector.broadcast %315 : vector<1x32xf32> to vector<8x32xf32>
    %337 = arith.mulf %335, %336 : vector<8x32xf32>
    %338 = vector.broadcast %317 : vector<1x32xf32> to vector<8x32xf32>
    %339 = arith.addf %337, %338 : vector<8x32xf32>
    %c1_141 = arith.constant 1 : index
    %c0_142 = arith.constant 0 : index
    %c0_143 = arith.constant 0 : index
    %340 = vector.load %arg12[%c1_141, %c0_142, %c0_143] : memref<2x32x64xf32, #tpu.memory_space<vmem>>, vector<1x32x64xf32>
    %341 = vector.shape_cast %340 : vector<1x32x64xf32> to vector<32x64xf32>
    %cst_144 = arith.constant dense<0.000000e+00> : vector<8x64xf32>
    %342 = tpu.matmul %339, %341, %cst_144 {dimension_numbers = #tpu.dot_dimension_numbers<[1], [0], [0], [1], [0, 0, 1, 1], [], []>} : vector<8x32xf32>, vector<32x64xf32>, vector<8x64xf32> -> vector<8x64xf32>
    %c1_145 = arith.constant 1 : index
    %c0_146 = arith.constant 0 : index
    %c0_147 = arith.constant 0 : index
    %343 = vector.load %arg13[%c1_145, %c0_146, %c0_147] : memref<2x1x64xf32, #tpu.memory_space<vmem>>, vector<1x1x64xf32>
    %344 = vector.shape_cast %343 : vector<1x1x64xf32> to vector<1x64xf32>
    %345 = vector.broadcast %344 : vector<1x64xf32> to vector<8x64xf32>
    %346 = arith.addf %342, %345 : vector<8x64xf32>
    %347 = arith.mulf %346, %346 : vector<8x64xf32>
    %348 = arith.mulf %346, %347 : vector<8x64xf32>
    %cst_148 = arith.constant 4.471500e-02 : f32
    %349 = vector.broadcast %cst_148 : f32 to vector<8x64xf32>
    %350 = arith.mulf %349, %348 : vector<8x64xf32>
    %351 = arith.addf %346, %350 : vector<8x64xf32>
    %cst_149 = arith.constant 0.797884583 : f32
    %352 = vector.broadcast %cst_149 : f32 to vector<8x64xf32>
    %353 = arith.mulf %352, %351 : vector<8x64xf32>
    %354 = math.tanh %353 : vector<8x64xf32>
    %cst_150 = arith.constant 1.000000e+00 : f32
    %355 = vector.broadcast %cst_150 : f32 to vector<8x64xf32>
    %356 = arith.addf %355, %354 : vector<8x64xf32>
    %cst_151 = arith.constant 5.000000e-01 : f32
    %357 = vector.broadcast %cst_151 : f32 to vector<8x64xf32>
    %358 = arith.mulf %357, %356 : vector<8x64xf32>
    %359 = arith.mulf %346, %358 : vector<8x64xf32>
    %c1_152 = arith.constant 1 : index
    %c0_153 = arith.constant 0 : index
    %c0_154 = arith.constant 0 : index
    %360 = vector.load %arg14[%c1_152, %c0_153, %c0_154] : memref<2x64x32xf32, #tpu.memory_space<vmem>>, vector<1x64x32xf32>
    %361 = vector.shape_cast %360 : vector<1x64x32xf32> to vector<64x32xf32>
    %cst_155 = arith.constant dense<0.000000e+00> : vector<8x32xf32>
    %362 = tpu.matmul %359, %361, %cst_155 {dimension_numbers = #tpu.dot_dimension_numbers<[1], [0], [0], [1], [0, 0, 1, 1], [], []>} : vector<8x64xf32>, vector<64x32xf32>, vector<8x32xf32> -> vector<8x32xf32>
    %c1_156 = arith.constant 1 : index
    %c0_157 = arith.constant 0 : index
    %c0_158 = arith.constant 0 : index
    %363 = vector.load %arg15[%c1_156, %c0_157, %c0_158] : memref<2x1x32xf32, #tpu.memory_space<vmem>>, vector<1x1x32xf32>
    %364 = vector.shape_cast %363 : vector<1x1x32xf32> to vector<1x32xf32>
    %365 = vector.broadcast %364 : vector<1x32xf32> to vector<8x32xf32>
    %366 = arith.addf %362, %365 : vector<8x32xf32>
    %367 = arith.addf %366, %339 : vector<8x32xf32>
    %c1_159 = arith.constant 1 : index
    %c0_160 = arith.constant 0 : index
    %c0_161 = arith.constant 0 : index
    %368 = vector.load %arg16[%c1_159, %c0_160, %c0_161] : memref<2x1x32xf32, #tpu.memory_space<vmem>>, vector<1x1x32xf32>
    %369 = vector.shape_cast %368 : vector<1x1x32xf32> to vector<1x32xf32>
    %c1_162 = arith.constant 1 : index
    %c0_163 = arith.constant 0 : index
    %c0_164 = arith.constant 0 : index
    %370 = vector.load %arg17[%c1_162, %c0_163, %c0_164] : memref<2x1x32xf32, #tpu.memory_space<vmem>>, vector<1x1x32xf32>
    %371 = vector.shape_cast %370 : vector<1x1x32xf32> to vector<1x32xf32>
    %cst_165 = arith.constant dense<0.000000e+00> : vector<8xf32>
    %372 = vector.multi_reduction <add>, %367, %cst_165 [1] : vector<8x32xf32> to vector<8xf32>
    %373 = vector.shape_cast %372 : vector<8xf32> to vector<8x1xf32>
    %cst_166 = arith.constant 3.200000e+01 : f32
    %374 = vector.broadcast %cst_166 : f32 to vector<8x1xf32>
    %375 = arith.divf %373, %374 : vector<8x1xf32>
    %376 = vector.broadcast %375 : vector<8x1xf32> to vector<8x32xf32>
    %377 = arith.subf %367, %376 : vector<8x32xf32>
    %378 = arith.mulf %377, %377 : vector<8x32xf32>
    %cst_167 = arith.constant dense<0.000000e+00> : vector<8xf32>
    %379 = vector.multi_reduction <add>, %378, %cst_167 [1] : vector<8x32xf32> to vector<8xf32>
    %380 = vector.shape_cast %379 : vector<8xf32> to vector<8x1xf32>
    %cst_168 = arith.constant 3.200000e+01 : f32
    %381 = vector.broadcast %cst_168 : f32 to vector<8x1xf32>
    %382 = arith.divf %380, %381 : vector<8x1xf32>
    %383 = vector.broadcast %375 : vector<8x1xf32> to vector<8x32xf32>
    %384 = arith.subf %367, %383 : vector<8x32xf32>
    %cst_169 = arith.constant 9.99999996E-13 : f32
    %385 = vector.broadcast %cst_169 : f32 to vector<8x1xf32>
    %386 = arith.addf %382, %385 : vector<8x1xf32>
    %387 = math.rsqrt %386 : vector<8x1xf32>
    %388 = vector.broadcast %387 : vector<8x1xf32> to vector<8x32xf32>
    %389 = arith.mulf %384, %388 : vector<8x32xf32>
    %390 = vector.broadcast %369 : vector<1x32xf32> to vector<8x32xf32>
    %391 = arith.mulf %389, %390 : vector<8x32xf32>
    %392 = vector.broadcast %371 : vector<1x32xf32> to vector<8x32xf32>
    %393 = arith.addf %391, %392 : vector<8x32xf32>
    %c2 = arith.constant 2 : index
    %c0_170 = arith.constant 0 : index
    %c0_171 = arith.constant 0 : index
    %c0_172 = arith.constant 0 : index
    %394 = vector.load %arg20[%c2, %c0_170, %c0_171, %c0_172] : memref<3x1x8x32xf32, #tpu.memory_space<vmem>>, vector<1x1x8x32xf32>
    %395 = vector.shape_cast %394 : vector<1x1x8x32xf32> to vector<8x32xf32>
    %396 = vector.shape_cast %393 : vector<8x32xf32> to vector<1x1x8x32xf32>
    tpu.vector_store %arg20[%c2, %c0_170, %c0_171, %c0_172], %396 {strides = array<i32>} : memref<3x1x8x32xf32, #tpu.memory_space<vmem>>, vector<1x1x8x32xf32>,
    %397 = vector.extract_strided_slice %393 {offsets = [0, 0], sizes = [1, 32], strides = [1, 1]} : vector<8x32xf32> to vector<1x32xf32>
    %c0_173 = arith.constant 0 : index
    %c0_174 = arith.constant 0 : index
    %398 = vector.load %arg18[%c0_173, %c0_174] : memref<32x32xf32, #tpu.memory_space<vmem>>, vector<32x32xf32>
    %cst_175 = arith.constant dense<0.000000e+00> : vector<1x32xf32>
    %399 = tpu.matmul %397, %398, %cst_175 {dimension_numbers = #tpu.dot_dimension_numbers<[1], [0], [0], [1], [0, 0, 1, 1], [], []>} : vector<1x32xf32>, vector<32x32xf32>, vector<1x32xf32> -> vector<1x32xf32>
    %c0_176 = arith.constant 0 : index
    %c0_177 = arith.constant 0 : index
    %400 = vector.load %arg19[%c0_176, %c0_177] : memref<1x32xf32, #tpu.memory_space<vmem>>, vector<1x32xf32>
    %401 = arith.addf %399, %400 : vector<1x32xf32>
    %402 = math.tanh %401 : vector<1x32xf32>
    %c0_178 = arith.constant 0 : index
    %c0_179 = arith.constant 0 : index
    %c0_180 = arith.constant 0 : index
    %403 = vector.load %arg21[%c0_178, %c0_179, %c0_180] : memref<1x1x32xf32, #tpu.memory_space<vmem>>, vector<1x1x32xf32>
    %404 = vector.shape_cast %403 : vector<1x1x32xf32> to vector<1x32xf32>
    %405 = vector.shape_cast %402 : vector<1x32xf32> to vector<1x1x32xf32>
    tpu.vector_store %arg21[%c0_178, %c0_179, %c0_180], %405 {strides = array<i32>} : memref<1x1x32xf32, #tpu.memory_space<vmem>>, vector<1x1x32xf32>,
    return
  }
  func.func @transform_0(%arg0: i32) -> (i32, i32, i32) {
    %c0_i32 = arith.constant 0 : i32
    %c0_i32_0 = arith.constant 0 : i32
    %c0_i32_1 = arith.constant 0 : i32
    return %arg0, %c0_i32, %c0_i32_0 : i32, i32, i32
  }
  func.func @transform_1(%arg0: i32) -> (i32, i32) {
    %c0_i32 = arith.constant 0 : i32
    %c0_i32_0 = arith.constant 0 : i32
    %c0_i32_1 = arith.constant 0 : i32
    return %c0_i32, %c0_i32_0 : i32, i32
  }
  func.func @transform_2(%arg0: i32) -> (i32, i32, i32) {
    %c0_i32 = arith.constant 0 : i32
    %c0_i32_0 = arith.constant 0 : i32
    %c0_i32_1 = arith.constant 0 : i32
    return %arg0, %c0_i32, %c0_i32_0 : i32, i32, i32
  }
  func.func @transform_3(%arg0: i32) -> (i32, i32) {
    %c0_i32 = arith.constant 0 : i32
    %c0_i32_0 = arith.constant 0 : i32
    %c0_i32_1 = arith.constant 0 : i32
    return %c0_i32, %c0_i32_0 : i32, i32
  }
  func.func @transform_4(%arg0: i32) -> (i32, i32) {
    %c0_i32 = arith.constant 0 : i32
    %c0_i32_0 = arith.constant 0 : i32
    %c0_i32_1 = arith.constant 0 : i32
    return %c0_i32, %c0_i32_0 : i32, i32
  }
  func.func @transform_5(%arg0: i32) -> (i32, i32, i32) {
    %c0_i32 = arith.constant 0 : i32
    %c0_i32_0 = arith.constant 0 : i32
    %c0_i32_1 = arith.constant 0 : i32
    %c0_i32_2 = arith.constant 0 : i32
    return %c0_i32, %c0_i32_0, %c0_i32_1 : i32, i32, i32
  }
  func.func @transform_6(%arg0: i32) -> (i32, i32, i32) {
    %c0_i32 = arith.constant 0 : i32
    %c0_i32_0 = arith.constant 0 : i32
    %c0_i32_1 = arith.constant 0 : i32
    %c0_i32_2 = arith.constant 0 : i32
    return %c0_i32, %c0_i32_0, %c0_i32_1 : i32, i32, i32
  }
  func.func @transform_7(%arg0: i32) -> (i32, i32, i32) {
    %c0_i32 = arith.constant 0 : i32
    %c0_i32_0 = arith.constant 0 : i32
    %c0_i32_1 = arith.constant 0 : i32
    %c0_i32_2 = arith.constant 0 : i32
    return %c0_i32, %c0_i32_0, %c0_i32_1 : i32, i32, i32
  }
  func.func @transform_8(%arg0: i32) -> (i32, i32, i32) {
    %c0_i32 = arith.constant 0 : i32
    %c0_i32_0 = arith.constant 0 : i32
    %c0_i32_1 = arith.constant 0 : i32
    %c0_i32_2 = arith.constant 0 : i32
    return %c0_i32, %c0_i32_0, %c0_i32_1 : i32, i32, i32
  }
  func.func @transform_9(%arg0: i32) -> (i32, i32, i32) {
    %c0_i32 = arith.constant 0 : i32
    %c0_i32_0 = arith.constant 0 : i32
    %c0_i32_1 = arith.constant 0 : i32
    %c0_i32_2 = arith.constant 0 : i32
    return %c0_i32, %c0_i32_0, %c0_i32_1 : i32, i32, i32
  }
  func.func @transform_10(%arg0: i32) -> (i32, i32, i32) {
    %c0_i32 = arith.constant 0 : i32
    %c0_i32_0 = arith.constant 0 : i32
    %c0_i32_1 = arith.constant 0 : i32
    %c0_i32_2 = arith.constant 0 : i32
    return %c0_i32, %c0_i32_0, %c0_i32_1 : i32, i32, i32
  }
  func.func @transform_11(%arg0: i32) -> (i32, i32, i32) {
    %c0_i32 = arith.constant 0 : i32
    %c0_i32_0 = arith.constant 0 : i32
    %c0_i32_1 = arith.constant 0 : i32
    %c0_i32_2 = arith.constant 0 : i32
    return %c0_i32, %c0_i32_0, %c0_i32_1 : i32, i32, i32
  }
  func.func @transform_12(%arg0: i32) -> (i32, i32, i32) {
    %c0_i32 = arith.constant 0 : i32
    %c0_i32_0 = arith.constant 0 : i32
    %c0_i32_1 = arith.constant 0 : i32
    %c0_i32_2 = arith.constant 0 : i32
    return %c0_i32, %c0_i32_0, %c0_i32_1 : i32, i32, i32
  }
  func.func @transform_13(%arg0: i32) -> (i32, i32, i32) {
    %c0_i32 = arith.constant 0 : i32
    %c0_i32_0 = arith.constant 0 : i32
    %c0_i32_1 = arith.constant 0 : i32
    %c0_i32_2 = arith.constant 0 : i32
    return %c0_i32, %c0_i32_0, %c0_i32_1 : i32, i32, i32
  }
  func.func @transform_14(%arg0: i32) -> (i32, i32, i32) {
    %c0_i32 = arith.constant 0 : i32
    %c0_i32_0 = arith.constant 0 : i32
    %c0_i32_1 = arith.constant 0 : i32
    %c0_i32_2 = arith.constant 0 : i32
    return %c0_i32, %c0_i32_0, %c0_i32_1 : i32, i32, i32
  }
  func.func @transform_15(%arg0: i32) -> (i32, i32, i32) {
    %c0_i32 = arith.constant 0 : i32
    %c0_i32_0 = arith.constant 0 : i32
    %c0_i32_1 = arith.constant 0 : i32
    %c0_i32_2 = arith.constant 0 : i32
    return %c0_i32, %c0_i32_0, %c0_i32_1 : i32, i32, i32
  }
  func.func @transform_16(%arg0: i32) -> (i32, i32, i32) {
    %c0_i32 = arith.constant 0 : i32
    %c0_i32_0 = arith.constant 0 : i32
    %c0_i32_1 = arith.constant 0 : i32
    %c0_i32_2 = arith.constant 0 : i32
    return %c0_i32, %c0_i32_0, %c0_i32_1 : i32, i32, i32
  }
  func.func @transform_17(%arg0: i32) -> (i32, i32) {
    %c0_i32 = arith.constant 0 : i32
    %c0_i32_0 = arith.constant 0 : i32
    %c0_i32_1 = arith.constant 0 : i32
    return %c0_i32, %c0_i32_0 : i32, i32
  }
  func.func @transform_18(%arg0: i32) -> (i32, i32) {
    %c0_i32 = arith.constant 0 : i32
    %c0_i32_0 = arith.constant 0 : i32
    %c0_i32_1 = arith.constant 0 : i32
    return %c0_i32, %c0_i32_0 : i32, i32
  }
  func.func @transform_19(%arg0: i32) -> (i32, i32, i32, i32) {
    %c0_i32 = arith.constant 0 : i32
    %c0_i32_0 = arith.constant 0 : i32
    %c0_i32_1 = arith.constant 0 : i32
    %c0_i32_2 = arith.constant 0 : i32
    return %c0_i32, %arg0, %c0_i32_0, %c0_i32_1 : i32, i32, i32, i32
  }
  func.func @transform_20(%arg0: i32) -> (i32, i32, i32) {
    %c0_i32 = arith.constant 0 : i32
    %c0_i32_0 = arith.constant 0 : i32
    %c0_i32_1 = arith.constant 0 : i32
    return %arg0, %c0_i32, %c0_i32_0 : i32, i32, i32
  }
}

</mosaic_0001>

<llo_original>
// kernel: plm_forward.1
$region0: #{plm_forward.1}
  #allocation0 [shape = 'u32[]', space=smem, size = 0x4, offset = 0x4, fixed_abs, tag = 'smem constant byte address 0x4 - core index']
  #allocation1 [shape = 'u32[144,128]{1,0:T(1,128)}', space=vmem, size = 0x12000, scoped, tag = 'internal scratch']
  %s0 = inlined_call_operand.vmem [shape: f32[2,8,32], index: 0, kind: input, shape index: {}]
  %s1 = inlined_call_operand.vmem [shape: f32[8,32], index: 1, kind: input, shape index: {}]
  %s2 = inlined_call_operand.vmem [shape: f32[2,1,8], index: 2, kind: input, shape index: {}]
  %s3 = inlined_call_operand.vmem [shape: f32[1,32], index: 3, kind: input, shape index: {}]
  %s4 = inlined_call_operand.vmem [shape: f32[1,32], index: 4, kind: input, shape index: {}]
  %s5 = inlined_call_operand.vmem [shape: f32[2,32,96], index: 5, kind: input, shape index: {}]
  %s6 = inlined_call_operand.vmem [shape: f32[2,1,96], index: 6, kind: input, shape index: {}]
  %s7 = inlined_call_operand.vmem [shape: f32[2,32,32], index: 7, kind: input, shape index: {}]
  %s8 = inlined_call_operand.vmem [shape: f32[2,1,32], index: 8, kind: input, shape index: {}]
  %s9 = inlined_call_operand.vmem [shape: f32[2,1,32], index: 9, kind: input, shape index: {}]
  %s10 = inlined_call_operand.vmem [shape: f32[2,1,32], index: 10, kind: input, shape index: {}]
  %s11 = inlined_call_operand.vmem [shape: f32[2,32,64], index: 11, kind: input, shape index: {}]
  %s12 = inlined_call_operand.vmem [shape: f32[2,1,64], index: 12, kind: input, shape index: {}]
  %s13 = inlined_call_operand.vmem [shape: f32[2,64,32], index: 13, kind: input, shape index: {}]
  %s14 = inlined_call_operand.vmem [shape: f32[2,1,32], index: 14, kind: input, shape index: {}]
  %s15 = inlined_call_operand.vmem [shape: f32[2,1,32], index: 15, kind: input, shape index: {}]
  %s16 = inlined_call_operand.vmem [shape: f32[2,1,32], index: 16, kind: input, shape index: {}]
  %s17 = inlined_call_operand.vmem [shape: f32[32,32], index: 17, kind: input, shape index: {}]
  %s18 = inlined_call_operand.vmem [shape: f32[1,32], index: 18, kind: input, shape index: {}]
  %s19 = inlined_call_operand.vmem [shape: f32[3,2,8,32], index: 19, kind: output, shape index: {0}]
  %s20 = inlined_call_operand.hbm [shape: f32[2,1,32], index: 20, kind: output, shape index: {1}]
  %21 = xla_tuple %s19, %s20
  %s22 = sld [smem:[#allocation0]]
  $region151: #{plm_forward.1} parent=0
    _
  %s24 = ssub.s32 1, %s22
  %s25 = scalar_select 0, %s24, %s22
  $region1: #{plm_forward.1} parent=0
    #allocation2 [shape = 'u8[24576]{0}', space=vmem, size = 0x6000, scoped, tag = 'output window, operand 0']
    #allocation3 [shape = 'u8[1024]{0}', space=vmem, size = 0x400, scoped, tag = 'output window, operand 1']
    #allocation4 [shape = 's32[2]{0}', space=sflag, size = 0x8, scoped, tag = 'scoped memory for plm_forward.1']
    %26 = vsyncpa [#allocation4], 0
    %s27 = scalar_lea.sflag [#allocation4], 1
    %28 = vsyncpa %s27, 0
    loop: start=0, step=1, limit=4
    $region2: #{plm_forward.1} parent=1 // loop_pre_header
      _
    $region3: #{plm_forward.1} parent=1 // loop_header
      %s30 = sphi 0, %s34
      %p31 = scmp.ge.s32.totalorder %s30, 4
      %s40 = sphi 0, %s42
      %s43 = sphi 0, %s40
      %s44 = sphi 0, %s43
      %s60 = sphi 0, %s44
      %s64 = sphi 0, %s64
      %s66 = sphi 0, %s64
      %s67 = sphi 0, %s66
      %s81 = sphi 0, %s67
      %s87 = sphi 0, %s89
      %s90 = sphi 0, %s87
      %s91 = sphi 0, %s90
      %s107 = sphi 0, %s91
      %s111 = sphi 0, %s111
      %s113 = sphi 0, %s111
      %s114 = sphi 0, %s113
      %s128 = sphi 0, %s114
      %s132 = sphi 0, %s132
      %s134 = sphi 0, %s132
      %s135 = sphi 0, %s134
      %s149 = sphi 0, %s135
      %s153 = sphi 0, %s153
      %s155 = sphi 0, %s153
      %s156 = sphi 0, %s155
      %s170 = sphi 0, %s156
      %s174 = sphi 0, %s174
      %s176 = sphi 0, %s174
      %s177 = sphi 0, %s176
      %s191 = sphi 0, %s177
      %s195 = sphi 0, %s195
      %s197 = sphi 0, %s195
      %s198 = sphi 0, %s197
      %s212 = sphi 0, %s198
      %s216 = sphi 0, %s216
      %s218 = sphi 0, %s216
      %s219 = sphi 0, %s218
      %s233 = sphi 0, %s219
      %s237 = sphi 0, %s237
      %s239 = sphi 0, %s237
      %s240 = sphi 0, %s239
      %s254 = sphi 0, %s240
      %s258 = sphi 0, %s258
      %s260 = sphi 0, %s258
      %s261 = sphi 0, %s260
      %s275 = sphi 0, %s261
      %s279 = sphi 0, %s279
      %s281 = sphi 0, %s279
      %s282 = sphi 0, %s281
      %s296 = sphi 0, %s282
      %s300 = sphi 0, %s300
      %s302 = sphi 0, %s300
      %s303 = sphi 0, %s302
      %s317 = sphi 0, %s303
      %s321 = sphi 0, %s321
      %s323 = sphi 0, %s321
      %s324 = sphi 0, %s323
      %s338 = sphi 0, %s324
      %s342 = sphi 0, %s342
      %s344 = sphi 0, %s342
      %s345 = sphi 0, %s344
      %s359 = sphi 0, %s345
      %s363 = sphi 0, %s363
      %s365 = sphi 0, %s363
      %s366 = sphi 0, %s365
      %s380 = sphi 0, %s366
      %s384 = sphi 0, %s384
      %s386 = sphi 0, %s384
      %s387 = sphi 0, %s386
      %s401 = sphi 0, %s387
      %s405 = sphi 0, %s405
      %s407 = sphi 0, %s405
      %s408 = sphi 0, %s407
      %s422 = sphi 0, %s408
      %s426 = sphi 0, %s426
      %s428 = sphi 0, %s426
      %s429 = sphi 0, %s428
      %s443 = sphi 0, %s429
      %s449 = sphi 0, %s451
      %s452 = sphi 0, %s449
      %s453 = sphi 0, %s452
      %s469 = sphi 0, %s453
      %s475 = sphi 0, %s477
      %s478 = sphi 0, %s475
      %s479 = sphi 0, %s478
      %s495 = sphi 0, %s479
    $region4: #{plm_forward.1} parent=1 // loop_header_branch
      %33 = sbr.rel (%p31) target = $region8
    $region5: #{plm_forward.1} parent=1 // loop_body
      %s35 = ssub.s32 %s30, 1
      %s36 = ssub.s32 %s30, 2
      %s37 = sadd.s32 %s30, 1
      %s38 = ssub.s32 %s30, %s37
      %p39 = scmp.eq.s32.totalorder %s38, 0
      %s41 = sadd.s32 %s40, 1
      %s42 = scalar_select %p39, %s40, %s41
      %p45 = pneg %p39
      %p46 = scmp.eq.s32.totalorder %s30, 1
      %p47 = por %p45, %p46
      %p48 = scmp.ne.s32.totalorder %s40, %s43
      %p49 = scmp.eq.s32.totalorder %s30, 0
      %p50 = por %p48, %p49
      %p51 = scmp.ne.s32.totalorder %s40, %s43
      %p52 = scmp.eq.s32.totalorder %s35, 1
      %p53 = por %p51, %p52
      %p54 = scmp.ne.s32.totalorder %s43, %s44
      %p55 = scmp.eq.s32.totalorder %s35, 0
      %p56 = por %p54, %p55
      %p57 = scmp.ne.s32.totalorder %s43, %s44
      %p58 = scmp.eq.s32.totalorder %s36, 1
      %p59 = por %p57, %p58
      %p61 = scmp.ne.s32.totalorder %s44, %s60
      %p62 = scmp.eq.s32.totalorder %s36, 0
      %p63 = por %p61, %p62
      %s65 = sadd.s32 %s64, 1
      %p68 = scmp.eq.s32.totalorder %s30, 1
      %p69 = scmp.ne.s32.totalorder %s64, %s66
      %p70 = scmp.eq.s32.totalorder %s30, 0
      %p71 = por %p69, %p70
      %p72 = scmp.ne.s32.totalorder %s64, %s66
      %p73 = scmp.eq.s32.totalorder %s35, 1
      %p74 = por %p72, %p73
      %p75 = scmp.ne.s32.totalorder %s66, %s67
      %p76 = scmp.eq.s32.totalorder %s35, 0
      %p77 = por %p75, %p76
      %p78 = scmp.ne.s32.totalorder %s66, %s67
      %p79 = scmp.eq.s32.totalorder %s36, 1
      %p80 = por %p78, %p79
      %p82 = scmp.ne.s32.totalorder %s67, %s81
      %p83 = scmp.eq.s32.totalorder %s36, 0
      %p84 = por %p82, %p83
      %s85 = ssub.s32 %s30, %s37
      %p86 = scmp.eq.s32.totalorder %s85, 0
      %s88 = sadd.s32 %s87, 1
      %s89 = scalar_select %p86, %s87, %s88
      %p92 = pneg %p86
      %p93 = scmp.eq.s32.totalorder %s30, 1
      %p94 = por %p92, %p93
      %p95 = scmp.ne.s32.totalorder %s87, %s90
      %p96 = scmp.eq.s32.totalorder %s30, 0
      %p97 = por %p95, %p96
      %p98 = scmp.ne.s32.totalorder %s87, %s90
      %p99 = scmp.eq.s32.totalorder %s35, 1
      %p100 = por %p98, %p99
      %p101 = scmp.ne.s32.totalorder %s90, %s91
      %p102 = scmp.eq.s32.totalorder %s35, 0
      %p103 = por %p101, %p102
      %p104 = scmp.ne.s32.totalorder %s90, %s91
      %p105 = scmp.eq.s32.totalorder %s36, 1
      %p106 = por %p104, %p105
      %p108 = scmp.ne.s32.totalorder %s91, %s107
      %p109 = scmp.eq.s32.totalorder %s36, 0
      %p110 = por %p108, %p109
      %s112 = sadd.s32 %s111, 1
      %p115 = scmp.eq.s32.totalorder %s30, 1
      %p116 = scmp.ne.s32.totalorder %s111, %s113
      %p117 = scmp.eq.s32.totalorder %s30, 0
      %p118 = por %p116, %p117
      %p119 = scmp.ne.s32.totalorder %s111, %s113
      %p120 = scmp.eq.s32.totalorder %s35, 1
      %p121 = por %p119, %p120
      %p122 = scmp.ne.s32.totalorder %s113, %s114
      %p123 = scmp.eq.s32.totalorder %s35, 0
      %p124 = por %p122, %p123
      %p125 = scmp.ne.s32.totalorder %s113, %s114
      %p126 = scmp.eq.s32.totalorder %s36, 1
      %p127 = por %p125, %p126
      %p129 = scmp.ne.s32.totalorder %s114, %s128
      %p130 = scmp.eq.s32.totalorder %s36, 0
      %p131 = por %p129, %p130
      %s133 = sadd.s32 %s132, 1
      %p136 = scmp.eq.s32.totalorder %s30, 1
      %p137 = scmp.ne.s32.totalorder %s132, %s134
      %p138 = scmp.eq.s32.totalorder %s30, 0
      %p139 = por %p137, %p138
      %p140 = scmp.ne.s32.totalorder %s132, %s134
      %p141 = scmp.eq.s32.totalorder %s35, 1
      %p142 = por %p140, %p141
      %p143 = scmp.ne.s32.totalorder %s134, %s135
      %p144 = scmp.eq.s32.totalorder %s35, 0
      %p145 = por %p143, %p144
      %p146 = scmp.ne.s32.totalorder %s134, %s135
      %p147 = scmp.eq.s32.totalorder %s36, 1
      %p148 = por %p146, %p147
      %p150 = scmp.ne.s32.totalorder %s135, %s149
      %p151 = scmp.eq.s32.totalorder %s36, 0
      %p152 = por %p150, %p151
      %s154 = sadd.s32 %s153, 1
      %p157 = scmp.eq.s32.totalorder %s30, 1
      %p158 = scmp.ne.s32.totalorder %s153, %s155
      %p159 = scmp.eq.s32.totalorder %s30, 0
      %p160 = por %p158, %p159
      %p161 = scmp.ne.s32.totalorder %s153, %s155
      %p162 = scmp.eq.s32.totalorder %s35, 1
      %p163 = por %p161, %p162
      %p164 = scmp.ne.s32.totalorder %s155, %s156
      %p165 = scmp.eq.s32.totalorder %s35, 0
      %p166 = por %p164, %p165
      %p167 = scmp.ne.s32.totalorder %s155, %s156
      %p168 = scmp.eq.s32.totalorder %s36, 1
      %p169 = por %p167, %p168
      %p171 = scmp.ne.s32.totalorder %s156, %s170
      %p172 = scmp.eq.s32.totalorder %s36, 0
      %p173 = por %p171, %p172
      %s175 = sadd.s32 %s174, 1
      %p178 = scmp.eq.s32.totalorder %s30, 1
      %p179 = scmp.ne.s32.totalorder %s174, %s176
      %p180 = scmp.eq.s32.totalorder %s30, 0
      %p181 = por %p179, %p180
      %p182 = scmp.ne.s32.totalorder %s174, %s176
      %p183 = scmp.eq.s32.totalorder %s35, 1
      %p184 = por %p182, %p183
      %p185 = scmp.ne.s32.totalorder %s176, %s177
      %p186 = scmp.eq.s32.totalorder %s35, 0
      %p187 = por %p185, %p186
      %p188 = scmp.ne.s32.totalorder %s176, %s177
      %p189 = scmp.eq.s32.totalorder %s36, 1
      %p190 = por %p188, %p189
      %p192 = scmp.ne.s32.totalorder %s177, %s191
      %p193 = scmp.eq.s32.totalorder %s36, 0
      %p194 = por %p192, %p193
      %s196 = sadd.s32 %s195, 1
      %p199 = scmp.eq.s32.totalorder %s30, 1
      %p200 = scmp.ne.s32.totalorder %s195, %s197
      %p201 = scmp.eq.s32.totalorder %s30, 0
      %p202 = por %p200, %p201
      %p203 = scmp.ne.s32.totalorder %s195, %s197
      %p204 = scmp.eq.s32.totalorder %s35, 1
      %p205 = por %p203, %p204
      %p206 = scmp.ne.s32.totalorder %s197, %s198
      %p207 = scmp.eq.s32.totalorder %s35, 0
      %p208 = por %p206, %p207
      %p209 = scmp.ne.s32.totalorder %s197, %s198
      %p210 = scmp.eq.s32.totalorder %s36, 1
      %p211 = por %p209, %p210
      %p213 = scmp.ne.s32.totalorder %s198, %s212
      %p214 = scmp.eq.s32.totalorder %s36, 0
      %p215 = por %p213, %p214
      %s217 = sadd.s32 %s216, 1
      %p220 = scmp.eq.s32.totalorder %s30, 1
      %p221 = scmp.ne.s32.totalorder %s216, %s218
      %p222 = scmp.eq.s32.totalorder %s30, 0
      %p223 = por %p221, %p222
      %p224 = scmp.ne.s32.totalorder %s216, %s218
      %p225 = scmp.eq.s32.totalorder %s35, 1
      %p226 = por %p224, %p225
      %p227 = scmp.ne.s32.totalorder %s218, %s219
      %p228 = scmp.eq.s32.totalorder %s35, 0
      %p229 = por %p227, %p228
      %p230 = scmp.ne.s32.totalorder %s218, %s219
      %p231 = scmp.eq.s32.totalorder %s36, 1
      %p232 = por %p230, %p231
      %p234 = scmp.ne.s32.totalorder %s219, %s233
      %p235 = scmp.eq.s32.totalorder %s36, 0
      %p236 = por %p234, %p235
      %s238 = sadd.s32 %s237, 1
      %p241 = scmp.eq.s32.totalorder %s30, 1
      %p242 = scmp.ne.s32.totalorder %s237, %s239
      %p243 = scmp.eq.s32.totalorder %s30, 0
      %p244 = por %p242, %p243
      %p245 = scmp.ne.s32.totalorder %s237, %s239
      %p246 = scmp.eq.s32.totalorder %s35, 1
      %p247 = por %p245, %p246
      %p248 = scmp.ne.s32.totalorder %s239, %s240
      %p249 = scmp.eq.s32.totalorder %s35, 0
      %p250 = por %p248, %p249
      %p251 = scmp.ne.s32.totalorder %s239, %s240
      %p252 = scmp.eq.s32.totalorder %s36, 1
      %p253 = por %p251, %p252
      %p255 = scmp.ne.s32.totalorder %s240, %s254
      %p256 = scmp.eq.s32.totalorder %s36, 0
      %p257 = por %p255, %p256
      %s259 = sadd.s32 %s258, 1
      %p262 = scmp.eq.s32.totalorder %s30, 1
      %p263 = scmp.ne.s32.totalorder %s258, %s260
      %p264 = scmp.eq.s32.totalorder %s30, 0
      %p265 = por %p263, %p264
      %p266 = scmp.ne.s32.totalorder %s258, %s260
      %p267 = scmp.eq.s32.totalorder %s35, 1
      %p268 = por %p266, %p267
      %p269 = scmp.ne.s32.totalorder %s260, %s261
      %p270 = scmp.eq.s32.totalorder %s35, 0
      %p271 = por %p269, %p270
      %p272 = scmp.ne.s32.totalorder %s260, %s261
      %p273 = scmp.eq.s32.totalorder %s36, 1
      %p274 = por %p272, %p273
      %p276 = scmp.ne.s32.totalorder %s261, %s275
      %p277 = scmp.eq.s32.totalorder %s36, 0
      %p278 = por %p276, %p277
      %s280 = sadd.s32 %s279, 1
      %p283 = scmp.eq.s32.totalorder %s30, 1
      %p284 = scmp.ne.s32.totalorder %s279, %s281
      %p285 = scmp.eq.s32.totalorder %s30, 0
      %p286 = por %p284, %p285
      %p287 = scmp.ne.s32.totalorder %s279, %s281
      %p288 = scmp.eq.s32.totalorder %s35, 1
      %p289 = por %p287, %p288
      %p290 = scmp.ne.s32.totalorder %s281, %s282
      %p291 = scmp.eq.s32.totalorder %s35, 0
      %p292 = por %p290, %p291
      %p293 = scmp.ne.s32.totalorder %s281, %s282
      %p294 = scmp.eq.s32.totalorder %s36, 1
      %p295 = por %p293, %p294
      %p297 = scmp.ne.s32.totalorder %s282, %s296
      %p298 = scmp.eq.s32.totalorder %s36, 0
      %p299 = por %p297, %p298
      %s301 = sadd.s32 %s300, 1
      %p304 = scmp.eq.s32.totalorder %s30, 1
      %p305 = scmp.ne.s32.totalorder %s300, %s302
      %p306 = scmp.eq.s32.totalorder %s30, 0
      %p307 = por %p305, %p306
      %p308 = scmp.ne.s32.totalorder %s300, %s302
      %p309 = scmp.eq.s32.totalorder %s35, 1
      %p310 = por %p308, %p309
      %p311 = scmp.ne.s32.totalorder %s302, %s303
      %p312 = scmp.eq.s32.totalorder %s35, 0
      %p313 = por %p311, %p312
      %p314 = scmp.ne.s32.totalorder %s302, %s303
      %p315 = scmp.eq.s32.totalorder %s36, 1
      %p316 = por %p314, %p315
      %p318 = scmp.ne.s32.totalorder %s303, %s317
      %p319 = scmp.eq.s32.totalorder %s36, 0
      %p320 = por %p318, %p319
      %s322 = sadd.s32 %s321, 1
      %p325 = scmp.eq.s32.totalorder %s30, 1
      %p326 = scmp.ne.s32.totalorder %s321, %s323
      %p327 = scmp.eq.s32.totalorder %s30, 0
      %p328 = por %p326, %p327
      %p329 = scmp.ne.s32.totalorder %s321, %s323
      %p330 = scmp.eq.s32.totalorder %s35, 1
      %p331 = por %p329, %p330
      %p332 = scmp.ne.s32.totalorder %s323, %s324
      %p333 = scmp.eq.s32.totalorder %s35, 0
      %p334 = por %p332, %p333
      %p335 = scmp.ne.s32.totalorder %s323, %s324
      %p336 = scmp.eq.s32.totalorder %s36, 1
      %p337 = por %p335, %p336
      %p339 = scmp.ne.s32.totalorder %s324, %s338
      %p340 = scmp.eq.s32.totalorder %s36, 0
      %p341 = por %p339, %p340
      %s343 = sadd.s32 %s342, 1
      %p346 = scmp.eq.s32.totalorder %s30, 1
      %p347 = scmp.ne.s32.totalorder %s342, %s344
      %p348 = scmp.eq.s32.totalorder %s30, 0
      %p349 = por %p347, %p348
      %p350 = scmp.ne.s32.totalorder %s342, %s344
      %p351 = scmp.eq.s32.totalorder %s35, 1
      %p352 = por %p350, %p351
      %p353 = scmp.ne.s32.totalorder %s344, %s345
      %p354 = scmp.eq.s32.totalorder %s35, 0
      %p355 = por %p353, %p354
      %p356 = scmp.ne.s32.totalorder %s344, %s345
      %p357 = scmp.eq.s32.totalorder %s36, 1
      %p358 = por %p356, %p357
      %p360 = scmp.ne.s32.totalorder %s345, %s359
      %p361 = scmp.eq.s32.totalorder %s36, 0
      %p362 = por %p360, %p361
      %s364 = sadd.s32 %s363, 1
      %p367 = scmp.eq.s32.totalorder %s30, 1
      %p368 = scmp.ne.s32.totalorder %s363, %s365
      %p369 = scmp.eq.s32.totalorder %s30, 0
      %p370 = por %p368, %p369
      %p371 = scmp.ne.s32.totalorder %s363, %s365
      %p372 = scmp.eq.s32.totalorder %s35, 1
      %p373 = por %p371, %p372
      %p374 = scmp.ne.s32.totalorder %s365, %s366
      %p375 = scmp.eq.s32.totalorder %s35, 0
      %p376 = por %p374, %p375
      %p377 = scmp.ne.s32.totalorder %s365, %s366
      %p378 = scmp.eq.s32.totalorder %s36, 1
      %p379 = por %p377, %p378
      %p381 = scmp.ne.s32.totalorder %s366, %s380
      %p382 = scmp.eq.s32.totalorder %s36, 0
      %p383 = por %p381, %p382
      %s385 = sadd.s32 %s384, 1
      %p388 = scmp.eq.s32.totalorder %s30, 1
      %p389 = scmp.ne.s32.totalorder %s384, %s386
      %p390 = scmp.eq.s32.totalorder %s30, 0
      %p391 = por %p389, %p390
      %p392 = scmp.ne.s32.totalorder %s384, %s386
      %p393 = scmp.eq.s32.totalorder %s35, 1
      %p394 = por %p392, %p393
      %p395 = scmp.ne.s32.totalorder %s386, %s387
      %p396 = scmp.eq.s32.totalorder %s35, 0
      %p397 = por %p395, %p396
      %p398 = scmp.ne.s32.totalorder %s386, %s387
      %p399 = scmp.eq.s32.totalorder %s36, 1
      %p400 = por %p398, %p399
      %p402 = scmp.ne.s32.totalorder %s387, %s401
      %p403 = scmp.eq.s32.totalorder %s36, 0
      %p404 = por %p402, %p403
      %s406 = sadd.s32 %s405, 1
      %p409 = scmp.eq.s32.totalorder %s30, 1
      %p410 = scmp.ne.s32.totalorder %s405, %s407
      %p411 = scmp.eq.s32.totalorder %s30, 0
      %p412 = por %p410, %p411
      %p413 = scmp.ne.s32.totalorder %s405, %s407
      %p414 = scmp.eq.s32.totalorder %s35, 1
      %p415 = por %p413, %p414
      %p416 = scmp.ne.s32.totalorder %s407, %s408
      %p417 = scmp.eq.s32.totalorder %s35, 0
      %p418 = por %p416, %p417
      %p419 = scmp.ne.s32.totalorder %s407, %s408
      %p420 = scmp.eq.s32.totalorder %s36, 1
      %p421 = por %p419, %p420
      %p423 = scmp.ne.s32.totalorder %s408, %s422
      %p424 = scmp.eq.s32.totalorder %s36, 0
      %p425 = por %p423, %p424
      %s427 = sadd.s32 %s426, 1
      %p430 = scmp.eq.s32.totalorder %s30, 1
      %p431 = scmp.ne.s32.totalorder %s426, %s428
      %p432 = scmp.eq.s32.totalorder %s30, 0
      %p433 = por %p431, %p432
      %p434 = scmp.ne.s32.totalorder %s426, %s428
      %p435 = scmp.eq.s32.totalorder %s35, 1
      %p436 = por %p434, %p435
      %p437 = scmp.ne.s32.totalorder %s428, %s429
      %p438 = scmp.eq.s32.totalorder %s35, 0
      %p439 = por %p437, %p438
      %p440 = scmp.ne.s32.totalorder %s428, %s429
      %p441 = scmp.eq.s32.totalorder %s36, 1
      %p442 = por %p440, %p441
      %p444 = scmp.ne.s32.totalorder %s429, %s443
      %p445 = scmp.eq.s32.totalorder %s36, 0
      %p446 = por %p444, %p445
      %s447 = ssub.s32 %s30, %s37
      %p448 = scmp.eq.s32.totalorder %s447, 0
      %s450 = sadd.s32 %s449, 1
      %s451 = scalar_select %p448, %s449, %s450
      %p454 = pneg %p448
      %p455 = scmp.eq.s32.totalorder %s30, 1
      %p456 = por %p454, %p455
      %p457 = scmp.ne.s32.totalorder %s449, %s452
      %p458 = scmp.eq.s32.totalorder %s30, 0
      %p459 = por %p457, %p458
      %p460 = scmp.ne.s32.totalorder %s449, %s452
      %p461 = scmp.eq.s32.totalorder %s35, 1
      %p462 = por %p460, %p461
      %p463 = scmp.ne.s32.totalorder %s452, %s453
      %p464 = scmp.eq.s32.totalorder %s35, 0
      %p465 = por %p463, %p464
      %p466 = scmp.ne.s32.totalorder %s452, %s453
      %p467 = scmp.eq.s32.totalorder %s36, 1
      %p468 = por %p466, %p467
      %p470 = scmp.ne.s32.totalorder %s453, %s469
      %p471 = scmp.eq.s32.totalorder %s36, 0
      %p472 = por %p470, %p471
      %s473 = ssub.s32 %s30, %s37
      %p474 = scmp.eq.s32.totalorder %s473, 0
      %s476 = sadd.s32 %s475, 1
      %s477 = scalar_select %p474, %s475, %s476
      %p480 = pneg %p474
      %p481 = scmp.eq.s32.totalorder %s30, 1
      %p482 = por %p480, %p481
      %p483 = scmp.ne.s32.totalorder %s475, %s478
      %p484 = scmp.eq.s32.totalorder %s30, 0
      %p485 = por %p483, %p484
      %p486 = scmp.ne.s32.totalorder %s475, %s478
      %p487 = scmp.eq.s32.totalorder %s35, 1
      %p488 = por %p486, %p487
      %p489 = scmp.ne.s32.totalorder %s478, %s479
      %p490 = scmp.eq.s32.totalorder %s35, 0
      %p491 = por %p489, %p490
      %p492 = scmp.ne.s32.totalorder %s478, %s479
      %p493 = scmp.eq.s32.totalorder %s36, 1
      %p494 = por %p492, %p493
      %p496 = scmp.ne.s32.totalorder %s479, %s495
      %p497 = scmp.eq.s32.totalorder %s36, 0
      %p498 = por %p496, %p497
      %p499 = scmp.le.s32.totalorder 1, %s30
      %p500 = scmp.lt.s32.totalorder %s30, 3
      %p501 = pnand %p499, %p500
      %p502 = pneg %p501
      // Predicated region
      $region9: #{plm_forward.1} parent=5 // pred_check
        _
      $region10: #{plm_forward.1} parent=5 // pred_check_branch
        %504 = sbr.rel (%p501) target = $region12
      $region11: #{plm_forward.1} parent=5 // pred_region
        %s505 = ssub.s32 %s30, 1
        // Predicated region
        $region13: #{plm_forward.1} parent=11 // pred_check
          %p506 = pneg %p77
        $region14: #{plm_forward.1} parent=11 // pred_check_branch
          %508 = sbr.rel (%p506) target = $region16
        $region15: #{plm_forward.1} parent=11 // pred_region
          _
        $region16: #{plm_forward.1} parent=11 // pred_fallthru
          _
        // Predicated region
        $region17: #{plm_forward.1} parent=11 // pred_check
          %p509 = pneg %p124
        $region18: #{plm_forward.1} parent=11 // pred_check_branch
          %511 = sbr.rel (%p509) target = $region20
        $region19: #{plm_forward.1} parent=11 // pred_region
          _
        $region20: #{plm_forward.1} parent=11 // pred_fallthru
          _
        // Predicated region
        $region21: #{plm_forward.1} parent=11 // pred_check
          %p512 = pneg %p145
        $region22: #{plm_forward.1} parent=11 // pred_check_branch
          %514 = sbr.rel (%p512) target = $region24
        $region23: #{plm_forward.1} parent=11 // pred_region
          _
        $region24: #{plm_forward.1} parent=11 // pred_fallthru
          _
        // Predicated region
        $region25: #{plm_forward.1} parent=11 // pred_check
          %p515 = pneg %p166
        $region26: #{plm_forward.1} parent=11 // pred_check_branch
          %517 = sbr.rel (%p515) target = $region28
        $region27: #{plm_forward.1} parent=11 // pred_region
          _
        $region28: #{plm_forward.1} parent=11 // pred_fallthru
          _
        // Predicated region
        $region29: #{plm_forward.1} parent=11 // pred_check
          %p518 = pneg %p187
        $region30: #{plm_forward.1} parent=11 // pred_check_branch
          %520 = sbr.rel (%p518) target = $region32
        $region31: #{plm_forward.1} parent=11 // pred_region
          _
        $region32: #{plm_forward.1} parent=11 // pred_fallthru
          _
        // Predicated region
        $region33: #{plm_forward.1} parent=11 // pred_check
          %p521 = pneg %p208
        $region34: #{plm_forward.1} parent=11 // pred_check_branch
          %523 = sbr.rel (%p521) target = $region36
        $region35: #{plm_forward.1} parent=11 // pred_region
          _
        $region36: #{plm_forward.1} parent=11 // pred_fallthru
          _
        // Predicated region
        $region37: #{plm_forward.1} parent=11 // pred_check
          %p524 = pneg %p229
        $region38: #{plm_forward.1} parent=11 // pred_check_branch
          %526 = sbr.rel (%p524) target = $region40
        $region39: #{plm_forward.1} parent=11 // pred_region
          _
        $region40: #{plm_forward.1} parent=11 // pred_fallthru
          _
        // Predicated region
        $region41: #{plm_forward.1} parent=11 // pred_check
          %p527 = pneg %p250
        $region42: #{plm_forward.1} parent=11 // pred_check_branch
          %529 = sbr.rel (%p527) target = $region44
        $region43: #{plm_forward.1} parent=11 // pred_region
          _
        $region44: #{plm_forward.1} parent=11 // pred_fallthru
          _
        // Predicated region
        $region45: #{plm_forward.1} parent=11 // pred_check
          %p530 = pneg %p271
        $region46: #{plm_forward.1} parent=11 // pred_check_branch
          %532 = sbr.rel (%p530) target = $region48
        $region47: #{plm_forward.1} parent=11 // pred_region
          _
        $region48: #{plm_forward.1} parent=11 // pred_fallthru
          _
        // Predicated region
        $region49: #{plm_forward.1} parent=11 // pred_check
          %p533 = pneg %p292
        $region50: #{plm_forward.1} parent=11 // pred_check_branch
          %535 = sbr.rel (%p533) target = $region52
        $region51: #{plm_forward.1} parent=11 // pred_region
          _
        $region52: #{plm_forward.1} parent=11 // pred_fallthru
          _
        // Predicated region
        $region53: #{plm_forward.1} parent=11 // pred_check
          %p536 = pneg %p313
        $region54: #{plm_forward.1} parent=11 // pred_check_branch
          %538 = sbr.rel (%p536) target = $region56
        $region55: #{plm_forward.1} parent=11 // pred_region
          _
        $region56: #{plm_forward.1} parent=11 // pred_fallthru
          _
        // Predicated region
        $region57: #{plm_forward.1} parent=11 // pred_check
          %p539 = pneg %p334
        $region58: #{plm_forward.1} parent=11 // pred_check_branch
          %541 = sbr.rel (%p539) target = $region60
        $region59: #{plm_forward.1} parent=11 // pred_region
          _
        $region60: #{plm_forward.1} parent=11 // pred_fallthru
          _
        // Predicated region
        $region61: #{plm_forward.1} parent=11 // pred_check
          %p542 = pneg %p355
        $region62: #{plm_forward.1} parent=11 // pred_check_branch
          %544 = sbr.rel (%p542) target = $region64
        $region63: #{plm_forward.1} parent=11 // pred_region
          _
        $region64: #{plm_forward.1} parent=11 // pred_fallthru
          _
        // Predicated region
        $region65: #{plm_forward.1} parent=11 // pred_check
          %p545 = pneg %p376
        $region66: #{plm_forward.1} parent=11 // pred_check_branch
          %547 = sbr.rel (%p545) target = $region68
        $region67: #{plm_forward.1} parent=11 // pred_region
          _
        $region68: #{plm_forward.1} parent=11 // pred_fallthru
          _
        // Predicated region
        $region69: #{plm_forward.1} parent=11 // pred_check
          %p548 = pneg %p397
        $region70: #{plm_forward.1} parent=11 // pred_check_branch
          %550 = sbr.rel (%p548) target = $region72
        $region71: #{plm_forward.1} parent=11 // pred_region
          _
        $region72: #{plm_forward.1} parent=11 // pred_fallthru
          _
        // Predicated region
        $region73: #{plm_forward.1} parent=11 // pred_check
          %p551 = pneg %p418
        $region74: #{plm_forward.1} parent=11 // pred_check_branch
          %553 = sbr.rel (%p551) target = $region76
        $region75: #{plm_forward.1} parent=11 // pred_region
          _
        $region76: #{plm_forward.1} parent=11 // pred_fallthru
          _
        // Predicated region
        $region77: #{plm_forward.1} parent=11 // pred_check
          %p554 = pneg %p439
        $region78: #{plm_forward.1} parent=11 // pred_check_branch
          %556 = sbr.rel (%p554) target = $region80
        $region79: #{plm_forward.1} parent=11 // pred_region
          _
        $region80: #{plm_forward.1} parent=11 // pred_fallthru
          _
      $region12: #{plm_forward.1} parent=5 // pred_fallthru
        _
      %p557 = scmp.lt.s32.totalorder %s30, 2
      // Predicated region
      $region81: #{plm_forward.1} parent=5 // pred_check
        %p558 = pneg %p557
      $region82: #{plm_forward.1} parent=5 // pred_check_branch
        %560 = sbr.rel (%p558) target = $region84
      $region83: #{plm_forward.1} parent=5 // pred_region
        // Predicated region
        $region85: #{plm_forward.1} parent=83 // pred_check
          %p561 = pneg %p50
        $region86: #{plm_forward.1} parent=83 // pred_check_branch
          %563 = sbr.rel (%p561) target = $region88
        $region87: #{plm_forward.1} parent=83 // pred_region
          %p564 = scmp.lt.s32.totalorder %s30, 1
          %s565 = scalar_select %p564, %s30, 1
          %s566 = smul.addr %s565, 8
          %s567 = scalar_lea.vmem %s0, %s566
        $region88: #{plm_forward.1} parent=83 // pred_fallthru
          _
        // Predicated region
        $region89: #{plm_forward.1} parent=83 // pred_check
          %p568 = pneg %p97
        $region90: #{plm_forward.1} parent=83 // pred_check_branch
          %570 = sbr.rel (%p568) target = $region92
        $region91: #{plm_forward.1} parent=83 // pred_region
          %p571 = scmp.lt.s32.totalorder %s30, 1
          %s572 = scalar_select %p571, %s30, 1
          %s573 = scalar_lea.vmem %s2, %s572
        $region92: #{plm_forward.1} parent=83 // pred_fallthru
          _
      $region84: #{plm_forward.1} parent=5 // pred_fallthru
        _
      %p574 = scmp.le.s32.totalorder 1, %s30
      %p575 = scmp.lt.s32.totalorder %s30, 3
      %p576 = pnand %p574, %p575
      %p577 = pneg %p576
      // Predicated region
      $region93: #{plm_forward.1} parent=5 // pred_check
        _
      $region94: #{plm_forward.1} parent=5 // pred_check_branch
        %579 = sbr.rel (%p576) target = $region96
      $region95: #{plm_forward.1} parent=5 // pred_region
        %s580 = ssub.s32 %s30, 1
        %p581 = scmp.lt.s32.totalorder %s35, 1
        %s582 = scalar_select %p581, %s35, 1
        %s583 = smul.addr %s582, 8
        %s584 = scalar_lea.vmem %s0, %s583
        %p585 = pneg %p56
        %p586 = pneg %p53
        %p587 = pneg %p77
        %p588 = pneg %p74
        %p589 = scmp.lt.s32.totalorder %s35, 1
        %s590 = scalar_select %p589, %s35, 1
        %s591 = scalar_lea.vmem %s2, %s590
        %p592 = pneg %p103
        %p593 = pneg %p100
        %p594 = pneg %p124
        %p595 = pneg %p121
        %p596 = pneg %p145
        %p597 = pneg %p142
        %p598 = pneg %p166
        %p599 = pneg %p163
        %p600 = pneg %p187
        %p601 = pneg %p184
        %p602 = pneg %p208
        %p603 = pneg %p205
        %p604 = pneg %p229
        %p605 = pneg %p226
        %p606 = pneg %p250
        %p607 = pneg %p247
        %p608 = pneg %p271
        %p609 = pneg %p268
        %p610 = pneg %p292
        %p611 = pneg %p289
        %p612 = pneg %p313
        %p613 = pneg %p310
        %p614 = pneg %p334
        %p615 = pneg %p331
        %p616 = pneg %p355
        %p617 = pneg %p352
        %p618 = pneg %p376
        %p619 = pneg %p373
        %p620 = pneg %p397
        %p621 = pneg %p394
        %p622 = pneg %p418
        %p623 = pneg %p415
        %p624 = pneg %p439
        %p625 = pneg %p436
        %p626 = pneg %p465
        %p627 = pneg %p462
        %s628 = sand.u32 %s452, 1
        %s629 = sand.u32 %s452, 1
        %s630 = smul.addr %s629, 24
        %s631 = scalar_lea.vmem [#allocation2], %s630
        %p632 = pneg %p491
        %p633 = pneg %p488
        %s634 = sand.u32 %s478, 1
        %s635 = scalar_lea.sflag [#allocation4], %s634
        %s636 = sand.u32 %s478, 1
        %s637 = scalar_lea.vmem [#allocation3], %s636
        %p638 = scmp.lt.s32.totalorder %s35, 1
        %s639 = scalar_select %p638, %s35, 1
        %s640 = smul.addr %s639, 8
        %s641 = scalar_lea.vmem %s0, %s640
        %p642 = scmp.lt.s32.totalorder %s35, 1
        %s643 = scalar_select %p642, %s35, 1
        %s644 = scalar_lea.vmem %s2, %s643
        %v645 = vld [vmem:[%s641] sm:$0xff]
        %v646 = vld [vmem:[%s1] sm:$0xff]
        %v647 = vadd.f32 %v645, %v646
        %v648 = vld [vmem:[%s3] sm:$0x1]
        %v649 = vld [vmem:[%s4] sm:$0x1]
        %vm650 = vcmask 261120
        %v651 = vsel %vm650, %v647, 0.0
        %652 = vadd.xlane.f32.xlu0 %v651
        %v653 = vpop.xlane.xlu0 %652
        %v654 = vrcp.pop 32.0
        %v655 = vmul.f32 %v653, %v654
        %v656 = vsub.f32 %v647, %v655
        %v657 = vmul.f32 %v656, %v656
        %v658 = vsel %vm650, %v657, 0.0
        %659 = vadd.xlane.f32.xlu0 %v658
        %v660 = vpop.xlane.xlu0 %659
        %v661 = vmul.f32 %v660, %v654
        %v662 = vadd.f32 %v661, 1e-12
        %v663 = vrsqrt.pop %v662
        %v664 = vmul.f32 %v656, %v663
        %v666 = vlaneseq
        %v667 = vshrl.u32 %v666, 7
        %v668 = vsub.s32 0, %v667
        %v669 = vrot.slane %v648, %v668
        %v671 = vmul.f32 %v664, %v669
        %v673 = vlaneseq
        %v674 = vshrl.u32 %v673, 7
        %v675 = vsub.s32 0, %v674
        %v676 = vrot.slane %v649, %v675
        %v678 = vadd.f32 %v671, %v676
        %679 = vst.msk [vmem:[%s631] sm:$0xff] %vm650, %v678
        %v680 = vld [vmem:[%s644] sm:$0x1]
        %v681 = vld [vmem:[%s5] sm:$0xff]
        %v682 = vld [vmem:[%s5 + $0x8] sm:$0xff]
        %v683 = vld [vmem:[%s5 + $0x10] sm:$0xff]
        %v684 = vld [vmem:[%s5 + $0x18] sm:$0xff]
        %v685 = vld [vmem:[%s6] sm:$0x1]
        %v687 = vlaneseq
        %v688 = vshrl.u32 %v687, 7
        %v689 = vsub.s32 0, %v688
        %v690 = vrot.slane %v685, %v689
        %v693 = vsel %vm650, %v678, 0
        %695 = vmatprep.subr.mxu0 0.0
        %696 = vmatpush1.msra.mxu0 %v681
        %697 = vmatprep.subr.mxu0 0.0
        %698 = vmatpush1.msra.mxu0 %v682
        %699 = vmatprep.subr.mxu0 0.0
        %700 = vmatpush1.msra.mxu0 %v683
        %701 = vmatprep.subr.mxu0 0.0
        %702 = vmatpush1.msra.mxu0 %v684
        %703 = vmatprep.subr.mxu0 0.0
        %704 = vmatpush1.msra.mxu0 0.0
        %705 = vmatprep.subr.mxu0 0.0
        %706 = vmatpush1.msra.mxu0 0.0
        %707 = vmatprep.subr.mxu0 0.0
        %708 = vmatpush1.msra.mxu0 0.0
        %709 = vmatprep.subr.mxu0 0.0
        %710 = vmatpush1.msra.mxu0 0.0
        %711 = vmatprep.subr.mxu0 0.0
        %712 = vmatpush1.msra.mxu0 0.0
        %713 = vmatprep.subr.mxu0 0.0
        %714 = vmatpush1.msra.mxu0 0.0
        %715 = vmatprep.subr.mxu0 0.0
        %716 = vmatpush1.msra.mxu0 0.0
        %717 = vmatprep.subr.mxu0 0.0
        %718 = vmatpush1.msra.mxu0 0.0
        %719 = vmatprep.subr.mxu0 0.0
        %720 = vmatpush1.msra.mxu0 0.0
        %721 = vmatprep.subr.mxu0 0.0
        %722 = vmatpush1.msra.mxu0 0.0
        %723 = vmatprep.subr.mxu0 0.0
        %724 = vmatpush1.msra.mxu0 0.0
        %725 = vmatprep.subr.mxu0 0.0
        %726 = vmatpush1.msra.mxu0 0.0
        %727 = vmatprep.subr.mxu0 0.0
        %728 = vmatpush1.msra.mxu0 0.0
        %729 = vmatprep.subr.mxu0 0.0
        %730 = vmatpush1.msra.mxu0 0.0
        %731 = vmatprep.subr.mxu0 0.0
        %732 = vmatpush1.msra.mxu0 0.0
        %733 = vmatprep.subr.mxu0 0.0
        %734 = vmatpush1.msra.mxu0 0.0
        %735 = vmatprep.subr.mxu0 0.0
        %736 = vmatpush1.msra.mxu0 0.0
        %737 = vmatprep.subr.mxu0 0.0
        %738 = vmatpush1.msra.mxu0 0.0
        %739 = vmatprep.subr.mxu0 0.0
        %740 = vmatpush1.msra.mxu0 0.0
        %741 = vmatprep.subr.mxu0 0.0
        %742 = vmatpush1.msra.mxu0 0.0
        %743 = vmatprep.subr.mxu0 0.0
        %744 = vmatpush1.msra.mxu0 0.0
        %745 = vmatprep.subr.mxu0 0.0
        %746 = vmatpush1.msra.mxu0 0.0
        %747 = vmatprep.subr.mxu0 0.0
        %748 = vmatpush1.msra.mxu0 0.0
        %749 = vmatprep.subr.mxu0 0.0
        %750 = vmatpush1.msra.mxu0 0.0
        %751 = vmatprep.subr.mxu0 0.0
        %752 = vmatpush1.msra.mxu0 0.0
        %753 = vmatprep.subr.mxu0 0.0
        %754 = vmatpush1.msra.mxu0 0.0
        %755 = vmatprep.subr.mxu0 0.0
        %756 = vmatpush1.msra.mxu0 0.0
        %757 = vmatprep.subr.mxu0 0.0
        %758 = vmatpush1.msra.mxu0 0.0
        %759 = vmatprep.mubr.f32.mxu0 0.0
        %760 = vmatmul.mubr.f32.gmra.mrb[0].mxu0 %v693
        %v761 = vpop.f32.mrb[0].mxu0
        %v762 = vadd.f32 %v690, %v761
        %v763 = vpop.f32.mrb[0].mxu0
        %764 = vdwg.mxu0
        %766 = vrot.lane.b32.xlu0 %v762, 96
        %v767 = vpop.permute.xlu0 %766
        %vm768 = vcmask 64512
        %v769 = vsel %vm768, %v762, 0
        %v771 = vsel %vm768, %v767, 0
        %773 = vmatprep.subr.mxu0 0.0
        %774 = vmatpush1.xpose.msra.mxu0 %v771
        %775 = vmatprep.subr.mxu0 0.0
        %776 = vmatpush1.xpose.msra.mxu0 0.0
        %777 = vmatprep.subr.mxu0 0.0
        %778 = vmatpush1.xpose.msra.mxu0 0.0
        %779 = vmatprep.subr.mxu0 0.0
        %780 = vmatpush1.xpose.msra.mxu0 0.0
        %781 = vmatprep.subr.mxu0 0.0
        %782 = vmatpush1.xpose.msra.mxu0 0.0
        %783 = vmatprep.subr.mxu0 0.0
        %784 = vmatpush1.xpose.msra.mxu0 0.0
        %785 = vmatprep.subr.mxu0 0.0
        %786 = vmatpush1.xpose.msra.mxu0 0.0
        %787 = vmatprep.subr.mxu0 0.0
        %788 = vmatpush1.xpose.msra.mxu0 0.0
        %789 = vmatprep.subr.mxu0 0.0
        %790 = vmatpush1.xpose.msra.mxu0 0.0
        %791 = vmatprep.subr.mxu0 0.0
        %792 = vmatpush1.xpose.msra.mxu0 0.0
        %793 = vmatprep.subr.mxu0 0.0
        %794 = vmatpush1.xpose.msra.mxu0 0.0
        %795 = vmatprep.subr.mxu0 0.0
        %796 = vmatpush1.xpose.msra.mxu0 0.0
        %797 = vmatprep.subr.mxu0 0.0
        %798 = vmatpush1.xpose.msra.mxu0 0.0
        %799 = vmatprep.subr.mxu0 0.0
        %800 = vmatpush1.xpose.msra.mxu0 0.0
        %801 = vmatprep.subr.mxu0 0.0
        %802 = vmatpush1.xpose.msra.mxu0 0.0
        %803 = vmatprep.subr.mxu0 0.0
        %804 = vmatpush1.xpose.msra.mxu0 0.0
        %805 = vmatprep.subr.mxu0 0.0
        %806 = vmatpush1.xpose.msra.mxu0 0.0
        %807 = vmatprep.subr.mxu0 0.0
        %808 = vmatpush1.xpose.msra.mxu0 0.0
        %809 = vmatprep.subr.mxu0 0.0
        %810 = vmatpush1.xpose.msra.mxu0 0.0
        %811 = vmatprep.subr.mxu0 0.0
        %812 = vmatpush1.xpose.msra.mxu0 0.0
        %813 = vmatprep.subr.mxu0 0.0
        %814 = vmatpush1.xpose.msra.mxu0 0.0
        %815 = vmatprep.subr.mxu0 0.0
        %816 = vmatpush1.xpose.msra.mxu0 0.0
        %817 = vmatprep.subr.mxu0 0.0
        %818 = vmatpush1.xpose.msra.mxu0 0.0
        %819 = vmatprep.subr.mxu0 0.0
        %820 = vmatpush1.xpose.msra.mxu0 0.0
        %821 = vmatprep.subr.mxu0 0.0
        %822 = vmatpush1.xpose.msra.mxu0 0.0
        %823 = vmatprep.subr.mxu0 0.0
        %824 = vmatpush1.xpose.msra.mxu0 0.0
        %825 = vmatprep.subr.mxu0 0.0
        %826 = vmatpush1.xpose.msra.mxu0 0.0
        %827 = vmatprep.subr.mxu0 0.0
        %828 = vmatpush1.xpose.msra.mxu0 0.0
        %829 = vmatprep.subr.mxu0 0.0
        %830 = vmatpush1.xpose.msra.mxu0 0.0
        %831 = vmatprep.subr.mxu0 0.0
        %832 = vmatpush1.xpose.msra.mxu0 0.0
        %833 = vmatprep.subr.mxu0 0.0
        %834 = vmatpush1.xpose.msra.mxu0 0.0
        %835 = vmatprep.subr.mxu0 0.0
        %836 = vmatpush1.xpose.msra.mxu0 0.0
        %837 = vmatprep.mubr.f32.mxu0 0.0
        %838 = vmatmul.mubr.f32.gmra.mrb[0].mxu0 %v769
        %v839 = vpop.f32.mrb[0].mxu0
        %v840 = vadd.f32 0.0, %v839
        %v841 = vpop.f32.mrb[0].mxu0
        %842 = vdwg.mxu0
        %v843 = vmul.f32 %v840, 0.35355338
        %v845 = vlaneseq
        %v846 = vshrl.u32 %v845, 7
        %v847 = vsub.s32 0, %v846
        %v848 = vrot.slane %v680, %v847
        %v850 = vadd.f32 %v843, %v848
        %v851 = vsel %vm768, %v850, -inf
        %852 = vmax.xlane.f32.xlu0 %v851
        %v853 = vpop.xlane.xlu0 %852
        %v854 = vsub.f32 %v850, %v853
        %v855 = vmul.f32 %v854, 1.442695
        %v856 = vpow.pop %v855
        %v857 = vsel %vm768, %v856, 0.0
        %858 = vadd.xlane.f32.xlu0 %v857
        %v859 = vpop.xlane.xlu0 %858
        %v860 = vrcp.pop %v859
        %v861 = vmul.f32 %v856, %v860
        %862 = vrot.lane.b32.xlu0 %v762, 64
        %v863 = vpop.permute.xlu0 %862
        %v866 = vsel %vm768, %v861, 0
        %868 = vmatprep.subr.mxu0 0.0
        %869 = vmatpush1.msra.mxu0 %v863
        %870 = vmatprep.subr.mxu0 0.0
        %871 = vmatpush1.msra.mxu0 0.0
        %872 = vmatprep.subr.mxu0 0.0
        %873 = vmatpush1.msra.mxu0 0.0
        %874 = vmatprep.subr.mxu0 0.0
        %875 = vmatpush1.msra.mxu0 0.0
        %876 = vmatprep.subr.mxu0 0.0
        %877 = vmatpush1.msra.mxu0 0.0
        %878 = vmatprep.subr.mxu0 0.0
        %879 = vmatpush1.msra.mxu0 0.0
        %880 = vmatprep.subr.mxu0 0.0
        %881 = vmatpush1.msra.mxu0 0.0
        %882 = vmatprep.subr.mxu0 0.0
        %883 = vmatpush1.msra.mxu0 0.0
        %884 = vmatprep.subr.mxu0 0.0
        %885 = vmatpush1.msra.mxu0 0.0
        %886 = vmatprep.subr.mxu0 0.0
        %887 = vmatpush1.msra.mxu0 0.0
        %888 = vmatprep.subr.mxu0 0.0
        %889 = vmatpush1.msra.mxu0 0.0
        %890 = vmatprep.subr.mxu0 0.0
        %891 = vmatpush1.msra.mxu0 0.0
        %892 = vmatprep.subr.mxu0 0.0
        %893 = vmatpush1.msra.mxu0 0.0
        %894 = vmatprep.subr.mxu0 0.0
        %895 = vmatpush1.msra.mxu0 0.0
        %896 = vmatprep.subr.mxu0 0.0
        %897 = vmatpush1.msra.mxu0 0.0
        %898 = vmatprep.subr.mxu0 0.0
        %899 = vmatpush1.msra.mxu0 0.0
        %900 = vmatprep.subr.mxu0 0.0
        %901 = vmatpush1.msra.mxu0 0.0
        %902 = vmatprep.subr.mxu0 0.0
        %903 = vmatpush1.msra.mxu0 0.0
        %904 = vmatprep.subr.mxu0 0.0
        %905 = vmatpush1.msra.mxu0 0.0
        %906 = vmatprep.subr.mxu0 0.0
        %907 = vmatpush1.msra.mxu0 0.0
        %908 = vmatprep.subr.mxu0 0.0
        %909 = vmatpush1.msra.mxu0 0.0
        %910 = vmatprep.subr.mxu0 0.0
        %911 = vmatpush1.msra.mxu0 0.0
        %912 = vmatprep.subr.mxu0 0.0
        %913 = vmatpush1.msra.mxu0 0.0
        %914 = vmatprep.subr.mxu0 0.0
        %915 = vmatpush1.msra.mxu0 0.0
        %916 = vmatprep.subr.mxu0 0.0
        %917 = vmatpush1.msra.mxu0 0.0
        %918 = vmatprep.subr.mxu0 0.0
        %919 = vmatpush1.msra.mxu0 0.0
        %920 = vmatprep.subr.mxu0 0.0
        %921 = vmatpush1.msra.mxu0 0.0
        %922 = vmatprep.subr.mxu0 0.0
        %923 = vmatpush1.msra.mxu0 0.0
        %924 = vmatprep.subr.mxu0 0.0
        %925 = vmatpush1.msra.mxu0 0.0
        %926 = vmatprep.subr.mxu0 0.0
        %927 = vmatpush1.msra.mxu0 0.0
        %928 = vmatprep.subr.mxu0 0.0
        %929 = vmatpush1.msra.mxu0 0.0
        %930 = vmatprep.subr.mxu0 0.0
        %931 = vmatpush1.msra.mxu0 0.0
        %932 = vmatprep.mubr.f32.mxu0 0.0
        %933 = vmatmul.mubr.f32.gmra.mrb[0].mxu0 %v866
        %v934 = vpop.f32.mrb[0].mxu0
        %v935 = vadd.f32 0.0, %v934
        %v936 = vpop.f32.mrb[0].mxu0
        %937 = vdwg.mxu0
        %938 = vrot.lane.b32.xlu0 %v762, 120
        %v939 = vpop.permute.xlu0 %938
        %940 = vrot.lane.b32.xlu0 %v762, 88
        %v941 = vpop.permute.xlu0 %940
        %v942 = vsel %vm768, %v939, 0
        %v944 = vsel %vm768, %v941, 0
        %946 = vmatprep.subr.mxu0 0.0
        %947 = vmatpush1.xpose.msra.mxu0 %v944
        %948 = vmatprep.subr.mxu0 0.0
        %949 = vmatpush1.xpose.msra.mxu0 0.0
        %950 = vmatprep.subr.mxu0 0.0
        %951 = vmatpush1.xpose.msra.mxu0 0.0
        %952 = vmatprep.subr.mxu0 0.0
        %953 = vmatpush1.xpose.msra.mxu0 0.0
        %954 = vmatprep.subr.mxu0 0.0
        %955 = vmatpush1.xpose.msra.mxu0 0.0
        %956 = vmatprep.subr.mxu0 0.0
        %957 = vmatpush1.xpose.msra.mxu0 0.0
        %958 = vmatprep.subr.mxu0 0.0
        %959 = vmatpush1.xpose.msra.mxu0 0.0
        %960 = vmatprep.subr.mxu0 0.0
        %961 = vmatpush1.xpose.msra.mxu0 0.0
        %962 = vmatprep.subr.mxu0 0.0
        %963 = vmatpush1.xpose.msra.mxu0 0.0
        %964 = vmatprep.subr.mxu0 0.0
        %965 = vmatpush1.xpose.msra.mxu0 0.0
        %966 = vmatprep.subr.mxu0 0.0
        %967 = vmatpush1.xpose.msra.mxu0 0.0
        %968 = vmatprep.subr.mxu0 0.0
        %969 = vmatpush1.xpose.msra.mxu0 0.0
        %970 = vmatprep.subr.mxu0 0.0
        %971 = vmatpush1.xpose.msra.mxu0 0.0
        %972 = vmatprep.subr.mxu0 0.0
        %973 = vmatpush1.xpose.msra.mxu0 0.0
        %974 = vmatprep.subr.mxu0 0.0
        %975 = vmatpush1.xpose.msra.mxu0 0.0
        %976 = vmatprep.subr.mxu0 0.0
        %977 = vmatpush1.xpose.msra.mxu0 0.0
        %978 = vmatprep.subr.mxu0 0.0
        %979 = vmatpush1.xpose.msra.mxu0 0.0
        %980 = vmatprep.subr.mxu0 0.0
        %981 = vmatpush1.xpose.msra.mxu0 0.0
        %982 = vmatprep.subr.mxu0 0.0
        %983 = vmatpush1.xpose.msra.mxu0 0.0
        %984 = vmatprep.subr.mxu0 0.0
        %985 = vmatpush1.xpose.msra.mxu0 0.0
        %986 = vmatprep.subr.mxu0 0.0
        %987 = vmatpush1.xpose.msra.mxu0 0.0
        %988 = vmatprep.subr.mxu0 0.0
        %989 = vmatpush1.xpose.msra.mxu0 0.0
        %990 = vmatprep.subr.mxu0 0.0
        %991 = vmatpush1.xpose.msra.mxu0 0.0
        %992 = vmatprep.subr.mxu0 0.0
        %993 = vmatpush1.xpose.msra.mxu0 0.0
        %994 = vmatprep.subr.mxu0 0.0
        %995 = vmatpush1.xpose.msra.mxu0 0.0
        %996 = vmatprep.subr.mxu0 0.0
        %997 = vmatpush1.xpose.msra.mxu0 0.0
        %998 = vmatprep.subr.mxu0 0.0
        %999 = vmatpush1.xpose.msra.mxu0 0.0
        %1000 = vmatprep.subr.mxu0 0.0
        %1001 = vmatpush1.xpose.msra.mxu0 0.0
        %1002 = vmatprep.subr.mxu0 0.0
        %1003 = vmatpush1.xpose.msra.mxu0 0.0
        %1004 = vmatprep.subr.mxu0 0.0
        %1005 = vmatpush1.xpose.msra.mxu0 0.0
        %1006 = vmatprep.subr.mxu0 0.0
        %1007 = vmatpush1.xpose.msra.mxu0 0.0
        %1008 = vmatprep.subr.mxu0 0.0
        %1009 = vmatpush1.xpose.msra.mxu0 0.0
        %1010 = vmatprep.mubr.f32.mxu0 0.0
        %1011 = vmatmul.mubr.f32.gmra.mrb[0].mxu0 %v942
        %v1012 = vpop.f32.mrb[0].mxu0
        %v1013 = vadd.f32 0.0, %v1012
        %v1014 = vpop.f32.mrb[0].mxu0
        %1015 = vdwg.mxu0
        %v1016 = vmul.f32 %v1013, 0.35355338
        %v1017 = vadd.f32 %v1016, %v848
        %v1018 = vsel %vm768, %v1017, -inf
        %1019 = vmax.xlane.f32.xlu0 %v1018
        %v1020 = vpop.xlane.xlu0 %1019
        %v1021 = vsub.f32 %v1017, %v1020
        %v1022 = vmul.f32 %v1021, 1.442695
        %v1023 = vpow.pop %v1022
        %v1024 = vsel %vm768, %v1023, 0.0
        %1025 = vadd.xlane.f32.xlu0 %v1024
        %v1026 = vpop.xlane.xlu0 %1025
        %v1027 = vrcp.pop %v1026
        %v1028 = vmul.f32 %v1023, %v1027
        %1029 = vrot.lane.b32.xlu0 %v762, 56
        %v1030 = vpop.permute.xlu0 %1029
        %v1033 = vsel %vm768, %v1028, 0
        %1035 = vmatprep.subr.mxu0 0.0
        %1036 = vmatpush1.msra.mxu0 %v1030
        %1037 = vmatprep.subr.mxu0 0.0
        %1038 = vmatpush1.msra.mxu0 0.0
        %1039 = vmatprep.subr.mxu0 0.0
        %1040 = vmatpush1.msra.mxu0 0.0
        %1041 = vmatprep.subr.mxu0 0.0
        %1042 = vmatpush1.msra.mxu0 0.0
        %1043 = vmatprep.subr.mxu0 0.0
        %1044 = vmatpush1.msra.mxu0 0.0
        %1045 = vmatprep.subr.mxu0 0.0
        %1046 = vmatpush1.msra.mxu0 0.0
        %1047 = vmatprep.subr.mxu0 0.0
        %1048 = vmatpush1.msra.mxu0 0.0
        %1049 = vmatprep.subr.mxu0 0.0
        %1050 = vmatpush1.msra.mxu0 0.0
        %1051 = vmatprep.subr.mxu0 0.0
        %1052 = vmatpush1.msra.mxu0 0.0
        %1053 = vmatprep.subr.mxu0 0.0
        %1054 = vmatpush1.msra.mxu0 0.0
        %1055 = vmatprep.subr.mxu0 0.0
        %1056 = vmatpush1.msra.mxu0 0.0
        %1057 = vmatprep.subr.mxu0 0.0
        %1058 = vmatpush1.msra.mxu0 0.0
        %1059 = vmatprep.subr.mxu0 0.0
        %1060 = vmatpush1.msra.mxu0 0.0
        %1061 = vmatprep.subr.mxu0 0.0
        %1062 = vmatpush1.msra.mxu0 0.0
        %1063 = vmatprep.subr.mxu0 0.0
        %1064 = vmatpush1.msra.mxu0 0.0
        %1065 = vmatprep.subr.mxu0 0.0
        %1066 = vmatpush1.msra.mxu0 0.0
        %1067 = vmatprep.subr.mxu0 0.0
        %1068 = vmatpush1.msra.mxu0 0.0
        %1069 = vmatprep.subr.mxu0 0.0
        %1070 = vmatpush1.msra.mxu0 0.0
        %1071 = vmatprep.subr.mxu0 0.0
        %1072 = vmatpush1.msra.mxu0 0.0
        %1073 = vmatprep.subr.mxu0 0.0
        %1074 = vmatpush1.msra.mxu0 0.0
        %1075 = vmatprep.subr.mxu0 0.0
        %1076 = vmatpush1.msra.mxu0 0.0
        %1077 = vmatprep.subr.mxu0 0.0
        %1078 = vmatpush1.msra.mxu0 0.0
        %1079 = vmatprep.subr.mxu0 0.0
        %1080 = vmatpush1.msra.mxu0 0.0
        %1081 = vmatprep.subr.mxu0 0.0
        %1082 = vmatpush1.msra.mxu0 0.0
        %1083 = vmatprep.subr.mxu0 0.0
        %1084 = vmatpush1.msra.mxu0 0.0
        %1085 = vmatprep.subr.mxu0 0.0
        %1086 = vmatpush1.msra.mxu0 0.0
        %1087 = vmatprep.subr.mxu0 0.0
        %1088 = vmatpush1.msra.mxu0 0.0
        %1089 = vmatprep.subr.mxu0 0.0
        %1090 = vmatpush1.msra.mxu0 0.0
        %1091 = vmatprep.subr.mxu0 0.0
        %1092 = vmatpush1.msra.mxu0 0.0
        %1093 = vmatprep.subr.mxu0 0.0
        %1094 = vmatpush1.msra.mxu0 0.0
        %1095 = vmatprep.subr.mxu0 0.0
        %1096 = vmatpush1.msra.mxu0 0.0
        %1097 = vmatprep.subr.mxu0 0.0
        %1098 = vmatpush1.msra.mxu0 0.0
        %1099 = vmatprep.mubr.f32.mxu0 0.0
        %1100 = vmatmul.mubr.f32.gmra.mrb[0].mxu0 %v1033
        %v1101 = vpop.f32.mrb[0].mxu0
        %v1102 = vadd.f32 0.0, %v1101
        %v1103 = vpop.f32.mrb[0].mxu0
        %1104 = vdwg.mxu0
        %1105 = vrot.lane.b32.xlu0 %v762, 112
        %v1106 = vpop.permute.xlu0 %1105
        %1107 = vrot.lane.b32.xlu0 %v762, 80
        %v1108 = vpop.permute.xlu0 %1107
        %v1109 = vsel %vm768, %v1106, 0
        %v1111 = vsel %vm768, %v1108, 0
        %1113 = vmatprep.subr.mxu0 0.0
        %1114 = vmatpush1.xpose.msra.mxu0 %v1111
        %1115 = vmatprep.subr.mxu0 0.0
        %1116 = vmatpush1.xpose.msra.mxu0 0.0
        %1117 = vmatprep.subr.mxu0 0.0
        %1118 = vmatpush1.xpose.msra.mxu0 0.0
        %1119 = vmatprep.subr.mxu0 0.0
        %1120 = vmatpush1.xpose.msra.mxu0 0.0
        %1121 = vmatprep.subr.mxu0 0.0
        %1122 = vmatpush1.xpose.msra.mxu0 0.0
        %1123 = vmatprep.subr.mxu0 0.0
        %1124 = vmatpush1.xpose.msra.mxu0 0.0
        %1125 = vmatprep.subr.mxu0 0.0
        %1126 = vmatpush1.xpose.msra.mxu0 0.0
        %1127 = vmatprep.subr.mxu0 0.0
        %1128 = vmatpush1.xpose.msra.mxu0 0.0
        %1129 = vmatprep.subr.mxu0 0.0
        %1130 = vmatpush1.xpose.msra.mxu0 0.0
        %1131 = vmatprep.subr.mxu0 0.0
        %1132 = vmatpush1.xpose.msra.mxu0 0.0
        %1133 = vmatprep.subr.mxu0 0.0
        %1134 = vmatpush1.xpose.msra.mxu0 0.0
        %1135 = vmatprep.subr.mxu0 0.0
        %1136 = vmatpush1.xpose.msra.mxu0 0.0
        %1137 = vmatprep.subr.mxu0 0.0
        %1138 = vmatpush1.xpose.msra.mxu0 0.0
        %1139 = vmatprep.subr.mxu0 0.0
        %1140 = vmatpush1.xpose.msra.mxu0 0.0
        %1141 = vmatprep.subr.mxu0 0.0
        %1142 = vmatpush1.xpose.msra.mxu0 0.0
        %1143 = vmatprep.subr.mxu0 0.0
        %1144 = vmatpush1.xpose.msra.mxu0 0.0
        %1145 = vmatprep.subr.mxu0 0.0
        %1146 = vmatpush1.xpose.msra.mxu0 0.0
        %1147 = vmatprep.subr.mxu0 0.0
        %1148 = vmatpush1.xpose.msra.mxu0 0.0
        %1149 = vmatprep.subr.mxu0 0.0
        %1150 = vmatpush1.xpose.msra.mxu0 0.0
        %1151 = vmatprep.subr.mxu0 0.0
        %1152 = vmatpush1.xpose.msra.mxu0 0.0
        %1153 = vmatprep.subr.mxu0 0.0
        %1154 = vmatpush1.xpose.msra.mxu0 0.0
        %1155 = vmatprep.subr.mxu0 0.0
        %1156 = vmatpush1.xpose.msra.mxu0 0.0
        %1157 = vmatprep.subr.mxu0 0.0
        %1158 = vmatpush1.xpose.msra.mxu0 0.0
        %1159 = vmatprep.subr.mxu0 0.0
        %1160 = vmatpush1.xpose.msra.mxu0 0.0
        %1161 = vmatprep.subr.mxu0 0.0
        %1162 = vmatpush1.xpose.msra.mxu0 0.0
        %1163 = vmatprep.subr.mxu0 0.0
        %1164 = vmatpush1.xpose.msra.mxu0 0.0
        %1165 = vmatprep.subr.mxu0 0.0
        %1166 = vmatpush1.xpose.msra.mxu0 0.0
        %1167 = vmatprep.subr.mxu0 0.0
        %1168 = vmatpush1.xpose.msra.mxu0 0.0
        %1169 = vmatprep.subr.mxu0 0.0
        %1170 = vmatpush1.xpose.msra.mxu0 0.0
        %1171 = vmatprep.subr.mxu0 0.0
        %1172 = vmatpush1.xpose.msra.mxu0 0.0
        %1173 = vmatprep.subr.mxu0 0.0
        %1174 = vmatpush1.xpose.msra.mxu0 0.0
        %1175 = vmatprep.subr.mxu0 0.0
        %1176 = vmatpush1.xpose.msra.mxu0 0.0
        %1177 = vmatprep.mubr.f32.mxu0 0.0
        %1178 = vmatmul.mubr.f32.gmra.mrb[0].mxu0 %v1109
        %v1179 = vpop.f32.mrb[0].mxu0
        %v1180 = vadd.f32 0.0, %v1179
        %v1181 = vpop.f32.mrb[0].mxu0
        %1182 = vdwg.mxu0
        %v1183 = vmul.f32 %v1180, 0.35355338
        %v1184 = vadd.f32 %v1183, %v848
        %v1185 = vsel %vm768, %v1184, -inf
        %1186 = vmax.xlane.f32.xlu0 %v1185
        %v1187 = vpop.xlane.xlu0 %1186
        %v1188 = vsub.f32 %v1184, %v1187
        %v1189 = vmul.f32 %v1188, 1.442695
        %v1190 = vpow.pop %v1189
        %v1191 = vsel %vm768, %v1190, 0.0
        %1192 = vadd.xlane.f32.xlu0 %v1191
        %v1193 = vpop.xlane.xlu0 %1192
        %v1194 = vrcp.pop %v1193
        %v1195 = vmul.f32 %v1190, %v1194
        %1196 = vrot.lane.b32.xlu0 %v762, 48
        %v1197 = vpop.permute.xlu0 %1196
        %v1200 = vsel %vm768, %v1195, 0
        %1202 = vmatprep.subr.mxu0 0.0
        %1203 = vmatpush1.msra.mxu0 %v1197
        %1204 = vmatprep.subr.mxu0 0.0
        %1205 = vmatpush1.msra.mxu0 0.0
        %1206 = vmatprep.subr.mxu0 0.0
        %1207 = vmatpush1.msra.mxu0 0.0
        %1208 = vmatprep.subr.mxu0 0.0
        %1209 = vmatpush1.msra.mxu0 0.0
        %1210 = vmatprep.subr.mxu0 0.0
        %1211 = vmatpush1.msra.mxu0 0.0
        %1212 = vmatprep.subr.mxu0 0.0
        %1213 = vmatpush1.msra.mxu0 0.0
        %1214 = vmatprep.subr.mxu0 0.0
        %1215 = vmatpush1.msra.mxu0 0.0
        %1216 = vmatprep.subr.mxu0 0.0
        %1217 = vmatpush1.msra.mxu0 0.0
        %1218 = vmatprep.subr.mxu0 0.0
        %1219 = vmatpush1.msra.mxu0 0.0
        %1220 = vmatprep.subr.mxu0 0.0
        %1221 = vmatpush1.msra.mxu0 0.0
        %1222 = vmatprep.subr.mxu0 0.0
        %1223 = vmatpush1.msra.mxu0 0.0
        %1224 = vmatprep.subr.mxu0 0.0
        %1225 = vmatpush1.msra.mxu0 0.0
        %1226 = vmatprep.subr.mxu0 0.0
        %1227 = vmatpush1.msra.mxu0 0.0
        %1228 = vmatprep.subr.mxu0 0.0
        %1229 = vmatpush1.msra.mxu0 0.0
        %1230 = vmatprep.subr.mxu0 0.0
        %1231 = vmatpush1.msra.mxu0 0.0
        %1232 = vmatprep.subr.mxu0 0.0
        %1233 = vmatpush1.msra.mxu0 0.0
        %1234 = vmatprep.subr.mxu0 0.0
        %1235 = vmatpush1.msra.mxu0 0.0
        %1236 = vmatprep.subr.mxu0 0.0
        %1237 = vmatpush1.msra.mxu0 0.0
        %1238 = vmatprep.subr.mxu0 0.0
        %1239 = vmatpush1.msra.mxu0 0.0
        %1240 = vmatprep.subr.mxu0 0.0
        %1241 = vmatpush1.msra.mxu0 0.0
        %1242 = vmatprep.subr.mxu0 0.0
        %1243 = vmatpush1.msra.mxu0 0.0
        %1244 = vmatprep.subr.mxu0 0.0
        %1245 = vmatpush1.msra.mxu0 0.0
        %1246 = vmatprep.subr.mxu0 0.0
        %1247 = vmatpush1.msra.mxu0 0.0
        %1248 = vmatprep.subr.mxu0 0.0
        %1249 = vmatpush1.msra.mxu0 0.0
        %1250 = vmatprep.subr.mxu0 0.0
        %1251 = vmatpush1.msra.mxu0 0.0
        %1252 = vmatprep.subr.mxu0 0.0
        %1253 = vmatpush1.msra.mxu0 0.0
        %1254 = vmatprep.subr.mxu0 0.0
        %1255 = vmatpush1.msra.mxu0 0.0
        %1256 = vmatprep.subr.mxu0 0.0
        %1257 = vmatpush1.msra.mxu0 0.0
        %1258 = vmatprep.subr.mxu0 0.0
        %1259 = vmatpush1.msra.mxu0 0.0
        %1260 = vmatprep.subr.mxu0 0.0
        %1261 = vmatpush1.msra.mxu0 0.0
        %1262 = vmatprep.subr.mxu0 0.0
        %1263 = vmatpush1.msra.mxu0 0.0
        %1264 = vmatprep.subr.mxu0 0.0
        %1265 = vmatpush1.msra.mxu0 0.0
        %1266 = vmatprep.mubr.f32.mxu0 0.0
        %1267 = vmatmul.mubr.f32.gmra.mrb[0].mxu0 %v1200
        %v1268 = vpop.f32.mrb[0].mxu0
        %v1269 = vadd.f32 0.0, %v1268
        %v1270 = vpop.f32.mrb[0].mxu0
        %1271 = vdwg.mxu0
        %1272 = vrot.lane.b32.xlu0 %v762, 104
        %v1273 = vpop.permute.xlu0 %1272
        %1274 = vrot.lane.b32.xlu0 %v762, 72
        %v1275 = vpop.permute.xlu0 %1274
        %v1276 = vsel %vm768, %v1273, 0
        %v1278 = vsel %vm768, %v1275, 0
        %1280 = vmatprep.subr.mxu0 0.0
        %1281 = vmatpush1.xpose.msra.mxu0 %v1278
        %1282 = vmatprep.subr.mxu0 0.0
        %1283 = vmatpush1.xpose.msra.mxu0 0.0
        %1284 = vmatprep.subr.mxu0 0.0
        %1285 = vmatpush1.xpose.msra.mxu0 0.0
        %1286 = vmatprep.subr.mxu0 0.0
        %1287 = vmatpush1.xpose.msra.mxu0 0.0
        %1288 = vmatprep.subr.mxu0 0.0
        %1289 = vmatpush1.xpose.msra.mxu0 0.0
        %1290 = vmatprep.subr.mxu0 0.0
        %1291 = vmatpush1.xpose.msra.mxu0 0.0
        %1292 = vmatprep.subr.mxu0 0.0
        %1293 = vmatpush1.xpose.msra.mxu0 0.0
        %1294 = vmatprep.subr.mxu0 0.0
        %1295 = vmatpush1.xpose.msra.mxu0 0.0
        %1296 = vmatprep.subr.mxu0 0.0
        %1297 = vmatpush1.xpose.msra.mxu0 0.0
        %1298 = vmatprep.subr.mxu0 0.0
        %1299 = vmatpush1.xpose.msra.mxu0 0.0
        %1300 = vmatprep.subr.mxu0 0.0
        %1301 = vmatpush1.xpose.msra.mxu0 0.0
        %1302 = vmatprep.subr.mxu0 0.0
        %1303 = vmatpush1.xpose.msra.mxu0 0.0
        %1304 = vmatprep.subr.mxu0 0.0
        %1305 = vmatpush1.xpose.msra.mxu0 0.0
        %1306 = vmatprep.subr.mxu0 0.0
        %1307 = vmatpush1.xpose.msra.mxu0 0.0
        %1308 = vmatprep.subr.mxu0 0.0
        %1309 = vmatpush1.xpose.msra.mxu0 0.0
        %1310 = vmatprep.subr.mxu0 0.0
        %1311 = vmatpush1.xpose.msra.mxu0 0.0
        %1312 = vmatprep.subr.mxu0 0.0
        %1313 = vmatpush1.xpose.msra.mxu0 0.0
        %1314 = vmatprep.subr.mxu0 0.0
        %1315 = vmatpush1.xpose.msra.mxu0 0.0
        %1316 = vmatprep.subr.mxu0 0.0
        %1317 = vmatpush1.xpose.msra.mxu0 0.0
        %1318 = vmatprep.subr.mxu0 0.0
        %1319 = vmatpush1.xpose.msra.mxu0 0.0
        %1320 = vmatprep.subr.mxu0 0.0
        %1321 = vmatpush1.xpose.msra.mxu0 0.0
        %1322 = vmatprep.subr.mxu0 0.0
        %1323 = vmatpush1.xpose.msra.mxu0 0.0
        %1324 = vmatprep.subr.mxu0 0.0
        %1325 = vmatpush1.xpose.msra.mxu0 0.0
        %1326 = vmatprep.subr.mxu0 0.0
        %1327 = vmatpush1.xpose.msra.mxu0 0.0
        %1328 = vmatprep.subr.mxu0 0.0
        %1329 = vmatpush1.xpose.msra.mxu0 0.0
        %1330 = vmatprep.subr.mxu0 0.0
        %1331 = vmatpush1.xpose.msra.mxu0 0.0
        %1332 = vmatprep.subr.mxu0 0.0
        %1333 = vmatpush1.xpose.msra.mxu0 0.0
        %1334 = vmatprep.subr.mxu0 0.0
        %1335 = vmatpush1.xpose.msra.mxu0 0.0
        %1336 = vmatprep.subr.mxu0 0.0
        %1337 = vmatpush1.xpose.msra.mxu0 0.0
        %1338 = vmatprep.subr.mxu0 0.0
        %1339 = vmatpush1.xpose.msra.mxu0 0.0
        %1340 = vmatprep.subr.mxu0 0.0
        %1341 = vmatpush1.xpose.msra.mxu0 0.0
        %1342 = vmatprep.subr.mxu0 0.0
        %1343 = vmatpush1.xpose.msra.mxu0 0.0
        %1344 = vmatprep.mubr.f32.mxu0 0.0
        %1345 = vmatmul.mubr.f32.gmra.mrb[0].mxu0 %v1276
        %v1346 = vpop.f32.mrb[0].mxu0
        %v1347 = vadd.f32 0.0, %v1346
        %v1348 = vpop.f32.mrb[0].mxu0
        %1349 = vdwg.mxu0
        %v1350 = vmul.f32 %v1347, 0.35355338
        %v1351 = vadd.f32 %v1350, %v848
        %v1352 = vsel %vm768, %v1351, -inf
        %1353 = vmax.xlane.f32.xlu0 %v1352
        %v1354 = vpop.xlane.xlu0 %1353
        %v1355 = vsub.f32 %v1351, %v1354
        %v1356 = vmul.f32 %v1355, 1.442695
        %v1357 = vpow.pop %v1356
        %v1358 = vsel %vm768, %v1357, 0.0
        %1359 = vadd.xlane.f32.xlu0 %v1358
        %v1360 = vpop.xlane.xlu0 %1359
        %v1361 = vrcp.pop %v1360
        %v1362 = vmul.f32 %v1357, %v1361
        %1363 = vrot.lane.b32.xlu0 %v762, 40
        %v1364 = vpop.permute.xlu0 %1363
        %v1367 = vsel %vm768, %v1362, 0
        %1369 = vmatprep.subr.mxu0 0.0
        %1370 = vmatpush1.msra.mxu0 %v1364
        %1371 = vmatprep.subr.mxu0 0.0
        %1372 = vmatpush1.msra.mxu0 0.0
        %1373 = vmatprep.subr.mxu0 0.0
        %1374 = vmatpush1.msra.mxu0 0.0
        %1375 = vmatprep.subr.mxu0 0.0
        %1376 = vmatpush1.msra.mxu0 0.0
        %1377 = vmatprep.subr.mxu0 0.0
        %1378 = vmatpush1.msra.mxu0 0.0
        %1379 = vmatprep.subr.mxu0 0.0
        %1380 = vmatpush1.msra.mxu0 0.0
        %1381 = vmatprep.subr.mxu0 0.0
        %1382 = vmatpush1.msra.mxu0 0.0
        %1383 = vmatprep.subr.mxu0 0.0
        %1384 = vmatpush1.msra.mxu0 0.0
        %1385 = vmatprep.subr.mxu0 0.0
        %1386 = vmatpush1.msra.mxu0 0.0
        %1387 = vmatprep.subr.mxu0 0.0
        %1388 = vmatpush1.msra.mxu0 0.0
        %1389 = vmatprep.subr.mxu0 0.0
        %1390 = vmatpush1.msra.mxu0 0.0
        %1391 = vmatprep.subr.mxu0 0.0
        %1392 = vmatpush1.msra.mxu0 0.0
        %1393 = vmatprep.subr.mxu0 0.0
        %1394 = vmatpush1.msra.mxu0 0.0
        %1395 = vmatprep.subr.mxu0 0.0
        %1396 = vmatpush1.msra.mxu0 0.0
        %1397 = vmatprep.subr.mxu0 0.0
        %1398 = vmatpush1.msra.mxu0 0.0
        %1399 = vmatprep.subr.mxu0 0.0
        %1400 = vmatpush1.msra.mxu0 0.0
        %1401 = vmatprep.subr.mxu0 0.0
        %1402 = vmatpush1.msra.mxu0 0.0
        %1403 = vmatprep.subr.mxu0 0.0
        %1404 = vmatpush1.msra.mxu0 0.0
        %1405 = vmatprep.subr.mxu0 0.0
        %1406 = vmatpush1.msra.mxu0 0.0
        %1407 = vmatprep.subr.mxu0 0.0
        %1408 = vmatpush1.msra.mxu0 0.0
        %1409 = vmatprep.subr.mxu0 0.0
        %1410 = vmatpush1.msra.mxu0 0.0
        %1411 = vmatprep.subr.mxu0 0.0
        %1412 = vmatpush1.msra.mxu0 0.0
        %1413 = vmatprep.subr.mxu0 0.0
        %1414 = vmatpush1.msra.mxu0 0.0
        %1415 = vmatprep.subr.mxu0 0.0
        %1416 = vmatpush1.msra.mxu0 0.0
        %1417 = vmatprep.subr.mxu0 0.0
        %1418 = vmatpush1.msra.mxu0 0.0
        %1419 = vmatprep.subr.mxu0 0.0
        %1420 = vmatpush1.msra.mxu0 0.0
        %1421 = vmatprep.subr.mxu0 0.0
        %1422 = vmatpush1.msra.mxu0 0.0
        %1423 = vmatprep.subr.mxu0 0.0
        %1424 = vmatpush1.msra.mxu0 0.0
        %1425 = vmatprep.subr.mxu0 0.0
        %1426 = vmatpush1.msra.mxu0 0.0
        %1427 = vmatprep.subr.mxu0 0.0
        %1428 = vmatpush1.msra.mxu0 0.0
        %1429 = vmatprep.subr.mxu0 0.0
        %1430 = vmatpush1.msra.mxu0 0.0
        %1431 = vmatprep.subr.mxu0 0.0
        %1432 = vmatpush1.msra.mxu0 0.0
        %1433 = vmatprep.mubr.f32.mxu0 0.0
        %1434 = vmatmul.mubr.f32.gmra.mrb[0].mxu0 %v1367
        %v1435 = vpop.f32.mrb[0].mxu0
        %v1436 = vadd.f32 0.0, %v1435
        %v1437 = vpop.f32.mrb[0].mxu0
        %1438 = vdwg.mxu0
        %1440 = vrot.lane.b32.xlu0 %v1102, 8
        %v1441 = vpop.permute.xlu0 %1440
        %1444 = vrot.lane.b32.xlu0 %v1269, 16
        %v1445 = vpop.permute.xlu0 %1444
        %1448 = vrot.lane.b32.xlu0 %v1436, 24
        %v1449 = vpop.permute.xlu0 %1448
        %v1451 = vsel %vm768, %v935, %v1441
        %vm1452 = vcmask 130048
        %v1453 = vsel %vm1452, %v1451, %v1445
        %vm1454 = vcmask 195584
        %v1455 = vsel %vm1454, %v1453, %v1449
        %v1456 = vld [vmem:[%s7] sm:$0xff]
        %v1457 = vld [vmem:[%s7 + $0x8] sm:$0xff]
        %v1458 = vld [vmem:[%s7 + $0x10] sm:$0xff]
        %v1459 = vld [vmem:[%s7 + $0x18] sm:$0xff]
        %v1460 = vld [vmem:[%s8] sm:$0x1]
        %v1462 = vlaneseq
        %v1463 = vshrl.u32 %v1462, 7
        %v1464 = vsub.s32 0, %v1463
        %v1465 = vrot.slane %v1460, %v1464
        %v1468 = vsel %vm650, %v1455, 0
        %1470 = vmatprep.subr.mxu0 0.0
        %1471 = vmatpush1.msra.mxu0 %v1456
        %1472 = vmatprep.subr.mxu0 0.0
        %1473 = vmatpush1.msra.mxu0 %v1457
        %1474 = vmatprep.subr.mxu0 0.0
        %1475 = vmatpush1.msra.mxu0 %v1458
        %1476 = vmatprep.subr.mxu0 0.0
        %1477 = vmatpush1.msra.mxu0 %v1459
        %1478 = vmatprep.subr.mxu0 0.0
        %1479 = vmatpush1.msra.mxu0 0.0
        %1480 = vmatprep.subr.mxu0 0.0
        %1481 = vmatpush1.msra.mxu0 0.0
        %1482 = vmatprep.subr.mxu0 0.0
        %1483 = vmatpush1.msra.mxu0 0.0
        %1484 = vmatprep.subr.mxu0 0.0
        %1485 = vmatpush1.msra.mxu0 0.0
        %1486 = vmatprep.subr.mxu0 0.0
        %1487 = vmatpush1.msra.mxu0 0.0
        %1488 = vmatprep.subr.mxu0 0.0
        %1489 = vmatpush1.msra.mxu0 0.0
        %1490 = vmatprep.subr.mxu0 0.0
        %1491 = vmatpush1.msra.mxu0 0.0
        %1492 = vmatprep.subr.mxu0 0.0
        %1493 = vmatpush1.msra.mxu0 0.0
        %1494 = vmatprep.subr.mxu0 0.0
        %1495 = vmatpush1.msra.mxu0 0.0
        %1496 = vmatprep.subr.mxu0 0.0
        %1497 = vmatpush1.msra.mxu0 0.0
        %1498 = vmatprep.subr.mxu0 0.0
        %1499 = vmatpush1.msra.mxu0 0.0
        %1500 = vmatprep.subr.mxu0 0.0
        %1501 = vmatpush1.msra.mxu0 0.0
        %1502 = vmatprep.subr.mxu0 0.0
        %1503 = vmatpush1.msra.mxu0 0.0
        %1504 = vmatprep.subr.mxu0 0.0
        %1505 = vmatpush1.msra.mxu0 0.0
        %1506 = vmatprep.subr.mxu0 0.0
        %1507 = vmatpush1.msra.mxu0 0.0
        %1508 = vmatprep.subr.mxu0 0.0
        %1509 = vmatpush1.msra.mxu0 0.0
        %1510 = vmatprep.subr.mxu0 0.0
        %1511 = vmatpush1.msra.mxu0 0.0
        %1512 = vmatprep.subr.mxu0 0.0
        %1513 = vmatpush1.msra.mxu0 0.0
        %1514 = vmatprep.subr.mxu0 0.0
        %1515 = vmatpush1.msra.mxu0 0.0
        %1516 = vmatprep.subr.mxu0 0.0
        %1517 = vmatpush1.msra.mxu0 0.0
        %1518 = vmatprep.subr.mxu0 0.0
        %1519 = vmatpush1.msra.mxu0 0.0
        %1520 = vmatprep.subr.mxu0 0.0
        %1521 = vmatpush1.msra.mxu0 0.0
        %1522 = vmatprep.subr.mxu0 0.0
        %1523 = vmatpush1.msra.mxu0 0.0
        %1524 = vmatprep.subr.mxu0 0.0
        %1525 = vmatpush1.msra.mxu0 0.0
        %1526 = vmatprep.subr.mxu0 0.0
        %1527 = vmatpush1.msra.mxu0 0.0
        %1528 = vmatprep.subr.mxu0 0.0
        %1529 = vmatpush1.msra.mxu0 0.0
        %1530 = vmatprep.subr.mxu0 0.0
        %1531 = vmatpush1.msra.mxu0 0.0
        %1532 = vmatprep.subr.mxu0 0.0
        %1533 = vmatpush1.msra.mxu0 0.0
        %1534 = vmatprep.mubr.f32.mxu0 0.0
        %1535 = vmatmul.mubr.f32.gmra.mrb[0].mxu0 %v1468
        %v1536 = vpop.f32.mrb[0].mxu0
        %v1537 = vadd.f32 %v1465, %v1536
        %v1538 = vpop.f32.mrb[0].mxu0
        %1539 = vdwg.mxu0
        %v1540 = vadd.f32 %v1537, %v678
        %v1541 = vld [vmem:[%s9] sm:$0x1]
        %v1542 = vld [vmem:[%s10] sm:$0x1]
        %v1543 = vsel %vm650, %v1540, 0.0
        %1544 = vadd.xlane.f32.xlu0 %v1543
        %v1545 = vpop.xlane.xlu0 %1544
        %v1546 = vmul.f32 %v1545, %v654
        %v1547 = vsub.f32 %v1540, %v1546
        %v1548 = vmul.f32 %v1547, %v1547
        %v1549 = vsel %vm650, %v1548, 0.0
        %1550 = vadd.xlane.f32.xlu0 %v1549
        %v1551 = vpop.xlane.xlu0 %1550
        %v1552 = vmul.f32 %v1551, %v654
        %v1553 = vadd.f32 %v1552, 1e-12
        %v1554 = vrsqrt.pop %v1553
        %v1555 = vmul.f32 %v1547, %v1554
        %v1557 = vlaneseq
        %v1558 = vshrl.u32 %v1557, 7
        %v1559 = vsub.s32 0, %v1558
        %v1560 = vrot.slane %v1541, %v1559
        %v1562 = vmul.f32 %v1555, %v1560
        %v1564 = vlaneseq
        %v1565 = vshrl.u32 %v1564, 7
        %v1566 = vsub.s32 0, %v1565
        %v1567 = vrot.slane %v1542, %v1566
        %v1569 = vadd.f32 %v1562, %v1567
        %v1570 = vld [vmem:[%s11] sm:$0xff]
        %v1571 = vld [vmem:[%s11 + $0x8] sm:$0xff]
        %v1572 = vld [vmem:[%s11 + $0x10] sm:$0xff]
        %v1573 = vld [vmem:[%s11 + $0x18] sm:$0xff]
        %v1574 = vld [vmem:[%s12] sm:$0x1]
        %v1576 = vlaneseq
        %v1577 = vshrl.u32 %v1576, 7
        %v1578 = vsub.s32 0, %v1577
        %v1579 = vrot.slane %v1574, %v1578
        %v1582 = vsel %vm650, %v1569, 0
        %1584 = vmatprep.subr.mxu0 0.0
        %1585 = vmatpush1.msra.mxu0 %v1570
        %1586 = vmatprep.subr.mxu0 0.0
        %1587 = vmatpush1.msra.mxu0 %v1571
        %1588 = vmatprep.subr.mxu0 0.0
        %1589 = vmatpush1.msra.mxu0 %v1572
        %1590 = vmatprep.subr.mxu0 0.0
        %1591 = vmatpush1.msra.mxu0 %v1573
        %1592 = vmatprep.subr.mxu0 0.0
        %1593 = vmatpush1.msra.mxu0 0.0
        %1594 = vmatprep.subr.mxu0 0.0
        %1595 = vmatpush1.msra.mxu0 0.0
        %1596 = vmatprep.subr.mxu0 0.0
        %1597 = vmatpush1.msra.mxu0 0.0
        %1598 = vmatprep.subr.mxu0 0.0
        %1599 = vmatpush1.msra.mxu0 0.0
        %1600 = vmatprep.subr.mxu0 0.0
        %1601 = vmatpush1.msra.mxu0 0.0
        %1602 = vmatprep.subr.mxu0 0.0
        %1603 = vmatpush1.msra.mxu0 0.0
        %1604 = vmatprep.subr.mxu0 0.0
        %1605 = vmatpush1.msra.mxu0 0.0
        %1606 = vmatprep.subr.mxu0 0.0
        %1607 = vmatpush1.msra.mxu0 0.0
        %1608 = vmatprep.subr.mxu0 0.0
        %1609 = vmatpush1.msra.mxu0 0.0
        %1610 = vmatprep.subr.mxu0 0.0
        %1611 = vmatpush1.msra.mxu0 0.0
        %1612 = vmatprep.subr.mxu0 0.0
        %1613 = vmatpush1.msra.mxu0 0.0
        %1614 = vmatprep.subr.mxu0 0.0
        %1615 = vmatpush1.msra.mxu0 0.0
        %1616 = vmatprep.subr.mxu0 0.0
        %1617 = vmatpush1.msra.mxu0 0.0
        %1618 = vmatprep.subr.mxu0 0.0
        %1619 = vmatpush1.msra.mxu0 0.0
        %1620 = vmatprep.subr.mxu0 0.0
        %1621 = vmatpush1.msra.mxu0 0.0
        %1622 = vmatprep.subr.mxu0 0.0
        %1623 = vmatpush1.msra.mxu0 0.0
        %1624 = vmatprep.subr.mxu0 0.0
        %1625 = vmatpush1.msra.mxu0 0.0
        %1626 = vmatprep.subr.mxu0 0.0
        %1627 = vmatpush1.msra.mxu0 0.0
        %1628 = vmatprep.subr.mxu0 0.0
        %1629 = vmatpush1.msra.mxu0 0.0
        %1630 = vmatprep.subr.mxu0 0.0
        %1631 = vmatpush1.msra.mxu0 0.0
        %1632 = vmatprep.subr.mxu0 0.0
        %1633 = vmatpush1.msra.mxu0 0.0
        %1634 = vmatprep.subr.mxu0 0.0
        %1635 = vmatpush1.msra.mxu0 0.0
        %1636 = vmatprep.subr.mxu0 0.0
        %1637 = vmatpush1.msra.mxu0 0.0
        %1638 = vmatprep.subr.mxu0 0.0
        %1639 = vmatpush1.msra.mxu0 0.0
        %1640 = vmatprep.subr.mxu0 0.0
        %1641 = vmatpush1.msra.mxu0 0.0
        %1642 = vmatprep.subr.mxu0 0.0
        %1643 = vmatpush1.msra.mxu0 0.0
        %1644 = vmatprep.subr.mxu0 0.0
        %1645 = vmatpush1.msra.mxu0 0.0
        %1646 = vmatprep.subr.mxu0 0.0
        %1647 = vmatpush1.msra.mxu0 0.0
        %1648 = vmatprep.mubr.f32.mxu0 0.0
        %1649 = vmatmul.mubr.f32.gmra.mrb[0].mxu0 %v1582
        %v1650 = vpop.f32.mrb[0].mxu0
        %v1651 = vadd.f32 %v1579, %v1650
        %v1652 = vpop.f32.mrb[0].mxu0
        %1653 = vdwg.mxu0
        %v1654 = vmul.f32 %v1651, %v1651
        %v1655 = vmul.f32 %v1651, %v1654
        %v1656 = vmul.f32 %v1655, 0.044715
        %v1657 = vadd.f32 %v1651, %v1656
        %v1658 = vmul.f32 %v1657, 0.7978846
        %v1659 = vtanh.pop %v1658
        %v1660 = vadd.f32 %v1659, 1.0
        %v1661 = vmul.f32 %v1660, 0.5
        %v1662 = vmul.f32 %v1651, %v1661
        %v1663 = vld [vmem:[%s13] sm:$0xff]
        %v1664 = vld [vmem:[%s13 + $0x8] sm:$0xff]
        %v1665 = vld [vmem:[%s13 + $0x10] sm:$0xff]
        %v1666 = vld [vmem:[%s13 + $0x18] sm:$0xff]
        %v1667 = vld [vmem:[%s13 + $0x20] sm:$0xff]
        %v1668 = vld [vmem:[%s13 + $0x28] sm:$0xff]
        %v1669 = vld [vmem:[%s13 + $0x30] sm:$0xff]
        %v1670 = vld [vmem:[%s13 + $0x38] sm:$0xff]
        %v1671 = vld [vmem:[%s14] sm:$0x1]
        %v1673 = vlaneseq
        %v1674 = vshrl.u32 %v1673, 7
        %v1675 = vsub.s32 0, %v1674
        %v1676 = vrot.slane %v1671, %v1675
        %vm1678 = vcmask 523264
        %v1680 = vsel %vm1678, %v1662, 0
        %1682 = vmatprep.subr.mxu0 0.0
        %1683 = vmatpush1.msra.mxu0 %v1663
        %1684 = vmatprep.subr.mxu0 0.0
        %1685 = vmatpush1.msra.mxu0 %v1664
        %1686 = vmatprep.subr.mxu0 0.0
        %1687 = vmatpush1.msra.mxu0 %v1665
        %1688 = vmatprep.subr.mxu0 0.0
        %1689 = vmatpush1.msra.mxu0 %v1666
        %1690 = vmatprep.subr.mxu0 0.0
        %1691 = vmatpush1.msra.mxu0 %v1667
        %1692 = vmatprep.subr.mxu0 0.0
        %1693 = vmatpush1.msra.mxu0 %v1668
        %1694 = vmatprep.subr.mxu0 0.0
        %1695 = vmatpush1.msra.mxu0 %v1669
        %1696 = vmatprep.subr.mxu0 0.0
        %1697 = vmatpush1.msra.mxu0 %v1670
        %1698 = vmatprep.subr.mxu0 0.0
        %1699 = vmatpush1.msra.mxu0 0.0
        %1700 = vmatprep.subr.mxu0 0.0
        %1701 = vmatpush1.msra.mxu0 0.0
        %1702 = vmatprep.subr.mxu0 0.0
        %1703 = vmatpush1.msra.mxu0 0.0
        %1704 = vmatprep.subr.mxu0 0.0
        %1705 = vmatpush1.msra.mxu0 0.0
        %1706 = vmatprep.subr.mxu0 0.0
        %1707 = vmatpush1.msra.mxu0 0.0
        %1708 = vmatprep.subr.mxu0 0.0
        %1709 = vmatpush1.msra.mxu0 0.0
        %1710 = vmatprep.subr.mxu0 0.0
        %1711 = vmatpush1.msra.mxu0 0.0
        %1712 = vmatprep.subr.mxu0 0.0
        %1713 = vmatpush1.msra.mxu0 0.0
        %1714 = vmatprep.subr.mxu0 0.0
        %1715 = vmatpush1.msra.mxu0 0.0
        %1716 = vmatprep.subr.mxu0 0.0
        %1717 = vmatpush1.msra.mxu0 0.0
        %1718 = vmatprep.subr.mxu0 0.0
        %1719 = vmatpush1.msra.mxu0 0.0
        %1720 = vmatprep.subr.mxu0 0.0
        %1721 = vmatpush1.msra.mxu0 0.0
        %1722 = vmatprep.subr.mxu0 0.0
        %1723 = vmatpush1.msra.mxu0 0.0
        %1724 = vmatprep.subr.mxu0 0.0
        %1725 = vmatpush1.msra.mxu0 0.0
        %1726 = vmatprep.subr.mxu0 0.0
        %1727 = vmatpush1.msra.mxu0 0.0
        %1728 = vmatprep.subr.mxu0 0.0
        %1729 = vmatpush1.msra.mxu0 0.0
        %1730 = vmatprep.subr.mxu0 0.0
        %1731 = vmatpush1.msra.mxu0 0.0
        %1732 = vmatprep.subr.mxu0 0.0
        %1733 = vmatpush1.msra.mxu0 0.0
        %1734 = vmatprep.subr.mxu0 0.0
        %1735 = vmatpush1.msra.mxu0 0.0
        %1736 = vmatprep.subr.mxu0 0.0
        %1737 = vmatpush1.msra.mxu0 0.0
        %1738 = vmatprep.subr.mxu0 0.0
        %1739 = vmatpush1.msra.mxu0 0.0
        %1740 = vmatprep.subr.mxu0 0.0
        %1741 = vmatpush1.msra.mxu0 0.0
        %1742 = vmatprep.subr.mxu0 0.0
        %1743 = vmatpush1.msra.mxu0 0.0
        %1744 = vmatprep.subr.mxu0 0.0
        %1745 = vmatpush1.msra.mxu0 0.0
        %1746 = vmatprep.mubr.f32.mxu0 0.0
        %1747 = vmatmul.mubr.f32.gmra.mrb[0].mxu0 %v1680
        %v1748 = vpop.f32.mrb[0].mxu0
        %v1749 = vadd.f32 %v1676, %v1748
        %v1750 = vpop.f32.mrb[0].mxu0
        %1751 = vdwg.mxu0
        %v1752 = vadd.f32 %v1749, %v1569
        %v1753 = vld [vmem:[%s15] sm:$0x1]
        %v1754 = vld [vmem:[%s16] sm:$0x1]
        %v1755 = vsel %vm650, %v1752, 0.0
        %1756 = vadd.xlane.f32.xlu0 %v1755
        %v1757 = vpop.xlane.xlu0 %1756
        %v1758 = vmul.f32 %v1757, %v654
        %v1759 = vsub.f32 %v1752, %v1758
        %v1760 = vmul.f32 %v1759, %v1759
        %v1761 = vsel %vm650, %v1760, 0.0
        %1762 = vadd.xlane.f32.xlu0 %v1761
        %v1763 = vpop.xlane.xlu0 %1762
        %v1764 = vmul.f32 %v1763, %v654
        %v1765 = vadd.f32 %v1764, 1e-12
        %v1766 = vrsqrt.pop %v1765
        %v1767 = vmul.f32 %v1759, %v1766
        %v1769 = vlaneseq
        %v1770 = vshrl.u32 %v1769, 7
        %v1771 = vsub.s32 0, %v1770
        %v1772 = vrot.slane %v1753, %v1771
        %v1774 = vmul.f32 %v1767, %v1772
        %v1776 = vlaneseq
        %v1777 = vshrl.u32 %v1776, 7
        %v1778 = vsub.s32 0, %v1777
        %v1779 = vrot.slane %v1754, %v1778
        %v1781 = vadd.f32 %v1774, %v1779
        %s1782 = scalar_lea.vmem %s631, 8 [#allocation2]
        %1783 = vst.msk [vmem:[%s1782] sm:$0xff] %vm650, %v1781
        %s1784 = scalar_lea.vmem %s5, 32
        %v1785 = vld [vmem:[%s1784] sm:$0xff]
        %v1786 = vld [vmem:[%s1784 + $0x8] sm:$0xff]
        %v1787 = vld [vmem:[%s1784 + $0x10] sm:$0xff]
        %v1788 = vld [vmem:[%s1784 + $0x18] sm:$0xff]
        %s1789 = scalar_lea.vmem %s6, 1
        %v1790 = vld [vmem:[%s1789] sm:$0x1]
        %v1792 = vlaneseq
        %v1793 = vshrl.u32 %v1792, 7
        %v1794 = vsub.s32 0, %v1793
        %v1795 = vrot.slane %v1790, %v1794
        %v1798 = vsel %vm650, %v1781, 0
        %1800 = vmatprep.subr.mxu0 0.0
        %1801 = vmatpush1.msra.mxu0 %v1785
        %1802 = vmatprep.subr.mxu0 0.0
        %1803 = vmatpush1.msra.mxu0 %v1786
        %1804 = vmatprep.subr.mxu0 0.0
        %1805 = vmatpush1.msra.mxu0 %v1787
        %1806 = vmatprep.subr.mxu0 0.0
        %1807 = vmatpush1.msra.mxu0 %v1788
        %1808 = vmatprep.subr.mxu0 0.0
        %1809 = vmatpush1.msra.mxu0 0.0
        %1810 = vmatprep.subr.mxu0 0.0
        %1811 = vmatpush1.msra.mxu0 0.0
        %1812 = vmatprep.subr.mxu0 0.0
        %1813 = vmatpush1.msra.mxu0 0.0
        %1814 = vmatprep.subr.mxu0 0.0
        %1815 = vmatpush1.msra.mxu0 0.0
        %1816 = vmatprep.subr.mxu0 0.0
        %1817 = vmatpush1.msra.mxu0 0.0
        %1818 = vmatprep.subr.mxu0 0.0
        %1819 = vmatpush1.msra.mxu0 0.0
        %1820 = vmatprep.subr.mxu0 0.0
        %1821 = vmatpush1.msra.mxu0 0.0
        %1822 = vmatprep.subr.mxu0 0.0
        %1823 = vmatpush1.msra.mxu0 0.0
        %1824 = vmatprep.subr.mxu0 0.0
        %1825 = vmatpush1.msra.mxu0 0.0
        %1826 = vmatprep.subr.mxu0 0.0
        %1827 = vmatpush1.msra.mxu0 0.0
        %1828 = vmatprep.subr.mxu0 0.0
        %1829 = vmatpush1.msra.mxu0 0.0
        %1830 = vmatprep.subr.mxu0 0.0
        %1831 = vmatpush1.msra.mxu0 0.0
        %1832 = vmatprep.subr.mxu0 0.0
        %1833 = vmatpush1.msra.mxu0 0.0
        %1834 = vmatprep.subr.mxu0 0.0
        %1835 = vmatpush1.msra.mxu0 0.0
        %1836 = vmatprep.subr.mxu0 0.0
        %1837 = vmatpush1.msra.mxu0 0.0
        %1838 = vmatprep.subr.mxu0 0.0
        %1839 = vmatpush1.msra.mxu0 0.0
        %1840 = vmatprep.subr.mxu0 0.0
        %1841 = vmatpush1.msra.mxu0 0.0
        %1842 = vmatprep.subr.mxu0 0.0
        %1843 = vmatpush1.msra.mxu0 0.0
        %1844 = vmatprep.subr.mxu0 0.0
        %1845 = vmatpush1.msra.mxu0 0.0
        %1846 = vmatprep.subr.mxu0 0.0
        %1847 = vmatpush1.msra.mxu0 0.0
        %1848 = vmatprep.subr.mxu0 0.0
        %1849 = vmatpush1.msra.mxu0 0.0
        %1850 = vmatprep.subr.mxu0 0.0
        %1851 = vmatpush1.msra.mxu0 0.0
        %1852 = vmatprep.subr.mxu0 0.0
        %1853 = vmatpush1.msra.mxu0 0.0
        %1854 = vmatprep.subr.mxu0 0.0
        %1855 = vmatpush1.msra.mxu0 0.0
        %1856 = vmatprep.subr.mxu0 0.0
        %1857 = vmatpush1.msra.mxu0 0.0
        %1858 = vmatprep.subr.mxu0 0.0
        %1859 = vmatpush1.msra.mxu0 0.0
        %1860 = vmatprep.subr.mxu0 0.0
        %1861 = vmatpush1.msra.mxu0 0.0
        %1862 = vmatprep.subr.mxu0 0.0
        %1863 = vmatpush1.msra.mxu0 0.0
        %1864 = vmatprep.mubr.f32.mxu0 0.0
        %1865 = vmatmul.mubr.f32.gmra.mrb[0].mxu0 %v1798
        %v1866 = vpop.f32.mrb[0].mxu0
        %v1867 = vadd.f32 %v1795, %v1866
        %v1868 = vpop.f32.mrb[0].mxu0
        %1869 = vdwg.mxu0
        %1871 = vrot.lane.b32.xlu0 %v1867, 96
        %v1872 = vpop.permute.xlu0 %1871
        %v1873 = vsel %vm768, %v1867, 0
        %v1875 = vsel %vm768, %v1872, 0
        %1877 = vmatprep.subr.mxu0 0.0
        %1878 = vmatpush1.xpose.msra.mxu0 %v1875
        %1879 = vmatprep.subr.mxu0 0.0
        %1880 = vmatpush1.xpose.msra.mxu0 0.0
        %1881 = vmatprep.subr.mxu0 0.0
        %1882 = vmatpush1.xpose.msra.mxu0 0.0
        %1883 = vmatprep.subr.mxu0 0.0
        %1884 = vmatpush1.xpose.msra.mxu0 0.0
        %1885 = vmatprep.subr.mxu0 0.0
        %1886 = vmatpush1.xpose.msra.mxu0 0.0
        %1887 = vmatprep.subr.mxu0 0.0
        %1888 = vmatpush1.xpose.msra.mxu0 0.0
        %1889 = vmatprep.subr.mxu0 0.0
        %1890 = vmatpush1.xpose.msra.mxu0 0.0
        %1891 = vmatprep.subr.mxu0 0.0
        %1892 = vmatpush1.xpose.msra.mxu0 0.0
        %1893 = vmatprep.subr.mxu0 0.0
        %1894 = vmatpush1.xpose.msra.mxu0 0.0
        %1895 = vmatprep.subr.mxu0 0.0
        %1896 = vmatpush1.xpose.msra.mxu0 0.0
        %1897 = vmatprep.subr.mxu0 0.0
        %1898 = vmatpush1.xpose.msra.mxu0 0.0
        %1899 = vmatprep.subr.mxu0 0.0
        %1900 = vmatpush1.xpose.msra.mxu0 0.0
        %1901 = vmatprep.subr.mxu0 0.0
        %1902 = vmatpush1.xpose.msra.mxu0 0.0
        %1903 = vmatprep.subr.mxu0 0.0
        %1904 = vmatpush1.xpose.msra.mxu0 0.0
        %1905 = vmatprep.subr.mxu0 0.0
        %1906 = vmatpush1.xpose.msra.mxu0 0.0
        %1907 = vmatprep.subr.mxu0 0.0
        %1908 = vmatpush1.xpose.msra.mxu0 0.0
        %1909 = vmatprep.subr.mxu0 0.0
        %1910 = vmatpush1.xpose.msra.mxu0 0.0
        %1911 = vmatprep.subr.mxu0 0.0
        %1912 = vmatpush1.xpose.msra.mxu0 0.0
        %1913 = vmatprep.subr.mxu0 0.0
        %1914 = vmatpush1.xpose.msra.mxu0 0.0
        %1915 = vmatprep.subr.mxu0 0.0
        %1916 = vmatpush1.xpose.msra.mxu0 0.0
        %1917 = vmatprep.subr.mxu0 0.0
        %1918 = vmatpush1.xpose.msra.mxu0 0.0
        %1919 = vmatprep.subr.mxu0 0.0
        %1920 = vmatpush1.xpose.msra.mxu0 0.0
        %1921 = vmatprep.subr.mxu0 0.0
        %1922 = vmatpush1.xpose.msra.mxu0 0.0
        %1923 = vmatprep.subr.mxu0 0.0
        %1924 = vmatpush1.xpose.msra.mxu0 0.0
        %1925 = vmatprep.subr.mxu0 0.0
        %1926 = vmatpush1.xpose.msra.mxu0 0.0
        %1927 = vmatprep.subr.mxu0 0.0
        %1928 = vmatpush1.xpose.msra.mxu0 0.0
        %1929 = vmatprep.subr.mxu0 0.0
        %1930 = vmatpush1.xpose.msra.mxu0 0.0
        %1931 = vmatprep.subr.mxu0 0.0
        %1932 = vmatpush1.xpose.msra.mxu0 0.0
        %1933 = vmatprep.subr.mxu0 0.0
        %1934 = vmatpush1.xpose.msra.mxu0 0.0
        %1935 = vmatprep.subr.mxu0 0.0
        %1936 = vmatpush1.xpose.msra.mxu0 0.0
        %1937 = vmatprep.subr.mxu0 0.0
        %1938 = vmatpush1.xpose.msra.mxu0 0.0
        %1939 = vmatprep.subr.mxu0 0.0
        %1940 = vmatpush1.xpose.msra.mxu0 0.0
        %1941 = vmatprep.mubr.f32.mxu0 0.0
        %1942 = vmatmul.mubr.f32.gmra.mrb[0].mxu0 %v1873
        %v1943 = vpop.f32.mrb[0].mxu0
        %v1944 = vadd.f32 0.0, %v1943
        %v1945 = vpop.f32.mrb[0].mxu0
        %1946 = vdwg.mxu0
        %v1947 = vmul.f32 %v1944, 0.35355338
        %v1948 = vadd.f32 %v1947, %v848
        %v1949 = vsel %vm768, %v1948, -inf
        %1950 = vmax.xlane.f32.xlu0 %v1949
        %v1951 = vpop.xlane.xlu0 %1950
        %v1952 = vsub.f32 %v1948, %v1951
        %v1953 = vmul.f32 %v1952, 1.442695
        %v1954 = vpow.pop %v1953
        %v1955 = vsel %vm768, %v1954, 0.0
        %1956 = vadd.xlane.f32.xlu0 %v1955
        %v1957 = vpop.xlane.xlu0 %1956
        %v1958 = vrcp.pop %v1957
        %v1959 = vmul.f32 %v1954, %v1958
        %1960 = vrot.lane.b32.xlu0 %v1867, 64
        %v1961 = vpop.permute.xlu0 %1960
        %v1964 = vsel %vm768, %v1959, 0
        %1966 = vmatprep.subr.mxu0 0.0
        %1967 = vmatpush1.msra.mxu0 %v1961
        %1968 = vmatprep.subr.mxu0 0.0
        %1969 = vmatpush1.msra.mxu0 0.0
        %1970 = vmatprep.subr.mxu0 0.0
        %1971 = vmatpush1.msra.mxu0 0.0
        %1972 = vmatprep.subr.mxu0 0.0
        %1973 = vmatpush1.msra.mxu0 0.0
        %1974 = vmatprep.subr.mxu0 0.0
        %1975 = vmatpush1.msra.mxu0 0.0
        %1976 = vmatprep.subr.mxu0 0.0
        %1977 = vmatpush1.msra.mxu0 0.0
        %1978 = vmatprep.subr.mxu0 0.0
        %1979 = vmatpush1.msra.mxu0 0.0
        %1980 = vmatprep.subr.mxu0 0.0
        %1981 = vmatpush1.msra.mxu0 0.0
        %1982 = vmatprep.subr.mxu0 0.0
        %1983 = vmatpush1.msra.mxu0 0.0
        %1984 = vmatprep.subr.mxu0 0.0
        %1985 = vmatpush1.msra.mxu0 0.0
        %1986 = vmatprep.subr.mxu0 0.0
        %1987 = vmatpush1.msra.mxu0 0.0
        %1988 = vmatprep.subr.mxu0 0.0
        %1989 = vmatpush1.msra.mxu0 0.0
        %1990 = vmatprep.subr.mxu0 0.0
        %1991 = vmatpush1.msra.mxu0 0.0
        %1992 = vmatprep.subr.mxu0 0.0
        %1993 = vmatpush1.msra.mxu0 0.0
        %1994 = vmatprep.subr.mxu0 0.0
        %1995 = vmatpush1.msra.mxu0 0.0
        %1996 = vmatprep.subr.mxu0 0.0
        %1997 = vmatpush1.msra.mxu0 0.0
        %1998 = vmatprep.subr.mxu0 0.0
        %1999 = vmatpush1.msra.mxu0 0.0
        %2000 = vmatprep.subr.mxu0 0.0
        %2001 = vmatpush1.msra.mxu0 0.0
        %2002 = vmatprep.subr.mxu0 0.0
        %2003 = vmatpush1.msra.mxu0 0.0
        %2004 = vmatprep.subr.mxu0 0.0
        %2005 = vmatpush1.msra.mxu0 0.0
        %2006 = vmatprep.subr.mxu0 0.0
        %2007 = vmatpush1.msra.mxu0 0.0
        %2008 = vmatprep.subr.mxu0 0.0
        %2009 = vmatpush1.msra.mxu0 0.0
        %2010 = vmatprep.subr.mxu0 0.0
        %2011 = vmatpush1.msra.mxu0 0.0
        %2012 = vmatprep.subr.mxu0 0.0
        %2013 = vmatpush1.msra.mxu0 0.0
        %2014 = vmatprep.subr.mxu0 0.0
        %2015 = vmatpush1.msra.mxu0 0.0
        %2016 = vmatprep.subr.mxu0 0.0
        %2017 = vmatpush1.msra.mxu0 0.0
        %2018 = vmatprep.subr.mxu0 0.0
        %2019 = vmatpush1.msra.mxu0 0.0
        %2020 = vmatprep.subr.mxu0 0.0
        %2021 = vmatpush1.msra.mxu0 0.0
        %2022 = vmatprep.subr.mxu0 0.0
        %2023 = vmatpush1.msra.mxu0 0.0
        %2024 = vmatprep.subr.mxu0 0.0
        %2025 = vmatpush1.msra.mxu0 0.0
        %2026 = vmatprep.subr.mxu0 0.0
        %2027 = vmatpush1.msra.mxu0 0.0
        %2028 = vmatprep.subr.mxu0 0.0
        %2029 = vmatpush1.msra.mxu0 0.0
        %2030 = vmatprep.mubr.f32.mxu0 0.0
        %2031 = vmatmul.mubr.f32.gmra.mrb[0].mxu0 %v1964
        %v2032 = vpop.f32.mrb[0].mxu0
        %v2033 = vadd.f32 0.0, %v2032
        %v2034 = vpop.f32.mrb[0].mxu0
        %2035 = vdwg.mxu0
        %2036 = vrot.lane.b32.xlu0 %v1867, 120
        %v2037 = vpop.permute.xlu0 %2036
        %2038 = vrot.lane.b32.xlu0 %v1867, 88
        %v2039 = vpop.permute.xlu0 %2038
        %v2040 = vsel %vm768, %v2037, 0
        %v2042 = vsel %vm768, %v2039, 0
        %2044 = vmatprep.subr.mxu0 0.0
        %2045 = vmatpush1.xpose.msra.mxu0 %v2042
        %2046 = vmatprep.subr.mxu0 0.0
        %2047 = vmatpush1.xpose.msra.mxu0 0.0
        %2048 = vmatprep.subr.mxu0 0.0
        %2049 = vmatpush1.xpose.msra.mxu0 0.0
        %2050 = vmatprep.subr.mxu0 0.0
        %2051 = vmatpush1.xpose.msra.mxu0 0.0
        %2052 = vmatprep.subr.mxu0 0.0
        %2053 = vmatpush1.xpose.msra.mxu0 0.0
        %2054 = vmatprep.subr.mxu0 0.0
        %2055 = vmatpush1.xpose.msra.mxu0 0.0
        %2056 = vmatprep.subr.mxu0 0.0
        %2057 = vmatpush1.xpose.msra.mxu0 0.0
        %2058 = vmatprep.subr.mxu0 0.0
        %2059 = vmatpush1.xpose.msra.mxu0 0.0
        %2060 = vmatprep.subr.mxu0 0.0
        %2061 = vmatpush1.xpose.msra.mxu0 0.0
        %2062 = vmatprep.subr.mxu0 0.0
        %2063 = vmatpush1.xpose.msra.mxu0 0.0
        %2064 = vmatprep.subr.mxu0 0.0
        %2065 = vmatpush1.xpose.msra.mxu0 0.0
        %2066 = vmatprep.subr.mxu0 0.0
        %2067 = vmatpush1.xpose.msra.mxu0 0.0
        %2068 = vmatprep.subr.mxu0 0.0
        %2069 = vmatpush1.xpose.msra.mxu0 0.0
        %2070 = vmatprep.subr.mxu0 0.0
        %2071 = vmatpush1.xpose.msra.mxu0 0.0
        %2072 = vmatprep.subr.mxu0 0.0
        %2073 = vmatpush1.xpose.msra.mxu0 0.0
        %2074 = vmatprep.subr.mxu0 0.0
        %2075 = vmatpush1.xpose.msra.mxu0 0.0
        %2076 = vmatprep.subr.mxu0 0.0
        %2077 = vmatpush1.xpose.msra.mxu0 0.0
        %2078 = vmatprep.subr.mxu0 0.0
        %2079 = vmatpush1.xpose.msra.mxu0 0.0
        %2080 = vmatprep.subr.mxu0 0.0
        %2081 = vmatpush1.xpose.msra.mxu0 0.0
        %2082 = vmatprep.subr.mxu0 0.0
        %2083 = vmatpush1.xpose.msra.mxu0 0.0
        %2084 = vmatprep.subr.mxu0 0.0
        %2085 = vmatpush1.xpose.msra.mxu0 0.0
        %2086 = vmatprep.subr.mxu0 0.0
        %2087 = vmatpush1.xpose.msra.mxu0 0.0
        %2088 = vmatprep.subr.mxu0 0.0
        %2089 = vmatpush1.xpose.msra.mxu0 0.0
        %2090 = vmatprep.subr.mxu0 0.0
        %2091 = vmatpush1.xpose.msra.mxu0 0.0
        %2092 = vmatprep.subr.mxu0 0.0
        %2093 = vmatpush1.xpose.msra.mxu0 0.0
        %2094 = vmatprep.subr.mxu0 0.0
        %2095 = vmatpush1.xpose.msra.mxu0 0.0
        %2096 = vmatprep.subr.mxu0 0.0
        %2097 = vmatpush1.xpose.msra.mxu0 0.0
        %2098 = vmatprep.subr.mxu0 0.0
        %2099 = vmatpush1.xpose.msra.mxu0 0.0
        %2100 = vmatprep.subr.mxu0 0.0
        %2101 = vmatpush1.xpose.msra.mxu0 0.0
        %2102 = vmatprep.subr.mxu0 0.0
        %2103 = vmatpush1.xpose.msra.mxu0 0.0
        %2104 = vmatprep.subr.mxu0 0.0
        %2105 = vmatpush1.xpose.msra.mxu0 0.0
        %2106 = vmatprep.subr.mxu0 0.0
        %2107 = vmatpush1.xpose.msra.mxu0 0.0
        %2108 = vmatprep.mubr.f32.mxu0 0.0
        %2109 = vmatmul.mubr.f32.gmra.mrb[0].mxu0 %v2040
        %v2110 = vpop.f32.mrb[0].mxu0
        %v2111 = vadd.f32 0.0, %v2110
        %v2112 = vpop.f32.mrb[0].mxu0
        %2113 = vdwg.mxu0
        %v2114 = vmul.f32 %v2111, 0.35355338
        %v2115 = vadd.f32 %v2114, %v848
        %v2116 = vsel %vm768, %v2115, -inf
        %2117 = vmax.xlane.f32.xlu0 %v2116
        %v2118 = vpop.xlane.xlu0 %2117
        %v2119 = vsub.f32 %v2115, %v2118
        %v2120 = vmul.f32 %v2119, 1.442695
        %v2121 = vpow.pop %v2120
        %v2122 = vsel %vm768, %v2121, 0.0
        %2123 = vadd.xlane.f32.xlu0 %v2122
        %v2124 = vpop.xlane.xlu0 %2123
        %v2125 = vrcp.pop %v2124
        %v2126 = vmul.f32 %v2121, %v2125
        %2127 = vrot.lane.b32.xlu0 %v1867, 56
        %v2128 = vpop.permute.xlu0 %2127
        %v2131 = vsel %vm768, %v2126, 0
        %2133 = vmatprep.subr.mxu0 0.0
        %2134 = vmatpush1.msra.mxu0 %v2128
        %2135 = vmatprep.subr.mxu0 0.0
        %2136 = vmatpush1.msra.mxu0 0.0
        %2137 = vmatprep.subr.mxu0 0.0
        %2138 = vmatpush1.msra.mxu0 0.0
        %2139 = vmatprep.subr.mxu0 0.0
        %2140 = vmatpush1.msra.mxu0 0.0
        %2141 = vmatprep.subr.mxu0 0.0
        %2142 = vmatpush1.msra.mxu0 0.0
        %2143 = vmatprep.subr.mxu0 0.0
        %2144 = vmatpush1.msra.mxu0 0.0
        %2145 = vmatprep.subr.mxu0 0.0
        %2146 = vmatpush1.msra.mxu0 0.0
        %2147 = vmatprep.subr.mxu0 0.0
        %2148 = vmatpush1.msra.mxu0 0.0
        %2149 = vmatprep.subr.mxu0 0.0
        %2150 = vmatpush1.msra.mxu0 0.0
        %2151 = vmatprep.subr.mxu0 0.0
        %2152 = vmatpush1.msra.mxu0 0.0
        %2153 = vmatprep.subr.mxu0 0.0
        %2154 = vmatpush1.msra.mxu0 0.0
        %2155 = vmatprep.subr.mxu0 0.0
        %2156 = vmatpush1.msra.mxu0 0.0
        %2157 = vmatprep.subr.mxu0 0.0
        %2158 = vmatpush1.msra.mxu0 0.0
        %2159 = vmatprep.subr.mxu0 0.0
        %2160 = vmatpush1.msra.mxu0 0.0
        %2161 = vmatprep.subr.mxu0 0.0
        %2162 = vmatpush1.msra.mxu0 0.0
        %2163 = vmatprep.subr.mxu0 0.0
        %2164 = vmatpush1.msra.mxu0 0.0
        %2165 = vmatprep.subr.mxu0 0.0
        %2166 = vmatpush1.msra.mxu0 0.0
        %2167 = vmatprep.subr.mxu0 0.0
        %2168 = vmatpush1.msra.mxu0 0.0
        %2169 = vmatprep.subr.mxu0 0.0
        %2170 = vmatpush1.msra.mxu0 0.0
        %2171 = vmatprep.subr.mxu0 0.0
        %2172 = vmatpush1.msra.mxu0 0.0
        %2173 = vmatprep.subr.mxu0 0.0
        %2174 = vmatpush1.msra.mxu0 0.0
        %2175 = vmatprep.subr.mxu0 0.0
        %2176 = vmatpush1.msra.mxu0 0.0
        %2177 = vmatprep.subr.mxu0 0.0
        %2178 = vmatpush1.msra.mxu0 0.0
        %2179 = vmatprep.subr.mxu0 0.0
        %2180 = vmatpush1.msra.mxu0 0.0
        %2181 = vmatprep.subr.mxu0 0.0
        %2182 = vmatpush1.msra.mxu0 0.0
        %2183 = vmatprep.subr.mxu0 0.0
        %2184 = vmatpush1.msra.mxu0 0.0
        %2185 = vmatprep.subr.mxu0 0.0
        %2186 = vmatpush1.msra.mxu0 0.0
        %2187 = vmatprep.subr.mxu0 0.0
        %2188 = vmatpush1.msra.mxu0 0.0
        %2189 = vmatprep.subr.mxu0 0.0
        %2190 = vmatpush1.msra.mxu0 0.0
        %2191 = vmatprep.subr.mxu0 0.0
        %2192 = vmatpush1.msra.mxu0 0.0
        %2193 = vmatprep.subr.mxu0 0.0
        %2194 = vmatpush1.msra.mxu0 0.0
        %2195 = vmatprep.subr.mxu0 0.0
        %2196 = vmatpush1.msra.mxu0 0.0
        %2197 = vmatprep.mubr.f32.mxu0 0.0
        %2198 = vmatmul.mubr.f32.gmra.mrb[0].mxu0 %v2131
        %v2199 = vpop.f32.mrb[0].mxu0
        %v2200 = vadd.f32 0.0, %v2199
        %v2201 = vpop.f32.mrb[0].mxu0
        %2202 = vdwg.mxu0
        %2203 = vrot.lane.b32.xlu0 %v1867, 112
        %v2204 = vpop.permute.xlu0 %2203
        %2205 = vrot.lane.b32.xlu0 %v1867, 80
        %v2206 = vpop.permute.xlu0 %2205
        %v2207 = vsel %vm768, %v2204, 0
        %v2209 = vsel %vm768, %v2206, 0
        %2211 = vmatprep.subr.mxu0 0.0
        %2212 = vmatpush1.xpose.msra.mxu0 %v2209
        %2213 = vmatprep.subr.mxu0 0.0
        %2214 = vmatpush1.xpose.msra.mxu0 0.0
        %2215 = vmatprep.subr.mxu0 0.0
        %2216 = vmatpush1.xpose.msra.mxu0 0.0
        %2217 = vmatprep.subr.mxu0 0.0
        %2218 = vmatpush1.xpose.msra.mxu0 0.0
        %2219 = vmatprep.subr.mxu0 0.0
        %2220 = vmatpush1.xpose.msra.mxu0 0.0
        %2221 = vmatprep.subr.mxu0 0.0
        %2222 = vmatpush1.xpose.msra.mxu0 0.0
        %2223 = vmatprep.subr.mxu0 0.0
        %2224 = vmatpush1.xpose.msra.mxu0 0.0
        %2225 = vmatprep.subr.mxu0 0.0
        %2226 = vmatpush1.xpose.msra.mxu0 0.0
        %2227 = vmatprep.subr.mxu0 0.0
        %2228 = vmatpush1.xpose.msra.mxu0 0.0
        %2229 = vmatprep.subr.mxu0 0.0
        %2230 = vmatpush1.xpose.msra.mxu0 0.0
        %2231 = vmatprep.subr.mxu0 0.0
        %2232 = vmatpush1.xpose.msra.mxu0 0.0
        %2233 = vmatprep.subr.mxu0 0.0
        %2234 = vmatpush1.xpose.msra.mxu0 0.0
        %2235 = vmatprep.subr.mxu0 0.0
        %2236 = vmatpush1.xpose.msra.mxu0 0.0
        %2237 = vmatprep.subr.mxu0 0.0
        %2238 = vmatpush1.xpose.msra.mxu0 0.0
        %2239 = vmatprep.subr.mxu0 0.0
        %2240 = vmatpush1.xpose.msra.mxu0 0.0
        %2241 = vmatprep.subr.mxu0 0.0
        %2242 = vmatpush1.xpose.msra.mxu0 0.0
        %2243 = vmatprep.subr.mxu0 0.0
        %2244 = vmatpush1.xpose.msra.mxu0 0.0
        %2245 = vmatprep.subr.mxu0 0.0
        %2246 = vmatpush1.xpose.msra.mxu0 0.0
        %2247 = vmatprep.subr.mxu0 0.0
        %2248 = vmatpush1.xpose.msra.mxu0 0.0
        %2249 = vmatprep.subr.mxu0 0.0
        %2250 = vmatpush1.xpose.msra.mxu0 0.0
        %2251 = vmatprep.subr.mxu0 0.0
        %2252 = vmatpush1.xpose.msra.mxu0 0.0
        %2253 = vmatprep.subr.mxu0 0.0
        %2254 = vmatpush1.xpose.msra.mxu0 0.0
        %2255 = vmatprep.subr.mxu0 0.0
        %2256 = vmatpush1.xpose.msra.mxu0 0.0
        %2257 = vmatprep.subr.mxu0 0.0
        %2258 = vmatpush1.xpose.msra.mxu0 0.0
        %2259 = vmatprep.subr.mxu0 0.0
        %2260 = vmatpush1.xpose.msra.mxu0 0.0
        %2261 = vmatprep.subr.mxu0 0.0
        %2262 = vmatpush1.xpose.msra.mxu0 0.0
        %2263 = vmatprep.subr.mxu0 0.0
        %2264 = vmatpush1.xpose.msra.mxu0 0.0
        %2265 = vmatprep.subr.mxu0 0.0
        %2266 = vmatpush1.xpose.msra.mxu0 0.0
        %2267 = vmatprep.subr.mxu0 0.0
        %2268 = vmatpush1.xpose.msra.mxu0 0.0
        %2269 = vmatprep.subr.mxu0 0.0
        %2270 = vmatpush1.xpose.msra.mxu0 0.0
        %2271 = vmatprep.subr.mxu0 0.0
        %2272 = vmatpush1.xpose.msra.mxu0 0.0
        %2273 = vmatprep.subr.mxu0 0.0
        %2274 = vmatpush1.xpose.msra.mxu0 0.0
        %2275 = vmatprep.mubr.f32.mxu0 0.0
        %2276 = vmatmul.mubr.f32.gmra.mrb[0].mxu0 %v2207
        %v2277 = vpop.f32.mrb[0].mxu0
        %v2278 = vadd.f32 0.0, %v2277
        %v2279 = vpop.f32.mrb[0].mxu0
        %2280 = vdwg.mxu0
        %v2281 = vmul.f32 %v2278, 0.35355338
        %v2282 = vadd.f32 %v2281, %v848
        %v2283 = vsel %vm768, %v2282, -inf
        %2284 = vmax.xlane.f32.xlu0 %v2283
        %v2285 = vpop.xlane.xlu0 %2284
        %v2286 = vsub.f32 %v2282, %v2285
        %v2287 = vmul.f32 %v2286, 1.442695
        %v2288 = vpow.pop %v2287
        %v2289 = vsel %vm768, %v2288, 0.0
        %2290 = vadd.xlane.f32.xlu0 %v2289
        %v2291 = vpop.xlane.xlu0 %2290
        %v2292 = vrcp.pop %v2291
        %v2293 = vmul.f32 %v2288, %v2292
        %2294 = vrot.lane.b32.xlu0 %v1867, 48
        %v2295 = vpop.permute.xlu0 %2294
        %v2298 = vsel %vm768, %v2293, 0
        %2300 = vmatprep.subr.mxu0 0.0
        %2301 = vmatpush1.msra.mxu0 %v2295
        %2302 = vmatprep.subr.mxu0 0.0
        %2303 = vmatpush1.msra.mxu0 0.0
        %2304 = vmatprep.subr.mxu0 0.0
        %2305 = vmatpush1.msra.mxu0 0.0
        %2306 = vmatprep.subr.mxu0 0.0
        %2307 = vmatpush1.msra.mxu0 0.0
        %2308 = vmatprep.subr.mxu0 0.0
        %2309 = vmatpush1.msra.mxu0 0.0
        %2310 = vmatprep.subr.mxu0 0.0
        %2311 = vmatpush1.msra.mxu0 0.0
        %2312 = vmatprep.subr.mxu0 0.0
        %2313 = vmatpush1.msra.mxu0 0.0
        %2314 = vmatprep.subr.mxu0 0.0
        %2315 = vmatpush1.msra.mxu0 0.0
        %2316 = vmatprep.subr.mxu0 0.0
        %2317 = vmatpush1.msra.mxu0 0.0
        %2318 = vmatprep.subr.mxu0 0.0
        %2319 = vmatpush1.msra.mxu0 0.0
        %2320 = vmatprep.subr.mxu0 0.0
        %2321 = vmatpush1.msra.mxu0 0.0
        %2322 = vmatprep.subr.mxu0 0.0
        %2323 = vmatpush1.msra.mxu0 0.0
        %2324 = vmatprep.subr.mxu0 0.0
        %2325 = vmatpush1.msra.mxu0 0.0
        %2326 = vmatprep.subr.mxu0 0.0
        %2327 = vmatpush1.msra.mxu0 0.0
        %2328 = vmatprep.subr.mxu0 0.0
        %2329 = vmatpush1.msra.mxu0 0.0
        %2330 = vmatprep.subr.mxu0 0.0
        %2331 = vmatpush1.msra.mxu0 0.0
        %2332 = vmatprep.subr.mxu0 0.0
        %2333 = vmatpush1.msra.mxu0 0.0
        %2334 = vmatprep.subr.mxu0 0.0
        %2335 = vmatpush1.msra.mxu0 0.0
        %2336 = vmatprep.subr.mxu0 0.0
        %2337 = vmatpush1.msra.mxu0 0.0
        %2338 = vmatprep.subr.mxu0 0.0
        %2339 = vmatpush1.msra.mxu0 0.0
        %2340 = vmatprep.subr.mxu0 0.0
        %2341 = vmatpush1.msra.mxu0 0.0
        %2342 = vmatprep.subr.mxu0 0.0
        %2343 = vmatpush1.msra.mxu0 0.0
        %2344 = vmatprep.subr.mxu0 0.0
        %2345 = vmatpush1.msra.mxu0 0.0
        %2346 = vmatprep.subr.mxu0 0.0
        %2347 = vmatpush1.msra.mxu0 0.0
        %2348 = vmatprep.subr.mxu0 0.0
        %2349 = vmatpush1.msra.mxu0 0.0
        %2350 = vmatprep.subr.mxu0 0.0
        %2351 = vmatpush1.msra.mxu0 0.0
        %2352 = vmatprep.subr.mxu0 0.0
        %2353 = vmatpush1.msra.mxu0 0.0
        %2354 = vmatprep.subr.mxu0 0.0
        %2355 = vmatpush1.msra.mxu0 0.0
        %2356 = vmatprep.subr.mxu0 0.0
        %2357 = vmatpush1.msra.mxu0 0.0
        %2358 = vmatprep.subr.mxu0 0.0
        %2359 = vmatpush1.msra.mxu0 0.0
        %2360 = vmatprep.subr.mxu0 0.0
        %2361 = vmatpush1.msra.mxu0 0.0
        %2362 = vmatprep.subr.mxu0 0.0
        %2363 = vmatpush1.msra.mxu0 0.0
        %2364 = vmatprep.mubr.f32.mxu0 0.0
        %2365 = vmatmul.mubr.f32.gmra.mrb[0].mxu0 %v2298
        %v2366 = vpop.f32.mrb[0].mxu0
        %v2367 = vadd.f32 0.0, %v2366
        %v2368 = vpop.f32.mrb[0].mxu0
        %2369 = vdwg.mxu0
        %2370 = vrot.lane.b32.xlu0 %v1867, 104
        %v2371 = vpop.permute.xlu0 %2370
        %2372 = vrot.lane.b32.xlu0 %v1867, 72
        %v2373 = vpop.permute.xlu0 %2372
        %v2374 = vsel %vm768, %v2371, 0
        %v2376 = vsel %vm768, %v2373, 0
        %2378 = vmatprep.subr.mxu0 0.0
        %2379 = vmatpush1.xpose.msra.mxu0 %v2376
        %2380 = vmatprep.subr.mxu0 0.0
        %2381 = vmatpush1.xpose.msra.mxu0 0.0
        %2382 = vmatprep.subr.mxu0 0.0
        %2383 = vmatpush1.xpose.msra.mxu0 0.0
        %2384 = vmatprep.subr.mxu0 0.0
        %2385 = vmatpush1.xpose.msra.mxu0 0.0
        %2386 = vmatprep.subr.mxu0 0.0
        %2387 = vmatpush1.xpose.msra.mxu0 0.0
        %2388 = vmatprep.subr.mxu0 0.0
        %2389 = vmatpush1.xpose.msra.mxu0 0.0
        %2390 = vmatprep.subr.mxu0 0.0
        %2391 = vmatpush1.xpose.msra.mxu0 0.0
        %2392 = vmatprep.subr.mxu0 0.0
        %2393 = vmatpush1.xpose.msra.mxu0 0.0
        %2394 = vmatprep.subr.mxu0 0.0
        %2395 = vmatpush1.xpose.msra.mxu0 0.0
        %2396 = vmatprep.subr.mxu0 0.0
        %2397 = vmatpush1.xpose.msra.mxu0 0.0
        %2398 = vmatprep.subr.mxu0 0.0
        %2399 = vmatpush1.xpose.msra.mxu0 0.0
        %2400 = vmatprep.subr.mxu0 0.0
        %2401 = vmatpush1.xpose.msra.mxu0 0.0
        %2402 = vmatprep.subr.mxu0 0.0
        %2403 = vmatpush1.xpose.msra.mxu0 0.0
        %2404 = vmatprep.subr.mxu0 0.0
        %2405 = vmatpush1.xpose.msra.mxu0 0.0
        %2406 = vmatprep.subr.mxu0 0.0
        %2407 = vmatpush1.xpose.msra.mxu0 0.0
        %2408 = vmatprep.subr.mxu0 0.0
        %2409 = vmatpush1.xpose.msra.mxu0 0.0
        %2410 = vmatprep.subr.mxu0 0.0
        %2411 = vmatpush1.xpose.msra.mxu0 0.0
        %2412 = vmatprep.subr.mxu0 0.0
        %2413 = vmatpush1.xpose.msra.mxu0 0.0
        %2414 = vmatprep.subr.mxu0 0.0
        %2415 = vmatpush1.xpose.msra.mxu0 0.0
        %2416 = vmatprep.subr.mxu0 0.0
        %2417 = vmatpush1.xpose.msra.mxu0 0.0
        %2418 = vmatprep.subr.mxu0 0.0
        %2419 = vmatpush1.xpose.msra.mxu0 0.0
        %2420 = vmatprep.subr.mxu0 0.0
        %2421 = vmatpush1.xpose.msra.mxu0 0.0
        %2422 = vmatprep.subr.mxu0 0.0
        %2423 = vmatpush1.xpose.msra.mxu0 0.0
        %2424 = vmatprep.subr.mxu0 0.0
        %2425 = vmatpush1.xpose.msra.mxu0 0.0
        %2426 = vmatprep.subr.mxu0 0.0
        %2427 = vmatpush1.xpose.msra.mxu0 0.0
        %2428 = vmatprep.subr.mxu0 0.0
        %2429 = vmatpush1.xpose.msra.mxu0 0.0
        %2430 = vmatprep.subr.mxu0 0.0
        %2431 = vmatpush1.xpose.msra.mxu0 0.0
        %2432 = vmatprep.subr.mxu0 0.0
        %2433 = vmatpush1.xpose.msra.mxu0 0.0
        %2434 = vmatprep.subr.mxu0 0.0
        %2435 = vmatpush1.xpose.msra.mxu0 0.0
        %2436 = vmatprep.subr.mxu0 0.0
        %2437 = vmatpush1.xpose.msra.mxu0 0.0
        %2438 = vmatprep.subr.mxu0 0.0
        %2439 = vmatpush1.xpose.msra.mxu0 0.0
        %2440 = vmatprep.subr.mxu0 0.0
        %2441 = vmatpush1.xpose.msra.mxu0 0.0
        %2442 = vmatprep.mubr.f32.mxu0 0.0
        %2443 = vmatmul.mubr.f32.gmra.mrb[0].mxu0 %v2374
        %v2444 = vpop.f32.mrb[0].mxu0
        %v2445 = vadd.f32 0.0, %v2444
        %v2446 = vpop.f32.mrb[0].mxu0
        %2447 = vdwg.mxu0
        %v2448 = vmul.f32 %v2445, 0.35355338
        %v2449 = vadd.f32 %v2448, %v848
        %v2450 = vsel %vm768, %v2449, -inf
        %2451 = vmax.xlane.f32.xlu0 %v2450
        %v2452 = vpop.xlane.xlu0 %2451
        %v2453 = vsub.f32 %v2449, %v2452
        %v2454 = vmul.f32 %v2453, 1.442695
        %v2455 = vpow.pop %v2454
        %v2456 = vsel %vm768, %v2455, 0.0
        %2457 = vadd.xlane.f32.xlu0 %v2456
        %v2458 = vpop.xlane.xlu0 %2457
        %v2459 = vrcp.pop %v2458
        %v2460 = vmul.f32 %v2455, %v2459
        %2461 = vrot.lane.b32.xlu0 %v1867, 40
        %v2462 = vpop.permute.xlu0 %2461
        %v2465 = vsel %vm768, %v2460, 0
        %2467 = vmatprep.subr.mxu0 0.0
        %2468 = vmatpush1.msra.mxu0 %v2462
        %2469 = vmatprep.subr.mxu0 0.0
        %2470 = vmatpush1.msra.mxu0 0.0
        %2471 = vmatprep.subr.mxu0 0.0
        %2472 = vmatpush1.msra.mxu0 0.0
        %2473 = vmatprep.subr.mxu0 0.0
        %2474 = vmatpush1.msra.mxu0 0.0
        %2475 = vmatprep.subr.mxu0 0.0
        %2476 = vmatpush1.msra.mxu0 0.0
        %2477 = vmatprep.subr.mxu0 0.0
        %2478 = vmatpush1.msra.mxu0 0.0
        %2479 = vmatprep.subr.mxu0 0.0
        %2480 = vmatpush1.msra.mxu0 0.0
        %2481 = vmatprep.subr.mxu0 0.0
        %2482 = vmatpush1.msra.mxu0 0.0
        %2483 = vmatprep.subr.mxu0 0.0
        %2484 = vmatpush1.msra.mxu0 0.0
        %2485 = vmatprep.subr.mxu0 0.0
        %2486 = vmatpush1.msra.mxu0 0.0
        %2487 = vmatprep.subr.mxu0 0.0
        %2488 = vmatpush1.msra.mxu0 0.0
        %2489 = vmatprep.subr.mxu0 0.0
        %2490 = vmatpush1.msra.mxu0 0.0
        %2491 = vmatprep.subr.mxu0 0.0
        %2492 = vmatpush1.msra.mxu0 0.0
        %2493 = vmatprep.subr.mxu0 0.0
        %2494 = vmatpush1.msra.mxu0 0.0
        %2495 = vmatprep.subr.mxu0 0.0
        %2496 = vmatpush1.msra.mxu0 0.0
        %2497 = vmatprep.subr.mxu0 0.0
        %2498 = vmatpush1.msra.mxu0 0.0
        %2499 = vmatprep.subr.mxu0 0.0
        %2500 = vmatpush1.msra.mxu0 0.0
        %2501 = vmatprep.subr.mxu0 0.0
        %2502 = vmatpush1.msra.mxu0 0.0
        %2503 = vmatprep.subr.mxu0 0.0
        %2504 = vmatpush1.msra.mxu0 0.0
        %2505 = vmatprep.subr.mxu0 0.0
        %2506 = vmatpush1.msra.mxu0 0.0
        %2507 = vmatprep.subr.mxu0 0.0
        %2508 = vmatpush1.msra.mxu0 0.0
        %2509 = vmatprep.subr.mxu0 0.0
        %2510 = vmatpush1.msra.mxu0 0.0
        %2511 = vmatprep.subr.mxu0 0.0
        %2512 = vmatpush1.msra.mxu0 0.0
        %2513 = vmatprep.subr.mxu0 0.0
        %2514 = vmatpush1.msra.mxu0 0.0
        %2515 = vmatprep.subr.mxu0 0.0
        %2516 = vmatpush1.msra.mxu0 0.0
        %2517 = vmatprep.subr.mxu0 0.0
        %2518 = vmatpush1.msra.mxu0 0.0
        %2519 = vmatprep.subr.mxu0 0.0
        %2520 = vmatpush1.msra.mxu0 0.0
        %2521 = vmatprep.subr.mxu0 0.0
        %2522 = vmatpush1.msra.mxu0 0.0
        %2523 = vmatprep.subr.mxu0 0.0
        %2524 = vmatpush1.msra.mxu0 0.0
        %2525 = vmatprep.subr.mxu0 0.0
        %2526 = vmatpush1.msra.mxu0 0.0
        %2527 = vmatprep.subr.mxu0 0.0
        %2528 = vmatpush1.msra.mxu0 0.0
        %2529 = vmatprep.subr.mxu0 0.0
        %2530 = vmatpush1.msra.mxu0 0.0
        %2531 = vmatprep.mubr.f32.mxu0 0.0
        %2532 = vmatmul.mubr.f32.gmra.mrb[0].mxu0 %v2465
        %v2533 = vpop.f32.mrb[0].mxu0
        %v2534 = vadd.f32 0.0, %v2533
        %v2535 = vpop.f32.mrb[0].mxu0
        %2536 = vdwg.mxu0
        %2538 = vrot.lane.b32.xlu0 %v2200, 8
        %v2539 = vpop.permute.xlu0 %2538
        %2542 = vrot.lane.b32.xlu0 %v2367, 16
        %v2543 = vpop.permute.xlu0 %2542
        %2546 = vrot.lane.b32.xlu0 %v2534, 24
        %v2547 = vpop.permute.xlu0 %2546
        %v2549 = vsel %vm768, %v2033, %v2539
        %v2550 = vsel %vm1452, %v2549, %v2543
        %v2551 = vsel %vm1454, %v2550, %v2547
        %s2552 = scalar_lea.vmem %s7, 32
        %v2553 = vld [vmem:[%s2552] sm:$0xff]
        %v2554 = vld [vmem:[%s2552 + $0x8] sm:$0xff]
        %v2555 = vld [vmem:[%s2552 + $0x10] sm:$0xff]
        %v2556 = vld [vmem:[%s2552 + $0x18] sm:$0xff]
        %s2557 = scalar_lea.vmem %s8, 1
        %v2558 = vld [vmem:[%s2557] sm:$0x1]
        %v2560 = vlaneseq
        %v2561 = vshrl.u32 %v2560, 7
        %v2562 = vsub.s32 0, %v2561
        %v2563 = vrot.slane %v2558, %v2562
        %v2566 = vsel %vm650, %v2551, 0
        %2568 = vmatprep.subr.mxu0 0.0
        %2569 = vmatpush1.msra.mxu0 %v2553
        %2570 = vmatprep.subr.mxu0 0.0
        %2571 = vmatpush1.msra.mxu0 %v2554
        %2572 = vmatprep.subr.mxu0 0.0
        %2573 = vmatpush1.msra.mxu0 %v2555
        %2574 = vmatprep.subr.mxu0 0.0
        %2575 = vmatpush1.msra.mxu0 %v2556
        %2576 = vmatprep.subr.mxu0 0.0
        %2577 = vmatpush1.msra.mxu0 0.0
        %2578 = vmatprep.subr.mxu0 0.0
        %2579 = vmatpush1.msra.mxu0 0.0
        %2580 = vmatprep.subr.mxu0 0.0
        %2581 = vmatpush1.msra.mxu0 0.0
        %2582 = vmatprep.subr.mxu0 0.0
        %2583 = vmatpush1.msra.mxu0 0.0
        %2584 = vmatprep.subr.mxu0 0.0
        %2585 = vmatpush1.msra.mxu0 0.0
        %2586 = vmatprep.subr.mxu0 0.0
        %2587 = vmatpush1.msra.mxu0 0.0
        %2588 = vmatprep.subr.mxu0 0.0
        %2589 = vmatpush1.msra.mxu0 0.0
        %2590 = vmatprep.subr.mxu0 0.0
        %2591 = vmatpush1.msra.mxu0 0.0
        %2592 = vmatprep.subr.mxu0 0.0
        %2593 = vmatpush1.msra.mxu0 0.0
        %2594 = vmatprep.subr.mxu0 0.0
        %2595 = vmatpush1.msra.mxu0 0.0
        %2596 = vmatprep.subr.mxu0 0.0
        %2597 = vmatpush1.msra.mxu0 0.0
        %2598 = vmatprep.subr.mxu0 0.0
        %2599 = vmatpush1.msra.mxu0 0.0
        %2600 = vmatprep.subr.mxu0 0.0
        %2601 = vmatpush1.msra.mxu0 0.0
        %2602 = vmatprep.subr.mxu0 0.0
        %2603 = vmatpush1.msra.mxu0 0.0
        %2604 = vmatprep.subr.mxu0 0.0
        %2605 = vmatpush1.msra.mxu0 0.0
        %2606 = vmatprep.subr.mxu0 0.0
        %2607 = vmatpush1.msra.mxu0 0.0
        %2608 = vmatprep.subr.mxu0 0.0
        %2609 = vmatpush1.msra.mxu0 0.0
        %2610 = vmatprep.subr.mxu0 0.0
        %2611 = vmatpush1.msra.mxu0 0.0
        %2612 = vmatprep.subr.mxu0 0.0
        %2613 = vmatpush1.msra.mxu0 0.0
        %2614 = vmatprep.subr.mxu0 0.0
        %2615 = vmatpush1.msra.mxu0 0.0
        %2616 = vmatprep.subr.mxu0 0.0
        %2617 = vmatpush1.msra.mxu0 0.0
        %2618 = vmatprep.subr.mxu0 0.0
        %2619 = vmatpush1.msra.mxu0 0.0
        %2620 = vmatprep.subr.mxu0 0.0
        %2621 = vmatpush1.msra.mxu0 0.0
        %2622 = vmatprep.subr.mxu0 0.0
        %2623 = vmatpush1.msra.mxu0 0.0
        %2624 = vmatprep.subr.mxu0 0.0
        %2625 = vmatpush1.msra.mxu0 0.0
        %2626 = vmatprep.subr.mxu0 0.0
        %2627 = vmatpush1.msra.mxu0 0.0
        %2628 = vmatprep.subr.mxu0 0.0
        %2629 = vmatpush1.msra.mxu0 0.0
        %2630 = vmatprep.subr.mxu0 0.0
        %2631 = vmatpush1.msra.mxu0 0.0
        %2632 = vmatprep.mubr.f32.mxu0 0.0
        %2633 = vmatmul.mubr.f32.gmra.mrb[0].mxu0 %v2566
        %v2634 = vpop.f32.mrb[0].mxu0
        %v2635 = vadd.f32 %v2563, %v2634
        %v2636 = vpop.f32.mrb[0].mxu0
        %2637 = vdwg.mxu0
        %v2638 = vadd.f32 %v2635, %v1781
        %s2639 = scalar_lea.vmem %s9, 1
        %v2640 = vld [vmem:[%s2639] sm:$0x1]
        %s2641 = scalar_lea.vmem %s10, 1
        %v2642 = vld [vmem:[%s2641] sm:$0x1]
        %v2643 = vsel %vm650, %v2638, 0.0
        %2644 = vadd.xlane.f32.xlu0 %v2643
        %v2645 = vpop.xlane.xlu0 %2644
        %v2646 = vmul.f32 %v2645, %v654
        %v2647 = vsub.f32 %v2638, %v2646
        %v2648 = vmul.f32 %v2647, %v2647
        %v2649 = vsel %vm650, %v2648, 0.0
        %2650 = vadd.xlane.f32.xlu0 %v2649
        %v2651 = vpop.xlane.xlu0 %2650
        %v2652 = vmul.f32 %v2651, %v654
        %v2653 = vadd.f32 %v2652, 1e-12
        %v2654 = vrsqrt.pop %v2653
        %v2655 = vmul.f32 %v2647, %v2654
        %v2657 = vlaneseq
        %v2658 = vshrl.u32 %v2657, 7
        %v2659 = vsub.s32 0, %v2658
        %v2660 = vrot.slane %v2640, %v2659
        %v2662 = vmul.f32 %v2655, %v2660
        %v2664 = vlaneseq
        %v2665 = vshrl.u32 %v2664, 7
        %v2666 = vsub.s32 0, %v2665
        %v2667 = vrot.slane %v2642, %v2666
        %v2669 = vadd.f32 %v2662, %v2667
        %s2670 = scalar_lea.vmem %s11, 32
        %v2671 = vld [vmem:[%s2670] sm:$0xff]
        %v2672 = vld [vmem:[%s2670 + $0x8] sm:$0xff]
        %v2673 = vld [vmem:[%s2670 + $0x10] sm:$0xff]
        %v2674 = vld [vmem:[%s2670 + $0x18] sm:$0xff]
        %s2675 = scalar_lea.vmem %s12, 1
        %v2676 = vld [vmem:[%s2675] sm:$0x1]
        %v2678 = vlaneseq
        %v2679 = vshrl.u32 %v2678, 7
        %v2680 = vsub.s32 0, %v2679
        %v2681 = vrot.slane %v2676, %v2680
        %v2684 = vsel %vm650, %v2669, 0
        %2686 = vmatprep.subr.mxu0 0.0
        %2687 = vmatpush1.msra.mxu0 %v2671
        %2688 = vmatprep.subr.mxu0 0.0
        %2689 = vmatpush1.msra.mxu0 %v2672
        %2690 = vmatprep.subr.mxu0 0.0
        %2691 = vmatpush1.msra.mxu0 %v2673
        %2692 = vmatprep.subr.mxu0 0.0
        %2693 = vmatpush1.msra.mxu0 %v2674
        %2694 = vmatprep.subr.mxu0 0.0
        %2695 = vmatpush1.msra.mxu0 0.0
        %2696 = vmatprep.subr.mxu0 0.0
        %2697 = vmatpush1.msra.mxu0 0.0
        %2698 = vmatprep.subr.mxu0 0.0
        %2699 = vmatpush1.msra.mxu0 0.0
        %2700 = vmatprep.subr.mxu0 0.0
        %2701 = vmatpush1.msra.mxu0 0.0
        %2702 = vmatprep.subr.mxu0 0.0
        %2703 = vmatpush1.msra.mxu0 0.0
        %2704 = vmatprep.subr.mxu0 0.0
        %2705 = vmatpush1.msra.mxu0 0.0
        %2706 = vmatprep.subr.mxu0 0.0
        %2707 = vmatpush1.msra.mxu0 0.0
        %2708 = vmatprep.subr.mxu0 0.0
        %2709 = vmatpush1.msra.mxu0 0.0
        %2710 = vmatprep.subr.mxu0 0.0
        %2711 = vmatpush1.msra.mxu0 0.0
        %2712 = vmatprep.subr.mxu0 0.0
        %2713 = vmatpush1.msra.mxu0 0.0
        %2714 = vmatprep.subr.mxu0 0.0
        %2715 = vmatpush1.msra.mxu0 0.0
        %2716 = vmatprep.subr.mxu0 0.0
        %2717 = vmatpush1.msra.mxu0 0.0
        %2718 = vmatprep.subr.mxu0 0.0
        %2719 = vmatpush1.msra.mxu0 0.0
        %2720 = vmatprep.subr.mxu0 0.0
        %2721 = vmatpush1.msra.mxu0 0.0
        %2722 = vmatprep.subr.mxu0 0.0
        %2723 = vmatpush1.msra.mxu0 0.0
        %2724 = vmatprep.subr.mxu0 0.0
        %2725 = vmatpush1.msra.mxu0 0.0
        %2726 = vmatprep.subr.mxu0 0.0
        %2727 = vmatpush1.msra.mxu0 0.0
        %2728 = vmatprep.subr.mxu0 0.0
        %2729 = vmatpush1.msra.mxu0 0.0
        %2730 = vmatprep.subr.mxu0 0.0
        %2731 = vmatpush1.msra.mxu0 0.0
        %2732 = vmatprep.subr.mxu0 0.0
        %2733 = vmatpush1.msra.mxu0 0.0
        %2734 = vmatprep.subr.mxu0 0.0
        %2735 = vmatpush1.msra.mxu0 0.0
        %2736 = vmatprep.subr.mxu0 0.0
        %2737 = vmatpush1.msra.mxu0 0.0
        %2738 = vmatprep.subr.mxu0 0.0
        %2739 = vmatpush1.msra.mxu0 0.0
        %2740 = vmatprep.subr.mxu0 0.0
        %2741 = vmatpush1.msra.mxu0 0.0
        %2742 = vmatprep.subr.mxu0 0.0
        %2743 = vmatpush1.msra.mxu0 0.0
        %2744 = vmatprep.subr.mxu0 0.0
        %2745 = vmatpush1.msra.mxu0 0.0
        %2746 = vmatprep.subr.mxu0 0.0
        %2747 = vmatpush1.msra.mxu0 0.0
        %2748 = vmatprep.subr.mxu0 0.0
        %2749 = vmatpush1.msra.mxu0 0.0
        %2750 = vmatprep.mubr.f32.mxu0 0.0
        %2751 = vmatmul.mubr.f32.gmra.mrb[0].mxu0 %v2684
        %v2752 = vpop.f32.mrb[0].mxu0
        %v2753 = vadd.f32 %v2681, %v2752
        %v2754 = vpop.f32.mrb[0].mxu0
        %2755 = vdwg.mxu0
        %v2756 = vmul.f32 %v2753, %v2753
        %v2757 = vmul.f32 %v2753, %v2756
        %v2758 = vmul.f32 %v2757, 0.044715
        %v2759 = vadd.f32 %v2753, %v2758
        %v2760 = vmul.f32 %v2759, 0.7978846
        %v2761 = vtanh.pop %v2760
        %v2762 = vadd.f32 %v2761, 1.0
        %v2763 = vmul.f32 %v2762, 0.5
        %v2764 = vmul.f32 %v2753, %v2763
        %s2765 = scalar_lea.vmem %s13, 64
        %v2766 = vld [vmem:[%s2765] sm:$0xff]
        %v2767 = vld [vmem:[%s2765 + $0x8] sm:$0xff]
        %v2768 = vld [vmem:[%s2765 + $0x10] sm:$0xff]
        %v2769 = vld [vmem:[%s2765 + $0x18] sm:$0xff]
        %v2770 = vld [vmem:[%s2765 + $0x20] sm:$0xff]
        %v2771 = vld [vmem:[%s2765 + $0x28] sm:$0xff]
        %v2772 = vld [vmem:[%s2765 + $0x30] sm:$0xff]
        %v2773 = vld [vmem:[%s2765 + $0x38] sm:$0xff]
        %s2774 = scalar_lea.vmem %s14, 1
        %v2775 = vld [vmem:[%s2774] sm:$0x1]
        %v2777 = vlaneseq
        %v2778 = vshrl.u32 %v2777, 7
        %v2779 = vsub.s32 0, %v2778
        %v2780 = vrot.slane %v2775, %v2779
        %v2783 = vsel %vm1678, %v2764, 0
        %2785 = vmatprep.subr.mxu0 0.0
        %2786 = vmatpush1.msra.mxu0 %v2766
        %2787 = vmatprep.subr.mxu0 0.0
        %2788 = vmatpush1.msra.mxu0 %v2767
        %2789 = vmatprep.subr.mxu0 0.0
        %2790 = vmatpush1.msra.mxu0 %v2768
        %2791 = vmatprep.subr.mxu0 0.0
        %2792 = vmatpush1.msra.mxu0 %v2769
        %2793 = vmatprep.subr.mxu0 0.0
        %2794 = vmatpush1.msra.mxu0 %v2770
        %2795 = vmatprep.subr.mxu0 0.0
        %2796 = vmatpush1.msra.mxu0 %v2771
        %2797 = vmatprep.subr.mxu0 0.0
        %2798 = vmatpush1.msra.mxu0 %v2772
        %2799 = vmatprep.subr.mxu0 0.0
        %2800 = vmatpush1.msra.mxu0 %v2773
        %2801 = vmatprep.subr.mxu0 0.0
        %2802 = vmatpush1.msra.mxu0 0.0
        %2803 = vmatprep.subr.mxu0 0.0
        %2804 = vmatpush1.msra.mxu0 0.0
        %2805 = vmatprep.subr.mxu0 0.0
        %2806 = vmatpush1.msra.mxu0 0.0
        %2807 = vmatprep.subr.mxu0 0.0
        %2808 = vmatpush1.msra.mxu0 0.0
        %2809 = vmatprep.subr.mxu0 0.0
        %2810 = vmatpush1.msra.mxu0 0.0
        %2811 = vmatprep.subr.mxu0 0.0
        %2812 = vmatpush1.msra.mxu0 0.0
        %2813 = vmatprep.subr.mxu0 0.0
        %2814 = vmatpush1.msra.mxu0 0.0
        %2815 = vmatprep.subr.mxu0 0.0
        %2816 = vmatpush1.msra.mxu0 0.0
        %2817 = vmatprep.subr.mxu0 0.0
        %2818 = vmatpush1.msra.mxu0 0.0
        %2819 = vmatprep.subr.mxu0 0.0
        %2820 = vmatpush1.msra.mxu0 0.0
        %2821 = vmatprep.subr.mxu0 0.0
        %2822 = vmatpush1.msra.mxu0 0.0
        %2823 = vmatprep.subr.mxu0 0.0
        %2824 = vmatpush1.msra.mxu0 0.0
        %2825 = vmatprep.subr.mxu0 0.0
        %2826 = vmatpush1.msra.mxu0 0.0
        %2827 = vmatprep.subr.mxu0 0.0
        %2828 = vmatpush1.msra.mxu0 0.0
        %2829 = vmatprep.subr.mxu0 0.0
        %2830 = vmatpush1.msra.mxu0 0.0
        %2831 = vmatprep.subr.mxu0 0.0
        %2832 = vmatpush1.msra.mxu0 0.0
        %2833 = vmatprep.subr.mxu0 0.0
        %2834 = vmatpush1.msra.mxu0 0.0
        %2835 = vmatprep.subr.mxu0 0.0
        %2836 = vmatpush1.msra.mxu0 0.0
        %2837 = vmatprep.subr.mxu0 0.0
        %2838 = vmatpush1.msra.mxu0 0.0
        %2839 = vmatprep.subr.mxu0 0.0
        %2840 = vmatpush1.msra.mxu0 0.0
        %2841 = vmatprep.subr.mxu0 0.0
        %2842 = vmatpush1.msra.mxu0 0.0
        %2843 = vmatprep.subr.mxu0 0.0
        %2844 = vmatpush1.msra.mxu0 0.0
        %2845 = vmatprep.subr.mxu0 0.0
        %2846 = vmatpush1.msra.mxu0 0.0
        %2847 = vmatprep.subr.mxu0 0.0
        %2848 = vmatpush1.msra.mxu0 0.0
        %2849 = vmatprep.mubr.f32.mxu0 0.0
        %2850 = vmatmul.mubr.f32.gmra.mrb[0].mxu0 %v2783
        %v2851 = vpop.f32.mrb[0].mxu0
        %v2852 = vadd.f32 %v2780, %v2851
        %v2853 = vpop.f32.mrb[0].mxu0
        %2854 = vdwg.mxu0
        %v2855 = vadd.f32 %v2852, %v2669
        %s2856 = scalar_lea.vmem %s15, 1
        %v2857 = vld [vmem:[%s2856] sm:$0x1]
        %s2858 = scalar_lea.vmem %s16, 1
        %v2859 = vld [vmem:[%s2858] sm:$0x1]
        %v2860 = vsel %vm650, %v2855, 0.0
        %2861 = vadd.xlane.f32.xlu0 %v2860
        %v2862 = vpop.xlane.xlu0 %2861
        %v2863 = vmul.f32 %v2862, %v654
        %v2864 = vsub.f32 %v2855, %v2863
        %v2865 = vmul.f32 %v2864, %v2864
        %v2866 = vsel %vm650, %v2865, 0.0
        %2867 = vadd.xlane.f32.xlu0 %v2866
        %v2868 = vpop.xlane.xlu0 %2867
        %v2869 = vmul.f32 %v2868, %v654
        %v2870 = vadd.f32 %v2869, 1e-12
        %v2871 = vrsqrt.pop %v2870
        %v2872 = vmul.f32 %v2864, %v2871
        %v2874 = vlaneseq
        %v2875 = vshrl.u32 %v2874, 7
        %v2876 = vsub.s32 0, %v2875
        %v2877 = vrot.slane %v2857, %v2876
        %v2879 = vmul.f32 %v2872, %v2877
        %v2881 = vlaneseq
        %v2882 = vshrl.u32 %v2881, 7
        %v2883 = vsub.s32 0, %v2882
        %v2884 = vrot.slane %v2859, %v2883
        %v2886 = vadd.f32 %v2879, %v2884
        %s2887 = scalar_lea.vmem %s631, 16 [#allocation2]
        %2888 = vst.msk [vmem:[%s2887] sm:$0xff] %vm650, %v2886
        %v2889 = vld [vmem:[%s17] sm:$0xff]
        %v2890 = vld [vmem:[%s17 + $0x8] sm:$0xff]
        %v2891 = vld [vmem:[%s17 + $0x10] sm:$0xff]
        %v2892 = vld [vmem:[%s17 + $0x18] sm:$0xff]
        %v2893 = vld [vmem:[%s18] sm:$0x1]
        %v2895 = vsel %vm650, %v2886, 0
        %2897 = vmatprep.subr.mxu0 0.0
        %2898 = vmatpush1.msra.mxu0 %v2889
        %2899 = vmatprep.subr.mxu0 0.0
        %2900 = vmatpush1.msra.mxu0 %v2890
        %2901 = vmatprep.subr.mxu0 0.0
        %2902 = vmatpush1.msra.mxu0 %v2891
        %2903 = vmatprep.subr.mxu0 0.0
        %2904 = vmatpush1.msra.mxu0 %v2892
        %2905 = vmatprep.subr.mxu0 0.0
        %2906 = vmatpush1.msra.mxu0 0.0
        %2907 = vmatprep.subr.mxu0 0.0
        %2908 = vmatpush1.msra.mxu0 0.0
        %2909 = vmatprep.subr.mxu0 0.0
        %2910 = vmatpush1.msra.mxu0 0.0
        %2911 = vmatprep.subr.mxu0 0.0
        %2912 = vmatpush1.msra.mxu0 0.0
        %2913 = vmatprep.subr.mxu0 0.0
        %2914 = vmatpush1.msra.mxu0 0.0
        %2915 = vmatprep.subr.mxu0 0.0
        %2916 = vmatpush1.msra.mxu0 0.0
        %2917 = vmatprep.subr.mxu0 0.0
        %2918 = vmatpush1.msra.mxu0 0.0
        %2919 = vmatprep.subr.mxu0 0.0
        %2920 = vmatpush1.msra.mxu0 0.0
        %2921 = vmatprep.subr.mxu0 0.0
        %2922 = vmatpush1.msra.mxu0 0.0
        %2923 = vmatprep.subr.mxu0 0.0
        %2924 = vmatpush1.msra.mxu0 0.0
        %2925 = vmatprep.subr.mxu0 0.0
        %2926 = vmatpush1.msra.mxu0 0.0
        %2927 = vmatprep.subr.mxu0 0.0
        %2928 = vmatpush1.msra.mxu0 0.0
        %2929 = vmatprep.subr.mxu0 0.0
        %2930 = vmatpush1.msra.mxu0 0.0
        %2931 = vmatprep.subr.mxu0 0.0
        %2932 = vmatpush1.msra.mxu0 0.0
        %2933 = vmatprep.subr.mxu0 0.0
        %2934 = vmatpush1.msra.mxu0 0.0
        %2935 = vmatprep.subr.mxu0 0.0
        %2936 = vmatpush1.msra.mxu0 0.0
        %2937 = vmatprep.subr.mxu0 0.0
        %2938 = vmatpush1.msra.mxu0 0.0
        %2939 = vmatprep.subr.mxu0 0.0
        %2940 = vmatpush1.msra.mxu0 0.0
        %2941 = vmatprep.subr.mxu0 0.0
        %2942 = vmatpush1.msra.mxu0 0.0
        %2943 = vmatprep.subr.mxu0 0.0
        %2944 = vmatpush1.msra.mxu0 0.0
        %2945 = vmatprep.subr.mxu0 0.0
        %2946 = vmatpush1.msra.mxu0 0.0
        %2947 = vmatprep.subr.mxu0 0.0
        %2948 = vmatpush1.msra.mxu0 0.0
        %2949 = vmatprep.subr.mxu0 0.0
        %2950 = vmatpush1.msra.mxu0 0.0
        %2951 = vmatprep.subr.mxu0 0.0
        %2952 = vmatpush1.msra.mxu0 0.0
        %2953 = vmatprep.subr.mxu0 0.0
        %2954 = vmatpush1.msra.mxu0 0.0
        %2955 = vmatprep.subr.mxu0 0.0
        %2956 = vmatpush1.msra.mxu0 0.0
        %2957 = vmatprep.subr.mxu0 0.0
        %2958 = vmatpush1.msra.mxu0 0.0
        %2959 = vmatprep.subr.mxu0 0.0
        %2960 = vmatpush1.msra.mxu0 0.0
        %2961 = vmatprep.mubr.f32.mxu0 0.0
        %2962 = vmatmul.mubr.f32.gmra.mrb[0].mxu0 %v2895
        %v2963 = vpop.f32.mrb[0].mxu0
        %v2964 = vadd.f32 %v2893, %v2963
        %v2965 = vpop.f32.mrb[0].mxu0
        %2966 = vdwg.mxu0
        %v2967 = vtanh.pop %v2964
        %vm2968 = vcmask 253952
        %2969 = vst.msk [vmem:[%s637] sm:$0x1] %vm2968, %v2967
        %s2970 = sand.u32 %s452, 1
        %s2971 = sand.u32 %s452, 1
        %s2972 = smul.addr %s2971, 24
        %s2973 = scalar_lea.vmem [#allocation2], %s2972
        %s2974 = sand.u32 %s478, 1
        %s2975 = scalar_lea.sflag [#allocation4], %s2974
        %s2976 = sand.u32 %s478, 1
        %s2977 = scalar_lea.vmem [#allocation3], %s2976
        // Predicated region
        $region97: #{plm_forward.1} parent=95 // pred_check
          %p2978 = pneg %p462
        $region98: #{plm_forward.1} parent=95 // pred_check_branch
          %2980 = sbr.rel (%p2978) target = $region100
        $region99: #{plm_forward.1} parent=95 // pred_region
          %s2981 = smul.addr %s35, 8
          %s2982 = scalar_lea.vmem %s19, %s2981
          // Predicated region
          $region101: #{plm_forward.1} parent=99 // pred_check
            _
          $region102: #{plm_forward.1} parent=99 // pred_check_branch
            %2984 = sbr.rel (0) target = $region104
          $region103: #{plm_forward.1} parent=99 // pred_region
            // Predicated region
            $region105: #{plm_forward.1} parent=103 // pred_check
              _
            $region106: #{plm_forward.1} parent=103 // pred_check_branch
              %2986 = sbr.rel (0) target = $region108
            $region107: #{plm_forward.1} parent=103 // pred_region
              // Predicated region
              $region120: #{plm_forward.1} parent=107 // pred_check
                _
              $region121: #{plm_forward.1} parent=107 // pred_check_branch
                %3005 = sbr.rel (0) target = $region123
              $region122: #{plm_forward.1} parent=107 // pred_region
                loop: start=0, step=1, limit=1
                $region124: #{plm_forward.1} parent=122 // loop_pre_header
                  _
                $region125: #{plm_forward.1} parent=122 // loop_header
                  %s3007 = sphi 0, %s3011
                  %p3008 = scmp.ge.s32.totalorder %s3007, 1
                  %s3012 = sphi %s2973, %s2973
                  %s3013 = sphi %s2982, %s2982
                $region126: #{plm_forward.1} parent=122 // loop_header_branch
                  %3010 = sbr.rel (%p3008) target = $region130
                $region127: #{plm_forward.1} parent=122 // loop_body
                  %v3014 = vld [vmem:[%s3012] sm:$0xff]
                  %3015 = vst [vmem:[%s3013] sm:$0xff] %v3014
                  %v3016 = vld [vmem:[%s3012 + $0x8] sm:$0xff]
                  %3017 = vst [vmem:[%s3013 + $0x10] sm:$0xff] %v3016
                  %v3018 = vld [vmem:[%s3012 + $0x10] sm:$0xff]
                  %3019 = vst [vmem:[%s3013 + $0x20] sm:$0xff] %v3018
                $region128: #{plm_forward.1} parent=122 // loop_footer
                  %s3011 = sadd.s32 1, %s3007
                $region129: #{plm_forward.1} parent=122 // loop_footer_branch
                  %3006 = sbr.rel target = $region125
                $region130: #{plm_forward.1} parent=122 // loop_exit
                  _
              $region123: #{plm_forward.1} parent=107 // pred_fallthru
                _
              // Predicated region
              $region131: #{plm_forward.1} parent=107 // pred_check
                _
              $region132: #{plm_forward.1} parent=107 // pred_check_branch
                %3021 = sbr.rel target = $region134
              $region133: #{plm_forward.1} parent=107 // pred_region
                _
              $region134: #{plm_forward.1} parent=107 // pred_fallthru
                _
            $region108: #{plm_forward.1} parent=103 // pred_fallthru
              _
            // Predicated region
            $region109: #{plm_forward.1} parent=103 // pred_check
              _
            $region110: #{plm_forward.1} parent=103 // pred_check_branch
              %2988 = sbr.rel target = $region112
            $region111: #{plm_forward.1} parent=103 // pred_region
              loop: start=0, step=1, limit=1
              $region113: #{plm_forward.1} parent=111 // loop_pre_header
                _
              $region114: #{plm_forward.1} parent=111 // loop_header
                %s2991 = sphi 0, %s2995
                %p2992 = scmp.ge.s32.totalorder %s2991, 1
                %s2996 = sphi %s2973, %s2973
                %s2997 = sphi %s2982, %s2982
              $region115: #{plm_forward.1} parent=111 // loop_header_branch
                %2994 = sbr.rel (%p2992) target = $region119
              $region116: #{plm_forward.1} parent=111 // loop_body
                %v2998 = vld [vmem:[%s2996] sm:$0xff]
                %2999 = vst [vmem:[%s2997] sm:$0xff] %v2998
                %v3000 = vld [vmem:[%s2996 + $0x8] sm:$0xff]
                %3001 = vst [vmem:[%s2997 + $0x10] sm:$0xff] %v3000
                %v3002 = vld [vmem:[%s2996 + $0x10] sm:$0xff]
                %3003 = vst [vmem:[%s2997 + $0x20] sm:$0xff] %v3002
              $region117: #{plm_forward.1} parent=111 // loop_footer
                %s2995 = sadd.s32 1, %s2991
              $region118: #{plm_forward.1} parent=111 // loop_footer_branch
                %2990 = sbr.rel target = $region114
              $region119: #{plm_forward.1} parent=111 // loop_exit
                _
            $region112: #{plm_forward.1} parent=103 // pred_fallthru
              _
          $region104: #{plm_forward.1} parent=99 // pred_fallthru
            _
          %3022 = vnop
        $region100: #{plm_forward.1} parent=95 // pred_fallthru
          _
        // Predicated region
        $region135: #{plm_forward.1} parent=95 // pred_check
          %p3023 = pneg %p488
        $region136: #{plm_forward.1} parent=95 // pred_check_branch
          %3025 = sbr.rel (%p3023) target = $region138
        $region137: #{plm_forward.1} parent=95 // pred_region
          %s3027 = ssub.s32 16, 16
          %3028 = vsyncadd %s2975, %s3027
          %s3029 = smul.addr %s35, 16
          %s3030 = scalar_lea.hbm %s20, %s3029
          %s3032 = sshll.u32 %s2977, 4
          %s3033 = int_to_ptr.vmem [resolvable:$true] %s3032
          %3035 = dma.vmem_to_hbm [thread:$0]  %s3033, 16, %s3030, %s2975
        $region138: #{plm_forward.1} parent=95 // pred_fallthru
          _
      $region96: #{plm_forward.1} parent=5 // pred_fallthru
        _
      %p3036 = scmp.le.s32.totalorder 2, %s30
      // Predicated region
      $region139: #{plm_forward.1} parent=5 // pred_check
        %p3037 = pneg %p3036
      $region140: #{plm_forward.1} parent=5 // pred_check_branch
        %3039 = sbr.rel (%p3037) target = $region142
      $region141: #{plm_forward.1} parent=5 // pred_region
        %s3040 = ssub.s32 %s30, 2
        // Predicated region
        $region143: #{plm_forward.1} parent=141 // pred_check
          %p3041 = pneg %p468
        $region144: #{plm_forward.1} parent=141 // pred_check_branch
          %3043 = sbr.rel (%p3041) target = $region146
        $region145: #{plm_forward.1} parent=141 // pred_region
          %s3044 = sand.u32 %s453, 1
          %s3045 = sand.u32 %s453, 1
          %s3046 = smul.addr %s3045, 24
          %s3047 = scalar_lea.vmem [#allocation2], %s3046
        $region146: #{plm_forward.1} parent=141 // pred_fallthru
          _
        // Predicated region
        $region147: #{plm_forward.1} parent=141 // pred_check
          %p3048 = pneg %p494
        $region148: #{plm_forward.1} parent=141 // pred_check_branch
          %3050 = sbr.rel (%p3048) target = $region150
        $region149: #{plm_forward.1} parent=141 // pred_region
          %s3051 = sand.u32 %s479, 1
          %s3052 = scalar_lea.sflag [#allocation4], %s3051
          %s3053 = sand.u32 %s479, 1
          %s3054 = scalar_lea.vmem [#allocation3], %s3053
          %3055 = dma.done %s3052, 16
        $region150: #{plm_forward.1} parent=141 // pred_fallthru
          _
      $region142: #{plm_forward.1} parent=5 // pred_fallthru
        _
    $region6: #{plm_forward.1} parent=1 // loop_footer
      %s34 = sadd.s32 1, %s30
    $region7: #{plm_forward.1} parent=1 // loop_footer_branch
      %29 = sbr.rel target = $region3
    $region8: #{plm_forward.1} parent=1 // loop_exit
      _
    %3056 = vsyncpa [#allocation4], 1
    %s3057 = scalar_lea.sflag [#allocation4], 1
    %3058 = vsyncpa %s3057, 1

</llo_original>
